<compile_context>
chip_gen: v5e
topology: v5e:2x2
jax: 0.10.0
libtpu: 0.0.40
codegen_flags: <defaults>
</compile_context>

<pallas_src>
import functools

import jax
import jax.numpy as jnp
import numpy as np
from jax import lax
from jax.experimental import pallas as pl
from jax.experimental.pallas import tpu as pltpu

MAX_TM = 2048  # max lane-tile width (output columns per grid step)


def _round_up(x, m):
    return ((x + m - 1) // m) * m


def _choose_tm(mp):
    """Lane tile width: as large as possible while keeping >= 2 grid steps
    (v7x has 2 TensorCores) once there is enough work to split."""
    if mp <= 256:
        return mp
    half = (mp // 2) // 128 * 128
    return max(128, min(MAX_TM, half))


# ----------------------------------------------------------------------------
# Pallas kernels: fused (W @ A) * scale + shift [+ residual] [ReLU]
#   w_ref : [R, Kp]  bf16  (constant block index -> stays VMEM resident)
#   a_ref : [Kp, TM] bf16  (im2col slab, lane-dense)
#   s_ref, c_ref : [R, 1] f32 (BN scale / shift per output row)
#   r_ref : [R, TM] f32 (optional fused residual)
#   o_ref : [R, TM] f32 (lane-dense output)
# ----------------------------------------------------------------------------
def _fused_mm_kernel(w_ref, a_ref, s_ref, c_ref, o_ref, *, relu):
    y = jnp.dot(w_ref[...], a_ref[...], preferred_element_type=jnp.float32)
    y = y * s_ref[...] + c_ref[...]
    if relu:
        y = jnp.maximum(y, 0.0)
    o_ref[...] = y


def _fused_mm_res_kernel(w_ref, a_ref, s_ref, c_ref, r_ref, o_ref, *, relu):
    y = jnp.dot(w_ref[...], a_ref[...], preferred_element_type=jnp.float32)
    y = y * s_ref[...] + c_ref[...] + r_ref[...]
    if relu:
        y = jnp.maximum(y, 0.0)
    o_ref[...] = y


def fused_matmul_bn(w, a, scale, shift, residual=None, relu=False):
    """w: [R, K], a: [K, M]  ->  [R, M] f32 (M on the lane axis)."""
    R, K = w.shape
    _, M = a.shape

    Kp = _round_up(K, 16)        # bf16 sublane packing
    Mp0 = _round_up(M, 128)
    TM = _choose_tm(Mp0)
    Mp = _round_up(M, TM)

    w_p = jnp.pad(w.astype(jnp.bfloat16), ((0, 0), (0, Kp - K)))
    a_p = jnp.pad(a.astype(jnp.bfloat16), ((0, Kp - K), (0, Mp - M)))
    s2 = scale.reshape(R, 1).astype(jnp.float32)
    c2 = shift.reshape(R, 1).astype(jnp.float32)

    w_spec = pl.BlockSpec((R, Kp), lambda i: (0, 0))
    a_spec = pl.BlockSpec((Kp, TM), lambda i: (0, i))
    v_spec = pl.BlockSpec((R, 1), lambda i: (0, 0))
    o_spec = pl.BlockSpec((R, TM), lambda i: (0, i))

    if residual is None:
        kern = functools.partial(_fused_mm_kernel, relu=relu)
        in_specs = [w_spec, a_spec, v_spec, v_spec]
        args = (w_p, a_p, s2, c2)
    else:
        r_p = jnp.pad(residual.astype(jnp.float32), ((0, 0), (0, Mp - M)))
        kern = functools.partial(_fused_mm_res_kernel, relu=relu)
        in_specs = [w_spec, a_spec, v_spec, v_spec, o_spec]
        args = (w_p, a_p, s2, c2, r_p)

    # Per-step VMEM footprint is < ~0.5 MiB (double buffered), far below the
    # default scoped VMEM limit on v5e/v6e/v7x, so no vmem_limit_bytes needed.
    out = pl.pallas_call(
        kern,
        out_shape=jax.ShapeDtypeStruct((R, Mp), jnp.float32),
        grid=(Mp // TM,),
        in_specs=in_specs,
        out_specs=o_spec,
        compiler_params=pltpu.CompilerParams(
            dimension_semantics=("parallel",)),
    )(*args)
    return out[:, :M]


# ----------------------------------------------------------------------------
# JAX glue: channels-first im2col (indexing only, no compute)
# ----------------------------------------------------------------------------
def _im2col_T(xp, ks, stride):
    """xp: [C, N, Dp, Hp, Wp] (already padded, channels-first).
    Returns A: [kd*kh*kw*C, N*Do*Ho*Wo]  (rows ordered (kd, kh, kw, cin),
    columns ordered (n, d, h, w)) and the output spatial dims."""
    C, N, Dp, Hp, Wp = xp.shape
    kd, kh, kw = ks
    Do = (Dp - kd) // stride + 1
    Ho = (Hp - kh) // stride + 1
    Wo = (Wp - kw) // stride + 1
    rows = []
    for a in range(kd):
        for b in range(kh):
            for c in range(kw):
                rows.append(
                    xp[:, :, a:a + stride * Do:stride,
                       b:b + stride * Ho:stride,
                       c:c + stride * Wo:stride].reshape(C, -1))
    return jnp.concatenate(rows, axis=0), (N, Do, Ho, Wo)


def conv3d_bn(x_cf, w_oidhw, scale, shift, stride, pad, relu=False):
    """x_cf: [Cin, N, D, H, W]; w: (Cout, Cin, kd, kh, kw) (PyTorch Conv3d)."""
    Cout = w_oidhw.shape[0]
    ks = w_oidhw.shape[2:]
    xb = x_cf.astype(jnp.bfloat16)
    xp = jnp.pad(xb, ((0, 0), (0, 0), (pad, pad), (pad, pad), (pad, pad)))
    A, (N, Do, Ho, Wo) = _im2col_T(xp, ks, stride)
    Wm = jnp.transpose(w_oidhw, (0, 2, 3, 4, 1)).reshape(Cout, -1)
    y = fused_matmul_bn(Wm, A, scale, shift, relu=relu)
    return y.reshape(Cout, N, Do, Ho, Wo)


# ----------------------------------------------------------------------------
# ConvTranspose3d(k=3, stride=2, pad=1, out_pad=1) via sub-pixel decomposition.
# For each output phase (even/odd per dim) only the taps that hit real inputs
# contribute:  even -> tap 1 at input offset 0;  odd -> tap 2 at offset 0 and
# tap 0 at offset 1.  All 8 phases are packed into one dense matmul with
# K = 8*Cin (2x2x2 input window) and R = 8*Cout (phase x channel).
# ----------------------------------------------------------------------------
_PHASE_TAP = {(0, 0): 1, (1, 0): 2, (1, 1): 0}   # (phase, input offset) -> tap


def _subpixel_weight(w_iodhw):
    """Pack ConvTranspose3d weights (Cin, Cout, 3, 3, 3) into [8*Cout, 8*Cin]."""
    Cin, Cout = w_iodhw.shape[:2]
    Wm = jnp.zeros((8 * Cout, 8 * Cin), w_iodhw.dtype)
    for pd in (0, 1):
        for ph in (0, 1):
            for pw in (0, 1):
                r0 = ((pd * 2 + ph) * 2 + pw) * Cout
                for dd in (0, 1):
                    for dh in (0, 1):
                        for dw in (0, 1):
                            keys = ((pd, dd), (ph, dh), (pw, dw))
                            if not all(k in _PHASE_TAP for k in keys):
                                continue
                            td, th, tw = (_PHASE_TAP[k] for k in keys)
                            k0 = ((dd * 2 + dh) * 2 + dw) * Cin
                            blk = jnp.transpose(w_iodhw[:, :, td, th, tw], (1, 0))
                            Wm = Wm.at[r0:r0 + Cout, k0:k0 + Cin].set(blk)
    return Wm


def conv_transpose3d_bn(x_cf, w_iodhw, scale, shift, relu=False,
                        residual_cf=None):
    """x_cf: [Cin, N, D, H, W]; w: (Cin, Cout, 3, 3, 3) (PyTorch ConvTranspose3d).
    Fixed to kernel 3, stride 2, padding 1, output_padding 1 (as in the model)."""
    Cin, Cout = w_iodhw.shape[:2]
    _, N, D, H, W = x_cf.shape
    M = N * D * H * W

    xb = x_cf.astype(jnp.bfloat16)
    xe = jnp.pad(xb, ((0, 0), (0, 0), (0, 1), (0, 1), (0, 1)))   # trailing halo
    rows = []
    for dd in (0, 1):
        for dh in (0, 1):
            for dw in (0, 1):
                rows.append(
                    xe[:, :, dd:dd + D, dh:dh + H, dw:dw + W].reshape(Cin, -1))
    A = jnp.concatenate(rows, axis=0)                 # [8*Cin, M]

    Wm = _subpixel_weight(w_iodhw)                    # [8*Cout, 8*Cin]
    s8 = jnp.tile(scale, 8)
    b8 = jnp.tile(shift, 8)

    res = None
    if residual_cf is not None:
        # pack residual [Cout, N, 2D, 2H, 2W] into the same (phase, cout) x M layout
        r = residual_cf.reshape(Cout, N, D, 2, H, 2, W, 2)
        res = jnp.transpose(r, (3, 5, 7, 0, 1, 2, 4, 6)).reshape(8 * Cout, M)

    y = fused_matmul_bn(Wm, A, s8, b8, residual=res, relu=relu)   # [8*Cout, M]
    y = y.reshape(2, 2, 2, Cout, N, D, H, W)
    y = jnp.transpose(y, (3, 4, 5, 0, 6, 1, 7, 2))
    return y.reshape(Cout, N, 2 * D, 2 * H, 2 * W)


# ----------------------------------------------------------------------------
# hourglass forward (Pallas path) — internal layout is channels-first [C,N,D,H,W]
# ----------------------------------------------------------------------------
def hourglass_forward(x_ncdhw, p):
    x = jnp.transpose(x_ncdhw, (1, 0, 2, 3, 4))                  # -> [C, N, D, H, W]
    inp = conv3d_bn(x, p["w0"], p["s0"], p["b0"], stride=1, pad=0)
    out = conv3d_bn(inp, p["w1"], p["s1"], p["b1"], stride=2, pad=1, relu=True)
    pre = conv3d_bn(out, p["w2"], p["s2"], p["b2"], stride=1, pad=1, relu=True)
    out = conv3d_bn(pre, p["w3"], p["s3"], p["b3"], stride=2, pad=1, relu=True)
    out = conv3d_bn(out, p["w4"], p["s4"], p["b4"], stride=1, pad=1, relu=True)
    post = conv_transpose3d_bn(out, p["w5"], p["s5"], p["b5"], relu=True,
                               residual_cf=pre)
    out = conv_transpose3d_bn(post, p["w6"], p["s6"], p["b6"])
    return jnp.transpose(out, (1, 0, 2, 3, 4))                   # -> NCDHW


# ----------------------------------------------------------------------------
# Pure-JAX (lax) reference with matching numerics:
# operands cast to bf16, f32 accumulation, f32 BN/residual/ReLU epilogue.
# ----------------------------------------------------------------------------
def _ref_conv(x, w_oidhw, scale, shift, stride, pad, relu=False, residual=None):
    w = jnp.transpose(w_oidhw, (2, 3, 4, 1, 0)).astype(jnp.bfloat16)   # DHWIO
    y = lax.conv_general_dilated(
        x.astype(jnp.bfloat16), w, window_strides=(stride,) * 3,
        padding=[(pad, pad)] * 3,
        dimension_numbers=("NDHWC", "DHWIO", "NDHWC"),
        preferred_element_type=jnp.float32,
        precision=lax.Precision.HIGHEST)
    y = y * scale + shift
    if residual is not None:
        y = y + residual
    if relu:
        y = jnp.maximum(y, 0.0)
    return y


def _ref_convT(x, w_iodhw, scale, shift, stride, pad, out_pad,
               relu=False, residual=None):
    k = w_iodhw.shape[2]
    w = jnp.transpose(jnp.flip(w_iodhw, axis=(2, 3, 4)),
                      (2, 3, 4, 0, 1)).astype(jnp.bfloat16)            # DHWIO
    y = lax.conv_general_dilated(
        x.astype(jnp.bfloat16), w, window_strides=(1, 1, 1),
        padding=[(k - 1 - pad, k - 1 - pad + out_pad)] * 3,
        lhs_dilation=(stride,) * 3,
        dimension_numbers=("NDHWC", "DHWIO", "NDHWC"),
        preferred_element_type=jnp.float32,
        precision=lax.Precision.HIGHEST)
    y = y * scale + shift
    if residual is not None:
        y = y + residual
    if relu:
        y = jnp.maximum(y, 0.0)
    return y


def hourglass_ref(x_ncdhw, p):
    x = jnp.transpose(x_ncdhw, (0, 2, 3, 4, 1))                  # -> NDHWC
    inp = _ref_conv(x, p["w0"], p["s0"], p["b0"], 1, 0)
    out = _ref_conv(inp, p["w1"], p["s1"], p["b1"], 2, 1, relu=True)
    pre = _ref_conv(out, p["w2"], p["s2"], p["b2"], 1, 1, relu=True)
    out = _ref_conv(pre, p["w3"], p["s3"], p["b3"], 2, 1, relu=True)
    out = _ref_conv(out, p["w4"], p["s4"], p["b4"], 1, 1, relu=True)
    post = _ref_convT(out, p["w5"], p["s5"], p["b5"], 2, 1, 1, relu=True,
                      residual=pre)
    out = _ref_convT(post, p["w6"], p["s6"], p["b6"], 2, 1, 1)
    return jnp.transpose(out, (0, 4, 1, 2, 3))                   # -> NCDHW


# ----------------------------------------------------------------------------
# Deterministic parameter initialization (synthetic)
# ----------------------------------------------------------------------------
def init_params(inplanes, key):
    C1, C2 = inplanes, inplanes * 2
    keys = iter(jax.random.split(key, 40))

    def conv_w(shape):
        return 0.1 * jax.random.normal(next(keys), shape, jnp.float32)

    def bn_fold(c):
        eps = 1e-5
        gamma = 1.0 + 0.1 * jax.random.normal(next(keys), (c,), jnp.float32)
        beta = 0.1 * jax.random.normal(next(keys), (c,), jnp.float32)
        mean = 0.1 * jax.random.normal(next(keys), (c,), jnp.float32)
        var = 0.5 + jax.random.uniform(next(keys), (c,), jnp.float32)
        scale = gamma / jnp.sqrt(var + eps)
        shift = beta - mean * scale
        return scale, shift

    p = {}
    p["w0"] = conv_w((C1, 3, 1, 1, 1));  p["s0"], p["b0"] = bn_fold(C1)   # conv0
    p["w1"] = conv_w((C2, C1, 3, 3, 3)); p["s1"], p["b1"] = bn_fold(C2)   # conv1
    p["w2"] = conv_w((C2, C2, 3, 3, 3)); p["s2"], p["b2"] = bn_fold(C2)   # conv2
    p["w3"] = conv_w((C2, C2, 3, 3, 3)); p["s3"], p["b3"] = bn_fold(C2)   # conv3
    p["w4"] = conv_w((C2, C2, 3, 3, 3)); p["s4"], p["b4"] = bn_fold(C2)   # conv4
    p["w5"] = conv_w((C2, C2, 3, 3, 3)); p["s5"], p["b5"] = bn_fold(C2)   # conv5 (ConvT: Cin,Cout,...)
    p["w6"] = conv_w((C2, C1, 3, 3, 3)); p["s6"], p["b6"] = bn_fold(C1)   # conv6 (ConvT: Cin,Cout,...)
    return p


if __name__ == "__main__":
    inplanes = 4
    N, D, H, W = 2, 8, 16, 16

    key = jax.random.PRNGKey(0)
    kx, kp = jax.random.split(key)
    x = jax.random.normal(kx, (N, 3, D, H, W), jnp.float32)  # NCDHW like PyTorch
    params = init_params(inplanes, kp)

    out = jax.jit(hourglass_forward)(x, params)
    out = jax.block_until_ready(out)

    assert out.shape == (N, inplanes, D, H, W), out.shape

    ref = hourglass_ref(x, params)
    np.testing.assert_allclose(np.asarray(out), np.asarray(ref),
                               rtol=2e-3, atol=2e-3)

    print("KERNEL_OK")
</pallas_src>

<mosaic_0001>
module attributes {stable_mosaic.version = 11 : i64} {
  func.func @_fused_mm_kernel(%arg0: i32, %arg1: memref<4x16xbf16, #tpu.memory_space<vmem>>, %arg2: memref<16x2048xbf16, #tpu.memory_space<vmem>>, %arg3: memref<4x1xf32, #tpu.memory_space<vmem>>, %arg4: memref<4x1xf32, #tpu.memory_space<vmem>>, %arg5: memref<4x2048xf32, #tpu.memory_space<vmem>>) attributes {dimension_semantics = [#tpu.dimension_semantics<parallel>], iteration_bounds = array<i64: 2>, scalar_prefetch = 0 : i64, scratch_operands = 0 : i64, tpu.core_type = #tpu.core_type<tc>, window_params = [{pipeline_mode = #tpu.pipeline_mode<synchronous>, transform_indices = @transform_0, window_bounds = array<i64: 4, 16>}, {transform_indices = @transform_1, window_bounds = array<i64: 16, 2048>}, {pipeline_mode = #tpu.pipeline_mode<synchronous>, transform_indices = @transform_2, window_bounds = array<i64: 4, 1>}, {pipeline_mode = #tpu.pipeline_mode<synchronous>, transform_indices = @transform_3, window_bounds = array<i64: 4, 1>}, {transform_indices = @transform_4, window_bounds = array<i64: 4, 2048>}]} {
    %c0 = arith.constant 0 : index
    %c0_0 = arith.constant 0 : index
    %0 = vector.load %arg1[%c0, %c0_0] : memref<4x16xbf16, #tpu.memory_space<vmem>>, vector<4x16xbf16>
    %c0_1 = arith.constant 0 : index
    %c0_2 = arith.constant 0 : index
    %1 = vector.load %arg2[%c0_1, %c0_2] : memref<16x2048xbf16, #tpu.memory_space<vmem>>, vector<16x2048xbf16>
    %cst = arith.constant dense<0.000000e+00> : vector<4x2048xf32>
    %2 = tpu.matmul %0, %1, %cst {dimension_numbers = #tpu.dot_dimension_numbers<[1], [0], [0], [1], [0, 0, 1, 1], [], []>} : vector<4x16xbf16>, vector<16x2048xbf16>, vector<4x2048xf32> -> vector<4x2048xf32>
    %c0_3 = arith.constant 0 : index
    %c0_4 = arith.constant 0 : index
    %3 = vector.load %arg3[%c0_3, %c0_4] : memref<4x1xf32, #tpu.memory_space<vmem>>, vector<4x1xf32>
    %4 = vector.broadcast %3 : vector<4x1xf32> to vector<4x2048xf32>
    %5 = arith.mulf %2, %4 : vector<4x2048xf32>
    %c0_5 = arith.constant 0 : index
    %c0_6 = arith.constant 0 : index
    %6 = vector.load %arg4[%c0_5, %c0_6] : memref<4x1xf32, #tpu.memory_space<vmem>>, vector<4x1xf32>
    %7 = vector.broadcast %6 : vector<4x1xf32> to vector<4x2048xf32>
    %8 = arith.addf %5, %7 : vector<4x2048xf32>
    %c0_7 = arith.constant 0 : index
    %c0_8 = arith.constant 0 : index
    %9 = vector.load %arg5[%c0_7, %c0_8] : memref<4x2048xf32, #tpu.memory_space<vmem>>, vector<4x2048xf32>
    tpu.vector_store %arg5[%c0_7, %c0_8], %8 {strides = array<i32>} : memref<4x2048xf32, #tpu.memory_space<vmem>>, vector<4x2048xf32>,
    return
  }
  func.func @transform_0(%arg0: i32) -> (i32, i32) {
    %c0_i32 = arith.constant 0 : i32
    %c0_i32_0 = arith.constant 0 : i32
    %c0_i32_1 = arith.constant 0 : i32
    return %c0_i32, %c0_i32_0 : i32, i32
  }
  func.func @transform_1(%arg0: i32) -> (i32, i32) {
    %c0_i32 = arith.constant 0 : i32
    %c0_i32_0 = arith.constant 0 : i32
    return %c0_i32, %arg0 : i32, i32
  }
  func.func @transform_2(%arg0: i32) -> (i32, i32) {
    %c0_i32 = arith.constant 0 : i32
    %c0_i32_0 = arith.constant 0 : i32
    %c0_i32_1 = arith.constant 0 : i32
    return %c0_i32, %c0_i32_0 : i32, i32
  }
  func.func @transform_3(%arg0: i32) -> (i32, i32) {
    %c0_i32 = arith.constant 0 : i32
    %c0_i32_0 = arith.constant 0 : i32
    %c0_i32_1 = arith.constant 0 : i32
    return %c0_i32, %c0_i32_0 : i32, i32
  }
  func.func @transform_4(%arg0: i32) -> (i32, i32) {
    %c0_i32 = arith.constant 0 : i32
    %c0_i32_0 = arith.constant 0 : i32
    return %c0_i32, %arg0 : i32, i32
  }
}

module attributes {stable_mosaic.version = 11 : i64} {
  func.func @_fused_mm_kernel(%arg0: i32, %arg1: memref<8x112xbf16, #tpu.memory_space<vmem>>, %arg2: memref<112x256xbf16, #tpu.memory_space<vmem>>, %arg3: memref<8x1xf32, #tpu.memory_space<vmem>>, %arg4: memref<8x1xf32, #tpu.memory_space<vmem>>, %arg5: memref<8x256xf32, #tpu.memory_space<vmem>>) attributes {dimension_semantics = [#tpu.dimension_semantics<parallel>], iteration_bounds = array<i64: 2>, scalar_prefetch = 0 : i64, scratch_operands = 0 : i64, tpu.core_type = #tpu.core_type<tc>, window_params = [{pipeline_mode = #tpu.pipeline_mode<synchronous>, transform_indices = @transform_0, window_bounds = array<i64: 8, 112>}, {transform_indices = @transform_1, window_bounds = array<i64: 112, 256>}, {pipeline_mode = #tpu.pipeline_mode<synchronous>, transform_indices = @transform_2, window_bounds = array<i64: 8, 1>}, {pipeline_mode = #tpu.pipeline_mode<synchronous>, transform_indices = @transform_3, window_bounds = array<i64: 8, 1>}, {transform_indices = @transform_4, window_bounds = array<i64: 8, 256>}]} {
    %c0 = arith.constant 0 : index
    %c0_0 = arith.constant 0 : index
    %0 = vector.load %arg1[%c0, %c0_0] : memref<8x112xbf16, #tpu.memory_space<vmem>>, vector<8x112xbf16>
    %c0_1 = arith.constant 0 : index
    %c0_2 = arith.constant 0 : index
    %1 = vector.load %arg2[%c0_1, %c0_2] : memref<112x256xbf16, #tpu.memory_space<vmem>>, vector<112x256xbf16>
    %cst = arith.constant dense<0.000000e+00> : vector<8x256xf32>
    %2 = tpu.matmul %0, %1, %cst {dimension_numbers = #tpu.dot_dimension_numbers<[1], [0], [0], [1], [0, 0, 1, 1], [], []>} : vector<8x112xbf16>, vector<112x256xbf16>, vector<8x256xf32> -> vector<8x256xf32>
    %c0_3 = arith.constant 0 : index
    %c0_4 = arith.constant 0 : index
    %3 = vector.load %arg3[%c0_3, %c0_4] : memref<8x1xf32, #tpu.memory_space<vmem>>, vector<8x1xf32>
    %4 = vector.broadcast %3 : vector<8x1xf32> to vector<8x256xf32>
    %5 = arith.mulf %2, %4 : vector<8x256xf32>
    %c0_5 = arith.constant 0 : index
    %c0_6 = arith.constant 0 : index
    %6 = vector.load %arg4[%c0_5, %c0_6] : memref<8x1xf32, #tpu.memory_space<vmem>>, vector<8x1xf32>
    %7 = vector.broadcast %6 : vector<8x1xf32> to vector<8x256xf32>
    %8 = arith.addf %5, %7 : vector<8x256xf32>
    %cst_7 = arith.constant 0.000000e+00 : f32
    %9 = vector.broadcast %cst_7 : f32 to vector<8x256xf32>
    %10 = arith.maximumf %8, %9 : vector<8x256xf32>
    %c0_8 = arith.constant 0 : index
    %c0_9 = arith.constant 0 : index
    %11 = vector.load %arg5[%c0_8, %c0_9] : memref<8x256xf32, #tpu.memory_space<vmem>>, vector<8x256xf32>
    tpu.vector_store %arg5[%c0_8, %c0_9], %10 {strides = array<i32>} : memref<8x256xf32, #tpu.memory_space<vmem>>, vector<8x256xf32>,
    return
  }
  func.func @transform_0(%arg0: i32) -> (i32, i32) {
    %c0_i32 = arith.constant 0 : i32
    %c0_i32_0 = arith.constant 0 : i32
    %c0_i32_1 = arith.constant 0 : i32
    return %c0_i32, %c0_i32_0 : i32, i32
  }
  func.func @transform_1(%arg0: i32) -> (i32, i32) {
    %c0_i32 = arith.constant 0 : i32
    %c0_i32_0 = arith.constant 0 : i32
    return %c0_i32, %arg0 : i32, i32
  }
  func.func @transform_2(%arg0: i32) -> (i32, i32) {
    %c0_i32 = arith.constant 0 : i32
    %c0_i32_0 = arith.constant 0 : i32
    %c0_i32_1 = arith.constant 0 : i32
    return %c0_i32, %c0_i32_0 : i32, i32
  }
  func.func @transform_3(%arg0: i32) -> (i32, i32) {
    %c0_i32 = arith.constant 0 : i32
    %c0_i32_0 = arith.constant 0 : i32
    %c0_i32_1 = arith.constant 0 : i32
    return %c0_i32, %c0_i32_0 : i32, i32
  }
  func.func @transform_4(%arg0: i32) -> (i32, i32) {
    %c0_i32 = arith.constant 0 : i32
    %c0_i32_0 = arith.constant 0 : i32
    return %c0_i32, %arg0 : i32, i32
  }
}

module attributes {stable_mosaic.version = 11 : i64} {
  func.func @_fused_mm_kernel(%arg0: i32, %arg1: memref<8x224xbf16, #tpu.memory_space<vmem>>, %arg2: memref<224x256xbf16, #tpu.memory_space<vmem>>, %arg3: memref<8x1xf32, #tpu.memory_space<vmem>>, %arg4: memref<8x1xf32, #tpu.memory_space<vmem>>, %arg5: memref<8x256xf32, #tpu.memory_space<vmem>>) attributes {dimension_semantics = [#tpu.dimension_semantics<parallel>], iteration_bounds = array<i64: 2>, scalar_prefetch = 0 : i64, scratch_operands = 0 : i64, tpu.core_type = #tpu.core_type<tc>, window_params = [{pipeline_mode = #tpu.pipeline_mode<synchronous>, transform_indices = @transform_0, window_bounds = array<i64: 8, 224>}, {transform_indices = @transform_1, window_bounds = array<i64: 224, 256>}, {pipeline_mode = #tpu.pipeline_mode<synchronous>, transform_indices = @transform_2, window_bounds = array<i64: 8, 1>}, {pipeline_mode = #tpu.pipeline_mode<synchronous>, transform_indices = @transform_3, window_bounds = array<i64: 8, 1>}, {transform_indices = @transform_4, window_bounds = array<i64: 8, 256>}]} {
    %c0 = arith.constant 0 : index
    %c0_0 = arith.constant 0 : index
    %0 = vector.load %arg1[%c0, %c0_0] : memref<8x224xbf16, #tpu.memory_space<vmem>>, vector<8x224xbf16>
    %c0_1 = arith.constant 0 : index
    %c0_2 = arith.constant 0 : index
    %1 = vector.load %arg2[%c0_1, %c0_2] : memref<224x256xbf16, #tpu.memory_space<vmem>>, vector<224x256xbf16>
    %cst = arith.constant dense<0.000000e+00> : vector<8x256xf32>
    %2 = tpu.matmul %0, %1, %cst {dimension_numbers = #tpu.dot_dimension_numbers<[1], [0], [0], [1], [0, 0, 1, 1], [], []>} : vector<8x224xbf16>, vector<224x256xbf16>, vector<8x256xf32> -> vector<8x256xf32>
    %c0_3 = arith.constant 0 : index
    %c0_4 = arith.constant 0 : index
    %3 = vector.load %arg3[%c0_3, %c0_4] : memref<8x1xf32, #tpu.memory_space<vmem>>, vector<8x1xf32>
    %4 = vector.broadcast %3 : vector<8x1xf32> to vector<8x256xf32>
    %5 = arith.mulf %2, %4 : vector<8x256xf32>
    %c0_5 = arith.constant 0 : index
    %c0_6 = arith.constant 0 : index
    %6 = vector.load %arg4[%c0_5, %c0_6] : memref<8x1xf32, #tpu.memory_space<vmem>>, vector<8x1xf32>
    %7 = vector.broadcast %6 : vector<8x1xf32> to vector<8x256xf32>
    %8 = arith.addf %5, %7 : vector<8x256xf32>
    %cst_7 = arith.constant 0.000000e+00 : f32
    %9 = vector.broadcast %cst_7 : f32 to vector<8x256xf32>
    %10 = arith.maximumf %8, %9 : vector<8x256xf32>
    %c0_8 = arith.constant 0 : index
    %c0_9 = arith.constant 0 : index
    %11 = vector.load %arg5[%c0_8, %c0_9] : memref<8x256xf32, #tpu.memory_space<vmem>>, vector<8x256xf32>
    tpu.vector_store %arg5[%c0_8, %c0_9], %10 {strides = array<i32>} : memref<8x256xf32, #tpu.memory_space<vmem>>, vector<8x256xf32>,
    return
  }
  func.func @transform_0(%arg0: i32) -> (i32, i32) {
    %c0_i32 = arith.constant 0 : i32
    %c0_i32_0 = arith.constant 0 : i32
    %c0_i32_1 = arith.constant 0 : i32
    return %c0_i32, %c0_i32_0 : i32, i32
  }
  func.func @transform_1(%arg0: i32) -> (i32, i32) {
    %c0_i32 = arith.constant 0 : i32
    %c0_i32_0 = arith.constant 0 : i32
    return %c0_i32, %arg0 : i32, i32
  }
  func.func @transform_2(%arg0: i32) -> (i32, i32) {
    %c0_i32 = arith.constant 0 : i32
    %c0_i32_0 = arith.constant 0 : i32
    %c0_i32_1 = arith.constant 0 : i32
    return %c0_i32, %c0_i32_0 : i32, i32
  }
  func.func @transform_3(%arg0: i32) -> (i32, i32) {
    %c0_i32 = arith.constant 0 : i32
    %c0_i32_0 = arith.constant 0 : i32
    %c0_i32_1 = arith.constant 0 : i32
    return %c0_i32, %c0_i32_0 : i32, i32
  }
  func.func @transform_4(%arg0: i32) -> (i32, i32) {
    %c0_i32 = arith.constant 0 : i32
    %c0_i32_0 = arith.constant 0 : i32
    return %c0_i32, %arg0 : i32, i32
  }
}

module attributes {stable_mosaic.version = 11 : i64} {
  func.func @_fused_mm_kernel(%arg0: i32, %arg1: memref<8x224xbf16, #tpu.memory_space<vmem>>, %arg2: memref<224x128xbf16, #tpu.memory_space<vmem>>, %arg3: memref<8x1xf32, #tpu.memory_space<vmem>>, %arg4: memref<8x1xf32, #tpu.memory_space<vmem>>, %arg5: memref<8x128xf32, #tpu.memory_space<vmem>>) attributes {dimension_semantics = [#tpu.dimension_semantics<parallel>], iteration_bounds = array<i64: 1>, scalar_prefetch = 0 : i64, scratch_operands = 0 : i64, tpu.core_type = #tpu.core_type<tc>, window_params = [{pipeline_mode = #tpu.pipeline_mode<synchronous>, transform_indices = @transform_0, window_bounds = array<i64: 8, 224>}, {transform_indices = @transform_1, window_bounds = array<i64: 224, 128>}, {pipeline_mode = #tpu.pipeline_mode<synchronous>, transform_indices = @transform_2, window_bounds = array<i64: 8, 1>}, {pipeline_mode = #tpu.pipeline_mode<synchronous>, transform_indices = @transform_3, window_bounds = array<i64: 8, 1>}, {transform_indices = @transform_4, window_bounds = array<i64: 8, 128>}]} {
    %c0 = arith.constant 0 : index
    %c0_0 = arith.constant 0 : index
    %0 = vector.load %arg1[%c0, %c0_0] : memref<8x224xbf16, #tpu.memory_space<vmem>>, vector<8x224xbf16>
    %c0_1 = arith.constant 0 : index
    %c0_2 = arith.constant 0 : index
    %1 = vector.load %arg2[%c0_1, %c0_2] : memref<224x128xbf16, #tpu.memory_space<vmem>>, vector<224x128xbf16>
    %cst = arith.constant dense<0.000000e+00> : vector<8x128xf32>
    %2 = tpu.matmul %0, %1, %cst {dimension_numbers = #tpu.dot_dimension_numbers<[1], [0], [0], [1], [0, 0, 1, 1], [], []>} : vector<8x224xbf16>, vector<224x128xbf16>, vector<8x128xf32> -> vector<8x128xf32>
    %c0_3 = arith.constant 0 : index
    %c0_4 = arith.constant 0 : index
    %3 = vector.load %arg3[%c0_3, %c0_4] : memref<8x1xf32, #tpu.memory_space<vmem>>, vector<8x1xf32>
    %4 = vector.broadcast %3 : vector<8x1xf32> to vector<8x128xf32>
    %5 = arith.mulf %2, %4 : vector<8x128xf32>
    %c0_5 = arith.constant 0 : index
    %c0_6 = arith.constant 0 : index
    %6 = vector.load %arg4[%c0_5, %c0_6] : memref<8x1xf32, #tpu.memory_space<vmem>>, vector<8x1xf32>
    %7 = vector.broadcast %6 : vector<8x1xf32> to vector<8x128xf32>
    %8 = arith.addf %5, %7 : vector<8x128xf32>
    %cst_7 = arith.constant 0.000000e+00 : f32
    %9 = vector.broadcast %cst_7 : f32 to vector<8x128xf32>
    %10 = arith.maximumf %8, %9 : vector<8x128xf32>
    %c0_8 = arith.constant 0 : index
    %c0_9 = arith.constant 0 : index
    %11 = vector.load %arg5[%c0_8, %c0_9] : memref<8x128xf32, #tpu.memory_space<vmem>>, vector<8x128xf32>
    tpu.vector_store %arg5[%c0_8, %c0_9], %10 {strides = array<i32>} : memref<8x128xf32, #tpu.memory_space<vmem>>, vector<8x128xf32>,
    return
  }
  func.func @transform_0(%arg0: i32) -> (i32, i32) {
    %c0_i32 = arith.constant 0 : i32
    %c0_i32_0 = arith.constant 0 : i32
    %c0_i32_1 = arith.constant 0 : i32
    return %c0_i32, %c0_i32_0 : i32, i32
  }
  func.func @transform_1(%arg0: i32) -> (i32, i32) {
    %c0_i32 = arith.constant 0 : i32
    %c0_i32_0 = arith.constant 0 : i32
    return %c0_i32, %arg0 : i32, i32
  }
  func.func @transform_2(%arg0: i32) -> (i32, i32) {
    %c0_i32 = arith.constant 0 : i32
    %c0_i32_0 = arith.constant 0 : i32
    %c0_i32_1 = arith.constant 0 : i32
    return %c0_i32, %c0_i32_0 : i32, i32
  }
  func.func @transform_3(%arg0: i32) -> (i32, i32) {
    %c0_i32 = arith.constant 0 : i32
    %c0_i32_0 = arith.constant 0 : i32
    %c0_i32_1 = arith.constant 0 : i32
    return %c0_i32, %c0_i32_0 : i32, i32
  }
  func.func @transform_4(%arg0: i32) -> (i32, i32) {
    %c0_i32 = arith.constant 0 : i32
    %c0_i32_0 = arith.constant 0 : i32
    return %c0_i32, %arg0 : i32, i32
  }
}

module attributes {stable_mosaic.version = 11 : i64} {
  func.func @_fused_mm_res_kernel(%arg0: i32, %arg1: memref<64x64xbf16, #tpu.memory_space<vmem>>, %arg2: memref<64x128xbf16, #tpu.memory_space<vmem>>, %arg3: memref<64x1xf32, #tpu.memory_space<vmem>>, %arg4: memref<64x1xf32, #tpu.memory_space<vmem>>, %arg5: memref<64x128xf32, #tpu.memory_space<vmem>>, %arg6: memref<64x128xf32, #tpu.memory_space<vmem>>) attributes {dimension_semantics = [#tpu.dimension_semantics<parallel>], iteration_bounds = array<i64: 1>, scalar_prefetch = 0 : i64, scratch_operands = 0 : i64, tpu.core_type = #tpu.core_type<tc>, window_params = [{pipeline_mode = #tpu.pipeline_mode<synchronous>, transform_indices = @transform_0, window_bounds = array<i64: 64, 64>}, {transform_indices = @transform_1, window_bounds = array<i64: 64, 128>}, {pipeline_mode = #tpu.pipeline_mode<synchronous>, transform_indices = @transform_2, window_bounds = array<i64: 64, 1>}, {pipeline_mode = #tpu.pipeline_mode<synchronous>, transform_indices = @transform_3, window_bounds = array<i64: 64, 1>}, {transform_indices = @transform_4, window_bounds = array<i64: 64, 128>}, {transform_indices = @transform_5, window_bounds = array<i64: 64, 128>}]} {
    %c0 = arith.constant 0 : index
    %c0_0 = arith.constant 0 : index
    %0 = vector.load %arg1[%c0, %c0_0] : memref<64x64xbf16, #tpu.memory_space<vmem>>, vector<64x64xbf16>
    %c0_1 = arith.constant 0 : index
    %c0_2 = arith.constant 0 : index
    %1 = vector.load %arg2[%c0_1, %c0_2] : memref<64x128xbf16, #tpu.memory_space<vmem>>, vector<64x128xbf16>
    %cst = arith.constant dense<0.000000e+00> : vector<64x128xf32>
    %2 = tpu.matmul %0, %1, %cst {dimension_numbers = #tpu.dot_dimension_numbers<[1], [0], [0], [1], [0, 0, 1, 1], [], []>} : vector<64x64xbf16>, vector<64x128xbf16>, vector<64x128xf32> -> vector<64x128xf32>
    %c0_3 = arith.constant 0 : index
    %c0_4 = arith.constant 0 : index
    %3 = vector.load %arg3[%c0_3, %c0_4] : memref<64x1xf32, #tpu.memory_space<vmem>>, vector<64x1xf32>
    %4 = vector.broadcast %3 : vector<64x1xf32> to vector<64x128xf32>
    %5 = arith.mulf %2, %4 : vector<64x128xf32>
    %c0_5 = arith.constant 0 : index
    %c0_6 = arith.constant 0 : index
    %6 = vector.load %arg4[%c0_5, %c0_6] : memref<64x1xf32, #tpu.memory_space<vmem>>, vector<64x1xf32>
    %7 = vector.broadcast %6 : vector<64x1xf32> to vector<64x128xf32>
    %8 = arith.addf %5, %7 : vector<64x128xf32>
    %c0_7 = arith.constant 0 : index
    %c0_8 = arith.constant 0 : index
    %9 = vector.load %arg5[%c0_7, %c0_8] : memref<64x128xf32, #tpu.memory_space<vmem>>, vector<64x128xf32>
    %10 = arith.addf %8, %9 : vector<64x128xf32>
    %cst_9 = arith.constant 0.000000e+00 : f32
    %11 = vector.broadcast %cst_9 : f32 to vector<64x128xf32>
    %12 = arith.maximumf %10, %11 : vector<64x128xf32>
    %c0_10 = arith.constant 0 : index
    %c0_11 = arith.constant 0 : index
    %13 = vector.load %arg6[%c0_10, %c0_11] : memref<64x128xf32, #tpu.memory_space<vmem>>, vector<64x128xf32>
    tpu.vector_store %arg6[%c0_10, %c0_11], %12 {strides = array<i32>} : memref<64x128xf32, #tpu.memory_space<vmem>>, vector<64x128xf32>,
    return
  }
  func.func @transform_0(%arg0: i32) -> (i32, i32) {
    %c0_i32 = arith.constant 0 : i32
    %c0_i32_0 = arith.constant 0 : i32
    %c0_i32_1 = arith.constant 0 : i32
    return %c0_i32, %c0_i32_0 : i32, i32
  }
  func.func @transform_1(%arg0: i32) -> (i32, i32) {
    %c0_i32 = arith.constant 0 : i32
    %c0_i32_0 = arith.constant 0 : i32
    return %c0_i32, %arg0 : i32, i32
  }
  func.func @transform_2(%arg0: i32) -> (i32, i32) {
    %c0_i32 = arith.constant 0 : i32
    %c0_i32_0 = arith.constant 0 : i32
    %c0_i32_1 = arith.constant 0 : i32
    return %c0_i32, %c0_i32_0 : i32, i32
  }
  func.func @transform_3(%arg0: i32) -> (i32, i32) {
    %c0_i32 = arith.constant 0 : i32
    %c0_i32_0 = arith.constant 0 : i32
    %c0_i32_1 = arith.constant 0 : i32
    return %c0_i32, %c0_i32_0 : i32, i32
  }
  func.func @transform_4(%arg0: i32) -> (i32, i32) {
    %c0_i32 = arith.constant 0 : i32
    %c0_i32_0 = arith.constant 0 : i32
    return %c0_i32, %arg0 : i32, i32
  }
  func.func @transform_5(%arg0: i32) -> (i32, i32) {
    %c0_i32 = arith.constant 0 : i32
    %c0_i32_0 = arith.constant 0 : i32
    return %c0_i32, %arg0 : i32, i32
  }
}

module attributes {stable_mosaic.version = 11 : i64} {
  func.func @_fused_mm_kernel(%arg0: i32, %arg1: memref<32x64xbf16, #tpu.memory_space<vmem>>, %arg2: memref<64x256xbf16, #tpu.memory_space<vmem>>, %arg3: memref<32x1xf32, #tpu.memory_space<vmem>>, %arg4: memref<32x1xf32, #tpu.memory_space<vmem>>, %arg5: memref<32x256xf32, #tpu.memory_space<vmem>>) attributes {dimension_semantics = [#tpu.dimension_semantics<parallel>], iteration_bounds = array<i64: 2>, scalar_prefetch = 0 : i64, scratch_operands = 0 : i64, tpu.core_type = #tpu.core_type<tc>, window_params = [{pipeline_mode = #tpu.pipeline_mode<synchronous>, transform_indices = @transform_0, window_bounds = array<i64: 32, 64>}, {transform_indices = @transform_1, window_bounds = array<i64: 64, 256>}, {pipeline_mode = #tpu.pipeline_mode<synchronous>, transform_indices = @transform_2, window_bounds = array<i64: 32, 1>}, {pipeline_mode = #tpu.pipeline_mode<synchronous>, transform_indices = @transform_3, window_bounds = array<i64: 32, 1>}, {transform_indices = @transform_4, window_bounds = array<i64: 32, 256>}]} {
    %c0 = arith.constant 0 : index
    %c0_0 = arith.constant 0 : index
    %0 = vector.load %arg1[%c0, %c0_0] : memref<32x64xbf16, #tpu.memory_space<vmem>>, vector<32x64xbf16>
    %c0_1 = arith.constant 0 : index
    %c0_2 = arith.constant 0 : index
    %1 = vector.load %arg2[%c0_1, %c0_2] : memref<64x256xbf16, #tpu.memory_space<vmem>>, vector<64x256xbf16>
    %cst = arith.constant dense<0.000000e+00> : vector<32x256xf32>
    %2 = tpu.matmul %0, %1, %cst {dimension_numbers = #tpu.dot_dimension_numbers<[1], [0], [0], [1], [0, 0, 1, 1], [], []>} : vector<32x64xbf16>, vector<64x256xbf16>, vector<32x256xf32> -> vector<32x256xf32>
    %c0_3 = arith.constant 0 : index
    %c0_4 = arith.constant 0 : index
    %3 = vector.load %arg3[%c0_3, %c0_4] : memref<32x1xf32, #tpu.memory_space<vmem>>, vector<32x1xf32>
    %4 = vector.broadcast %3 : vector<32x1xf32> to vector<32x256xf32>
    %5 = arith.mulf %2, %4 : vector<32x256xf32>
    %c0_5 = arith.constant 0 : index
    %c0_6 = arith.constant 0 : index
    %6 = vector.load %arg4[%c0_5, %c0_6] : memref<32x1xf32, #tpu.memory_space<vmem>>, vector<32x1xf32>
    %7 = vector.broadcast %6 : vector<32x1xf32> to vector<32x256xf32>
    %8 = arith.addf %5, %7 : vector<32x256xf32>
    %c0_7 = arith.constant 0 : index
    %c0_8 = arith.constant 0 : index
    %9 = vector.load %arg5[%c0_7, %c0_8] : memref<32x256xf32, #tpu.memory_space<vmem>>, vector<32x256xf32>
    tpu.vector_store %arg5[%c0_7, %c0_8], %8 {strides = array<i32>} : memref<32x256xf32, #tpu.memory_space<vmem>>, vector<32x256xf32>,
    return
  }
  func.func @transform_0(%arg0: i32) -> (i32, i32) {
    %c0_i32 = arith.constant 0 : i32
    %c0_i32_0 = arith.constant 0 : i32
    %c0_i32_1 = arith.constant 0 : i32
    return %c0_i32, %c0_i32_0 : i32, i32
  }
  func.func @transform_1(%arg0: i32) -> (i32, i32) {
    %c0_i32 = arith.constant 0 : i32
    %c0_i32_0 = arith.constant 0 : i32
    return %c0_i32, %arg0 : i32, i32
  }
  func.func @transform_2(%arg0: i32) -> (i32, i32) {
    %c0_i32 = arith.constant 0 : i32
    %c0_i32_0 = arith.constant 0 : i32
    %c0_i32_1 = arith.constant 0 : i32
    return %c0_i32, %c0_i32_0 : i32, i32
  }
  func.func @transform_3(%arg0: i32) -> (i32, i32) {
    %c0_i32 = arith.constant 0 : i32
    %c0_i32_0 = arith.constant 0 : i32
    %c0_i32_1 = arith.constant 0 : i32
    return %c0_i32, %c0_i32_0 : i32, i32
  }
  func.func @transform_4(%arg0: i32) -> (i32, i32) {
    %c0_i32 = arith.constant 0 : i32
    %c0_i32_0 = arith.constant 0 : i32
    return %c0_i32, %arg0 : i32, i32
  }
}

</mosaic_0001>

<llo_original>
// kernel: tile.27
$region0: #{tile.27}
  #allocation2 [shape = 's32[1]{0}', space=sflag, size = 0x4, scoped, tag = 'scoped memory for tile.27']
  %s0 = inlined_call_operand.hbm [shape: f32[8], index: 0, kind: input, shape index: {}]
  %s1 = inlined_call_operand.vmem [shape: f32[8,8], index: 1, kind: output, shape index: {}]
  $region1: #{tile.27} parent=0
    #allocation0 [shape = 'u8[512]{0}', space=vmem, size = 0x400, scoped, tag = 'operand span for operand 0']
    #allocation1 [shape = 's32[1]{0}', space=sflag, size = 0x4, scoped, tag = 'scoped memory for tile.27']
    %2 = vsyncpa [#allocation1], 0
    // Predicated region
    $region2: #{tile.27} parent=1 // pred_check
      _
    $region3: #{tile.27} parent=1 // pred_check_branch
      %4 = sbr.rel (0) target = $region5
    $region4: #{tile.27} parent=1 // pred_region
      %6 = vsyncadd [#allocation1], 0
      %s8 = sshll.u32 %s0, 4
      %s9 = int_to_ptr.hbm [resolvable:$true] %s8
      %s10 = sshll.u32 [#allocation0], 4
      %s11 = int_to_ptr.vmem [resolvable:$true] %s10
      %13 = dma.hbm_to_vmem [thread:$0]  %s9, 16, %s11, [#allocation1]
    $region5: #{tile.27} parent=1 // pred_fallthru
      _
    // Predicated region
    $region6: #{tile.27} parent=1 // pred_check
      _
    $region7: #{tile.27} parent=1 // pred_check_branch
      %15 = sbr.rel (0) target = $region9
    $region8: #{tile.27} parent=1 // pred_region
      %17 = dma.done [#allocation1], 16
    $region9: #{tile.27} parent=1 // pred_fallthru
      _
    %v18 = vld [vmem:[#allocation0] ss:$0 sm:$0xff]
    %19 = vst [vmem:[%s1] sm:$0xff] %v18
    %20 = vsyncpa [#allocation1], 1

// kernel: tile.37
$region0: #{tile.37}
  #allocation2 [shape = 's32[1]{0}', space=sflag, size = 0x4, scoped, tag = 'scoped memory for tile.37']
  %s0 = inlined_call_operand.hbm [shape: f32[4], index: 0, kind: input, shape index: {}]
  %s1 = inlined_call_operand.vmem [shape: f32[8,4], index: 1, kind: output, shape index: {}]
  $region1: #{tile.37} parent=0
    #allocation0 [shape = 'u8[512]{0}', space=vmem, size = 0x400, scoped, tag = 'operand span for operand 0']
    #allocation1 [shape = 's32[1]{0}', space=sflag, size = 0x4, scoped, tag = 'scoped memory for tile.37']
    %2 = vsyncpa [#allocation1], 0
    // Predicated region
    $region2: #{tile.37} parent=1 // pred_check
      _
    $region3: #{tile.37} parent=1 // pred_check_branch
      %4 = sbr.rel (0) target = $region5
    $region4: #{tile.37} parent=1 // pred_region
      %6 = vsyncadd [#allocation1], 0
      %s8 = sshll.u32 %s0, 4
      %s9 = int_to_ptr.hbm [resolvable:$true] %s8
      %s10 = sshll.u32 [#allocation0], 4
      %s11 = int_to_ptr.vmem [resolvable:$true] %s10
      %13 = dma.hbm_to_vmem [thread:$0]  %s9, 16, %s11, [#allocation1]
    $region5: #{tile.37} parent=1 // pred_fallthru
      _
    // Predicated region
    $region6: #{tile.37} parent=1 // pred_check
      _
    $region7: #{tile.37} parent=1 // pred_check_branch
      %15 = sbr.rel (0) target = $region9
    $region8: #{tile.37} parent=1 // pred_region
      %17 = dma.done [#allocation1], 16
    $region9: #{tile.37} parent=1 // pred_fallthru
      _
    %v18 = vld [vmem:[#allocation0] ss:$0 sm:$0xff]
    %19 = vst [vmem:[%s1] sm:$0xff] %v18
    %20 = vsyncpa [#allocation1], 1

// kernel: tile.2
$region0: #{tile.2}
  %s0 = inlined_call_operand.vmem [shape: f32[8,4], index: 0, kind: input, shape index: {}]
  %s1 = inlined_call_operand.vmem [shape: f32[32,1], index: 1, kind: output, shape index: {}]
  %v2 = vld [vmem:[%s0] sm:$0xff]
  %vm3 = vcmask 7168
  %4 = vst.msk [vmem:[%s1] ss:$4 sm:$0xff] %vm3, %v2
  %v5 = vld [vmem:[%s0] sm:$0xff]
  %6 = vrot.lane.b32.xlu0 %v5, 127
  %v7 = vpop.permute.xlu0 %6
  %vm8 = vcmask 7168
  %s9 = scalar_lea.vmem %s1, 1
  %10 = vst.msk [vmem:[%s9] ss:$4 sm:$0xff] %vm8, %v7
  %v11 = vld [vmem:[%s0] sm:$0xff]
  %12 = vrot.lane.b32.xlu0 %v11, 126
  %v13 = vpop.permute.xlu0 %12
  %vm14 = vcmask 7168
  %s15 = scalar_lea.vmem %s1, 2
  %16 = vst.msk [vmem:[%s15] ss:$4 sm:$0xff] %vm14, %v13
  %v17 = vld [vmem:[%s0] sm:$0xff]
  %18 = vrot.lane.b32.xlu0 %v17, 125
  %v19 = vpop.permute.xlu0 %18
  %vm20 = vcmask 7168
  %s21 = scalar_lea.vmem %s1, 3
  %22 = vst.msk [vmem:[%s21] ss:$4 sm:$0xff] %vm20, %v19

// kernel: tile.0
$region0: #{tile.0}
  %s0 = inlined_call_operand.vmem [shape: f32[8,8], index: 0, kind: input, shape index: {}]
  %s1 = inlined_call_operand.vmem [shape: f32[64,1], index: 1, kind: output, shape index: {}]
  %v2 = vld [vmem:[%s0] sm:$0xff]
  %vm3 = vcmask 7168
  %4 = vst.msk [vmem:[%s1] ss:$8 sm:$0xf] %vm3, %v2
  %5 = vst.msk [vmem:[%s1] ss:$8 sm:$0xf0] %vm3, %v2
  %v6 = vld [vmem:[%s0] sm:$0xff]
  %7 = vrot.lane.b32.xlu0 %v6, 127
  %v8 = vpop.permute.xlu0 %7
  %vm9 = vcmask 7168
  %s10 = scalar_lea.vmem %s1, 1
  %11 = vst.msk [vmem:[%s10] ss:$8 sm:$0xf] %vm9, %v8
  %s12 = scalar_lea.vmem %s1, 1
  %13 = vst.msk [vmem:[%s12] ss:$8 sm:$0xf0] %vm9, %v8
  %v14 = vld [vmem:[%s0] sm:$0xff]
  %15 = vrot.lane.b32.xlu0 %v14, 126
  %v16 = vpop.permute.xlu0 %15
  %vm17 = vcmask 7168
  %s18 = scalar_lea.vmem %s1, 2
  %19 = vst.msk [vmem:[%s18] ss:$8 sm:$0xf] %vm17, %v16
  %s20 = scalar_lea.vmem %s1, 2
  %21 = vst.msk [vmem:[%s20] ss:$8 sm:$0xf0] %vm17, %v16
  %v22 = vld [vmem:[%s0] sm:$0xff]
  %23 = vrot.lane.b32.xlu0 %v22, 125
  %v24 = vpop.permute.xlu0 %23
  %vm25 = vcmask 7168
  %s26 = scalar_lea.vmem %s1, 3
  %27 = vst.msk [vmem:[%s26] ss:$8 sm:$0xf] %vm25, %v24
  %s28 = scalar_lea.vmem %s1, 3
  %29 = vst.msk [vmem:[%s28] ss:$8 sm:$0xf0] %vm25, %v24
  %v30 = vld [vmem:[%s0] sm:$0xff]
  %31 = vrot.lane.b32.xlu0 %v30, 124
  %v32 = vpop.permute.xlu0 %31
  %vm33 = vcmask 7168
  %s34 = scalar_lea.vmem %s1, 4
  %35 = vst.msk [vmem:[%s34] ss:$8 sm:$0xf] %vm33, %v32
  %s36 = scalar_lea.vmem %s1, 4
  %37 = vst.msk [vmem:[%s36] ss:$8 sm:$0xf0] %vm33, %v32
  %v38 = vld [vmem:[%s0] sm:$0xff]
  %39 = vrot.lane.b32.xlu0 %v38, 123
  %v40 = vpop.permute.xlu0 %39
  %vm41 = vcmask 7168
  %s42 = scalar_lea.vmem %s1, 5
  %43 = vst.msk [vmem:[%s42] ss:$8 sm:$0xf] %vm41, %v40
  %s44 = scalar_lea.vmem %s1, 5
  %45 = vst.msk [vmem:[%s44] ss:$8 sm:$0xf0] %vm41, %v40
  %v46 = vld [vmem:[%s0] sm:$0xff]
  %47 = vrot.lane.b32.xlu0 %v46, 122
  %v48 = vpop.permute.xlu0 %47
  %vm49 = vcmask 7168
  %s50 = scalar_lea.vmem %s1, 6
  %51 = vst.msk [vmem:[%s50] ss:$8 sm:$0xf] %vm49, %v48
  %s52 = scalar_lea.vmem %s1, 6
  %53 = vst.msk [vmem:[%s52] ss:$8 sm:$0xf0] %vm49, %v48
  %v54 = vld [vmem:[%s0] sm:$0xff]
  %55 = vrot.lane.b32.xlu0 %v54, 121
  %v56 = vpop.permute.xlu0 %55
  %vm57 = vcmask 7168
  %s58 = scalar_lea.vmem %s1, 7
  %59 = vst.msk [vmem:[%s58] ss:$8 sm:$0xf] %vm57, %v56
  %s60 = scalar_lea.vmem %s1, 7
  %61 = vst.msk [vmem:[%s60] ss:$8 sm:$0xf0] %vm57, %v56

// kernel: hourglass_forward.7
$region0: #{hourglass_forward.7}
  #allocation0 [shape = 'u32[]', space=smem, size = 0x4, offset = 0x4, fixed_abs, tag = 'smem constant byte address 0x4 - core index']
  #allocation1 [shape = 'u32[72,128]{1,0:T(1,128)}', space=vmem, size = 0x9000, scoped, tag = 'internal scratch']
  %s0 = inlined_call_operand.vmem [shape: bf16[4,16], index: 0, kind: input, shape index: {}]
  %s1 = inlined_call_operand.vmem [shape: bf16[16,4096], index: 1, kind: input, shape index: {}]
  %s2 = inlined_call_operand.vmem [shape: f32[4,1], index: 2, kind: input, shape index: {}]
  %s3 = inlined_call_operand.vmem [shape: f32[4,1], index: 3, kind: input, shape index: {}]
  %s4 = inlined_call_operand.vmem [shape: f32[4,4096], index: 4, kind: output, shape index: {}]
  %s5 = sld [smem:[#allocation0]]
  $region72: #{hourglass_forward.7} parent=0
    _
  %s7 = ssub.s32 1, %s5
  %s8 = scalar_select 0, %s7, %s5
  $region1: #{hourglass_forward.7} parent=0
    #allocation2 [shape = 'u8[131072]{0}', space=vmem, size = 0x20000, scoped, tag = 'input window, operand 1']
    loop: start=0, step=1, limit=4
    $region2: #{hourglass_forward.7} parent=1 // loop_pre_header
      _
    $region3: #{hourglass_forward.7} parent=1 // loop_header
      %s10 = sphi 0, %s14
      %p11 = scmp.ge.s32.totalorder %s10, 4
      %s18 = sphi 0, %s18
      %s20 = sphi 0, %s18
      %s21 = sphi 0, %s20
      %s35 = sphi 0, %s21
      %s41 = sphi 0, %s43
      %s44 = sphi 0, %s41
      %s45 = sphi 0, %s44
      %s61 = sphi 0, %s45
      %s65 = sphi 0, %s65
      %s67 = sphi 0, %s65
      %s68 = sphi 0, %s67
      %s82 = sphi 0, %s68
      %s86 = sphi 0, %s86
      %s88 = sphi 0, %s86
      %s89 = sphi 0, %s88
      %s103 = sphi 0, %s89
      %s109 = sphi 0, %s111
      %s112 = sphi 0, %s109
      %s113 = sphi 0, %s112
      %s129 = sphi 0, %s113
    $region4: #{hourglass_forward.7} parent=1 // loop_header_branch
      %13 = sbr.rel (%p11) target = $region8
    $region5: #{hourglass_forward.7} parent=1 // loop_body
      %s15 = ssub.s32 %s10, 1
      %s16 = ssub.s32 %s10, 2
      %s17 = sadd.s32 %s10, 1
      %s19 = sadd.s32 %s18, 1
      %p22 = scmp.eq.s32.totalorder %s10, 1
      %p23 = scmp.ne.s32.totalorder %s18, %s20
      %p24 = scmp.eq.s32.totalorder %s10, 0
      %p25 = por %p23, %p24
      %p26 = scmp.ne.s32.totalorder %s18, %s20
      %p27 = scmp.eq.s32.totalorder %s15, 1
      %p28 = por %p26, %p27
      %p29 = scmp.ne.s32.totalorder %s20, %s21
      %p30 = scmp.eq.s32.totalorder %s15, 0
      %p31 = por %p29, %p30
      %p32 = scmp.ne.s32.totalorder %s20, %s21
      %p33 = scmp.eq.s32.totalorder %s16, 1
      %p34 = por %p32, %p33
      %p36 = scmp.ne.s32.totalorder %s21, %s35
      %p37 = scmp.eq.s32.totalorder %s16, 0
      %p38 = por %p36, %p37
      %s39 = ssub.s32 %s10, %s17
      %p40 = scmp.eq.s32.totalorder %s39, 0
      %s42 = sadd.s32 %s41, 1
      %s43 = scalar_select %p40, %s41, %s42
      %p46 = pneg %p40
      %p47 = scmp.eq.s32.totalorder %s10, 1
      %p48 = por %p46, %p47
      %p49 = scmp.ne.s32.totalorder %s41, %s44
      %p50 = scmp.eq.s32.totalorder %s10, 0
      %p51 = por %p49, %p50
      %p52 = scmp.ne.s32.totalorder %s41, %s44
      %p53 = scmp.eq.s32.totalorder %s15, 1
      %p54 = por %p52, %p53
      %p55 = scmp.ne.s32.totalorder %s44, %s45
      %p56 = scmp.eq.s32.totalorder %s15, 0
      %p57 = por %p55, %p56
      %p58 = scmp.ne.s32.totalorder %s44, %s45
      %p59 = scmp.eq.s32.totalorder %s16, 1
      %p60 = por %p58, %p59
      %p62 = scmp.ne.s32.totalorder %s45, %s61
      %p63 = scmp.eq.s32.totalorder %s16, 0
      %p64 = por %p62, %p63
      %s66 = sadd.s32 %s65, 1
      %p69 = scmp.eq.s32.totalorder %s10, 1
      %p70 = scmp.ne.s32.totalorder %s65, %s67
      %p71 = scmp.eq.s32.totalorder %s10, 0
      %p72 = por %p70, %p71
      %p73 = scmp.ne.s32.totalorder %s65, %s67
      %p74 = scmp.eq.s32.totalorder %s15, 1
      %p75 = por %p73, %p74
      %p76 = scmp.ne.s32.totalorder %s67, %s68
      %p77 = scmp.eq.s32.totalorder %s15, 0
      %p78 = por %p76, %p77
      %p79 = scmp.ne.s32.totalorder %s67, %s68
      %p80 = scmp.eq.s32.totalorder %s16, 1
      %p81 = por %p79, %p80
      %p83 = scmp.ne.s32.totalorder %s68, %s82
      %p84 = scmp.eq.s32.totalorder %s16, 0
      %p85 = por %p83, %p84
      %s87 = sadd.s32 %s86, 1
      %p90 = scmp.eq.s32.totalorder %s10, 1
      %p91 = scmp.ne.s32.totalorder %s86, %s88
      %p92 = scmp.eq.s32.totalorder %s10, 0
      %p93 = por %p91, %p92
      %p94 = scmp.ne.s32.totalorder %s86, %s88
      %p95 = scmp.eq.s32.totalorder %s15, 1
      %p96 = por %p94, %p95
      %p97 = scmp.ne.s32.totalorder %s88, %s89
      %p98 = scmp.eq.s32.totalorder %s15, 0
      %p99 = por %p97, %p98
      %p100 = scmp.ne.s32.totalorder %s88, %s89
      %p101 = scmp.eq.s32.totalorder %s16, 1
      %p102 = por %p100, %p101
      %p104 = scmp.ne.s32.totalorder %s89, %s103
      %p105 = scmp.eq.s32.totalorder %s16, 0
      %p106 = por %p104, %p105
      %s107 = ssub.s32 %s10, %s17
      %p108 = scmp.eq.s32.totalorder %s107, 0
      %s110 = sadd.s32 %s109, 1
      %s111 = scalar_select %p108, %s109, %s110
      %p114 = pneg %p108
      %p115 = scmp.eq.s32.totalorder %s10, 1
      %p116 = por %p114, %p115
      %p117 = scmp.ne.s32.totalorder %s109, %s112
      %p118 = scmp.eq.s32.totalorder %s10, 0
      %p119 = por %p117, %p118
      %p120 = scmp.ne.s32.totalorder %s109, %s112
      %p121 = scmp.eq.s32.totalorder %s15, 1
      %p122 = por %p120, %p121
      %p123 = scmp.ne.s32.totalorder %s112, %s113
      %p124 = scmp.eq.s32.totalorder %s15, 0
      %p125 = por %p123, %p124
      %p126 = scmp.ne.s32.totalorder %s112, %s113
      %p127 = scmp.eq.s32.totalorder %s16, 1
      %p128 = por %p126, %p127
      %p130 = scmp.ne.s32.totalorder %s113, %s129
      %p131 = scmp.eq.s32.totalorder %s16, 0
      %p132 = por %p130, %p131
      %p133 = scmp.le.s32.totalorder 1, %s10
      %p134 = scmp.lt.s32.totalorder %s10, 3
      %p135 = pnand %p133, %p134
      %p136 = pneg %p135
      // Predicated region
      $region9: #{hourglass_forward.7} parent=5 // pred_check
        _
      $region10: #{hourglass_forward.7} parent=5 // pred_check_branch
        %138 = sbr.rel (%p135) target = $region12
      $region11: #{hourglass_forward.7} parent=5 // pred_region
        %s139 = ssub.s32 %s10, 1
        // Predicated region
        $region13: #{hourglass_forward.7} parent=11 // pred_check
          %p140 = pneg %p31
        $region14: #{hourglass_forward.7} parent=11 // pred_check_branch
          %142 = sbr.rel (%p140) target = $region16
        $region15: #{hourglass_forward.7} parent=11 // pred_region
          _
        $region16: #{hourglass_forward.7} parent=11 // pred_fallthru
          _
        // Predicated region
        $region17: #{hourglass_forward.7} parent=11 // pred_check
          %p143 = pneg %p78
        $region18: #{hourglass_forward.7} parent=11 // pred_check_branch
          %145 = sbr.rel (%p143) target = $region20
        $region19: #{hourglass_forward.7} parent=11 // pred_region
          _
        $region20: #{hourglass_forward.7} parent=11 // pred_fallthru
          _
        // Predicated region
        $region21: #{hourglass_forward.7} parent=11 // pred_check
          %p146 = pneg %p99
        $region22: #{hourglass_forward.7} parent=11 // pred_check_branch
          %148 = sbr.rel (%p146) target = $region24
        $region23: #{hourglass_forward.7} parent=11 // pred_region
          _
        $region24: #{hourglass_forward.7} parent=11 // pred_fallthru
          _
      $region12: #{hourglass_forward.7} parent=5 // pred_fallthru
        _
      %p149 = scmp.lt.s32.totalorder %s10, 2
      // Predicated region
      $region25: #{hourglass_forward.7} parent=5 // pred_check
        %p150 = pneg %p149
      $region26: #{hourglass_forward.7} parent=5 // pred_check_branch
        %152 = sbr.rel (%p150) target = $region28
      $region27: #{hourglass_forward.7} parent=5 // pred_region
        // Predicated region
        $region29: #{hourglass_forward.7} parent=27 // pred_check
          %p153 = pneg %p51
        $region30: #{hourglass_forward.7} parent=27 // pred_check_branch
          %155 = sbr.rel (%p153) target = $region32
        $region31: #{hourglass_forward.7} parent=27 // pred_region
          %s156 = sand.u32 %s41, 1
          %s157 = sand.u32 %s41, 1
          %s158 = smul.addr %s157, 128
          %s159 = scalar_lea.vmem [#allocation2], %s158
          %s160 = smul.u32 16, %s10
          %s161 = smul.addr %s160, 4
          %s162 = scalar_lea.vmem %s1, %s161
          // Predicated region
          $region33: #{hourglass_forward.7} parent=31 // pred_check
            _
          $region34: #{hourglass_forward.7} parent=31 // pred_check_branch
            %164 = sbr.rel (0) target = $region36
          $region35: #{hourglass_forward.7} parent=31 // pred_region
            // Predicated region
            $region37: #{hourglass_forward.7} parent=35 // pred_check
              _
            $region38: #{hourglass_forward.7} parent=35 // pred_check_branch
              %166 = sbr.rel (0) target = $region40
            $region39: #{hourglass_forward.7} parent=35 // pred_region
              loop: start=0, step=1, limit=1
              $region41: #{hourglass_forward.7} parent=39 // loop_pre_header
                _
              $region42: #{hourglass_forward.7} parent=39 // loop_header
                %s168 = sphi 0, %s172
                %p169 = scmp.ge.s32.totalorder %s168, 1
                %s173 = sphi %s162, %s162
                %s174 = sphi %s159, %s159
              $region43: #{hourglass_forward.7} parent=39 // loop_header_branch
                %171 = sbr.rel (%p169) target = $region47
              $region44: #{hourglass_forward.7} parent=39 // loop_body
                %v175 = vld [vmem:[%s173] sm:$0xff]
                %176 = vst [vmem:[%s174] sm:$0xff] %v175
                %v177 = vld [vmem:[%s173 + $0x8] sm:$0xff]
                %178 = vst [vmem:[%s174 + $0x8] sm:$0xff] %v177
                %v179 = vld [vmem:[%s173 + $0x10] sm:$0xff]
                %180 = vst [vmem:[%s174 + $0x10] sm:$0xff] %v179
                %v181 = vld [vmem:[%s173 + $0x18] sm:$0xff]
                %182 = vst [vmem:[%s174 + $0x18] sm:$0xff] %v181
                %v183 = vld [vmem:[%s173 + $0x20] sm:$0xff]
                %184 = vst [vmem:[%s174 + $0x20] sm:$0xff] %v183
                %v185 = vld [vmem:[%s173 + $0x28] sm:$0xff]
                %186 = vst [vmem:[%s174 + $0x28] sm:$0xff] %v185
                %v187 = vld [vmem:[%s173 + $0x30] sm:$0xff]
                %188 = vst [vmem:[%s174 + $0x30] sm:$0xff] %v187
                %v189 = vld [vmem:[%s173 + $0x38] sm:$0xff]
                %190 = vst [vmem:[%s174 + $0x38] sm:$0xff] %v189
                %v191 = vld [vmem:[%s173 + $0x80] sm:$0xff]
                %192 = vst [vmem:[%s174 + $0x40] sm:$0xff] %v191
                %v193 = vld [vmem:[%s173 + $0x88] sm:$0xff]
                %194 = vst [vmem:[%s174 + $0x48] sm:$0xff] %v193
                %v195 = vld [vmem:[%s173 + $0x90] sm:$0xff]
                %196 = vst [vmem:[%s174 + $0x50] sm:$0xff] %v195
                %v197 = vld [vmem:[%s173 + $0x98] sm:$0xff]
                %198 = vst [vmem:[%s174 + $0x58] sm:$0xff] %v197
                %v199 = vld [vmem:[%s173 + $0xa0] sm:$0xff]
                %200 = vst [vmem:[%s174 + $0x60] sm:$0xff] %v199
                %v201 = vld [vmem:[%s173 + $0xa8] sm:$0xff]
                %202 = vst [vmem:[%s174 + $0x68] sm:$0xff] %v201
                %v203 = vld [vmem:[%s173 + $0xb0] sm:$0xff]
                %204 = vst [vmem:[%s174 + $0x70] sm:$0xff] %v203
                %v205 = vld [vmem:[%s173 + $0xb8] sm:$0xff]
                %206 = vst [vmem:[%s174 + $0x78] sm:$0xff] %v205
              $region45: #{hourglass_forward.7} parent=39 // loop_footer
                %s172 = sadd.s32 1, %s168
              $region46: #{hourglass_forward.7} parent=39 // loop_footer_branch
                %167 = sbr.rel target = $region42
              $region47: #{hourglass_forward.7} parent=39 // loop_exit
                _
            $region40: #{hourglass_forward.7} parent=35 // pred_fallthru
              _
            // Predicated region
            $region48: #{hourglass_forward.7} parent=35 // pred_check
              _
            $region49: #{hourglass_forward.7} parent=35 // pred_check_branch
              %208 = sbr.rel target = $region51
            $region50: #{hourglass_forward.7} parent=35 // pred_region
              _
            $region51: #{hourglass_forward.7} parent=35 // pred_fallthru
              _
          $region36: #{hourglass_forward.7} parent=31 // pred_fallthru
            _
          %209 = vnop
        $region32: #{hourglass_forward.7} parent=27 // pred_fallthru
          _
      $region28: #{hourglass_forward.7} parent=5 // pred_fallthru
        _
      %p210 = scmp.le.s32.totalorder 1, %s10
      %p211 = scmp.lt.s32.totalorder %s10, 3
      %p212 = pnand %p210, %p211
      %p213 = pneg %p212
      // Predicated region
      $region52: #{hourglass_forward.7} parent=5 // pred_check
        _
      $region53: #{hourglass_forward.7} parent=5 // pred_check_branch
        %215 = sbr.rel (%p212) target = $region55
      $region54: #{hourglass_forward.7} parent=5 // pred_region
        %s216 = ssub.s32 %s10, 1
        %s217 = sand.u32 %s44, 1
        %s218 = sand.u32 %s44, 1
        %s219 = smul.addr %s218, 128
        %s220 = scalar_lea.vmem [#allocation2], %s219
        // Predicated region
        $region56: #{hourglass_forward.7} parent=54 // pred_check
          %p221 = pneg %p57
        $region57: #{hourglass_forward.7} parent=54 // pred_check_branch
          %223 = sbr.rel (%p221) target = $region59
        $region58: #{hourglass_forward.7} parent=54 // pred_region
          _
        $region59: #{hourglass_forward.7} parent=54 // pred_fallthru
          _
        %p224 = pneg %p31
        %p225 = pneg %p28
        %s226 = sand.u32 %s44, 1
        %s227 = sand.u32 %s44, 1
        %s228 = smul.addr %s227, 128
        %s229 = scalar_lea.vmem [#allocation2], %s228
        %p230 = pneg %p57
        %p231 = pneg %p54
        %p232 = pneg %p78
        %p233 = pneg %p75
        %p234 = pneg %p99
        %p235 = pneg %p96
        %p236 = pneg %p125
        %p237 = pneg %p122
        %s238 = smul.u32 16, %s15
        %p239 = scmp.lt.s32.totalorder %s238, 31
        %s240 = scalar_select %p239, %s238, 31
        %s241 = smul.addr %s240, 4
        %s242 = scalar_lea.vmem %s4, %s241
        %s243 = smul.u32 16, %s15
        %s244 = smul.u32 16, %s15
        %p245 = scmp.lt.s32.totalorder %s244, 31
        %s246 = scalar_select %p245, %s244, 31
        %s247 = smul.addr %s246, 4
        %s248 = scalar_lea.vmem %s4, %s247
        %s249 = smul.u32 16, %s15
        %v251 = vld [vmem:[%s0] sm:$0x3]
        %v252 = vld [vmem:[%s220] sm:$0xff]
        %v253 = vld [vmem:[%s220 + $0x8] sm:$0xff]
        %v254 = vld [vmem:[%s220 + $0x10] sm:$0xff]
        %v255 = vld [vmem:[%s220 + $0x18] sm:$0xff]
        %v256 = vld [vmem:[%s220 + $0x20] sm:$0xff]
        %v257 = vld [vmem:[%s220 + $0x28] sm:$0xff]
        %v258 = vld [vmem:[%s220 + $0x30] sm:$0xff]
        %v259 = vld [vmem:[%s220 + $0x38] sm:$0xff]
        %v260 = vld [vmem:[%s220 + $0x40] sm:$0xff]
        %v261 = vld [vmem:[%s220 + $0x48] sm:$0xff]
        %v262 = vld [vmem:[%s220 + $0x50] sm:$0xff]
        %v263 = vld [vmem:[%s220 + $0x58] sm:$0xff]
        %v264 = vld [vmem:[%s220 + $0x60] sm:$0xff]
        %v265 = vld [vmem:[%s220 + $0x68] sm:$0xff]
        %v266 = vld [vmem:[%s220 + $0x70] sm:$0xff]
        %v267 = vld [vmem:[%s220 + $0x78] sm:$0xff]
        %v284 = vunpack.c.l.b16 %v252
        %v285 = vunpack.c.h.b16 %v252
        %v286 = vunpack.c.l.b16 %v253
        %v287 = vunpack.c.h.b16 %v253
        %v288 = vunpack.c.l.b16 %v254
        %v289 = vunpack.c.h.b16 %v254
        %v290 = vunpack.c.l.b16 %v255
        %v291 = vunpack.c.h.b16 %v255
        %v292 = vunpack.c.l.b16 %v256
        %v293 = vunpack.c.h.b16 %v256
        %v294 = vunpack.c.l.b16 %v257
        %v295 = vunpack.c.h.b16 %v257
        %v296 = vunpack.c.l.b16 %v258
        %v297 = vunpack.c.h.b16 %v258
        %v298 = vunpack.c.l.b16 %v259
        %v299 = vunpack.c.h.b16 %v259
        %v300 = vunpack.c.l.b16 %v260
        %v301 = vunpack.c.h.b16 %v260
        %v302 = vunpack.c.l.b16 %v261
        %v303 = vunpack.c.h.b16 %v261
        %v304 = vunpack.c.l.b16 %v262
        %v305 = vunpack.c.h.b16 %v262
        %v306 = vunpack.c.l.b16 %v263
        %v307 = vunpack.c.h.b16 %v263
        %v308 = vunpack.c.l.b16 %v264
        %v309 = vunpack.c.h.b16 %v264
        %v310 = vunpack.c.l.b16 %v265
        %v311 = vunpack.c.h.b16 %v265
        %v312 = vunpack.c.l.b16 %v266
        %v313 = vunpack.c.h.b16 %v266
        %v314 = vunpack.c.l.b16 %v267
        %v315 = vunpack.c.h.b16 %v267
        %v316 = vpack.c.b16 %v300, %v284
        %v317 = vpack.c.b16 %v301, %v285
        %v318 = vpack.c.b16 %v302, %v286
        %v319 = vpack.c.b16 %v303, %v287
        %v320 = vpack.c.b16 %v304, %v288
        %v321 = vpack.c.b16 %v305, %v289
        %v322 = vpack.c.b16 %v306, %v290
        %v323 = vpack.c.b16 %v307, %v291
        %v324 = vpack.c.b16 %v308, %v292
        %v325 = vpack.c.b16 %v309, %v293
        %v326 = vpack.c.b16 %v310, %v294
        %v327 = vpack.c.b16 %v311, %v295
        %v328 = vpack.c.b16 %v312, %v296
        %v329 = vpack.c.b16 %v313, %v297
        %v330 = vpack.c.b16 %v314, %v298
        %v331 = vpack.c.b16 %v315, %v299
        %vm348 = vcmask 130048
        %v350 = vsel %vm348, %v251, 0
        %352 = vmatpush.bf16.msra.mxu0 0
        %353 = vmatpush.bf16.msra.mxu0 0
        %354 = vmatpush.bf16.msra.mxu0 0
        %355 = vmatpush.bf16.msra.mxu0 0
        %356 = vmatpush.bf16.msra.mxu0 0
        %357 = vmatpush.bf16.msra.mxu0 0
        %358 = vmatpush.bf16.msra.mxu0 0
        %359 = vmatpush.bf16.msra.mxu0 %v316
        %360 = vmatmul.bf16.gmra.mxu0 %v350
        %v361 = vpop.f32.mrf.mxu0
        %v362 = vadd.f32 0.0, %v361
        %v363 = vpop.f32.mrf.mxu0
        %364 = vdwg.mxu0
        %365 = vmatpush.bf16.msra.mxu0 0
        %366 = vmatpush.bf16.msra.mxu0 0
        %367 = vmatpush.bf16.msra.mxu0 0
        %368 = vmatpush.bf16.msra.mxu0 0
        %369 = vmatpush.bf16.msra.mxu0 0
        %370 = vmatpush.bf16.msra.mxu0 0
        %371 = vmatpush.bf16.msra.mxu0 0
        %372 = vmatpush.bf16.msra.mxu0 %v317
        %373 = vmatmul.bf16.gmra.mxu0 %v350
        %v374 = vpop.f32.mrf.mxu0
        %v375 = vadd.f32 0.0, %v374
        %v376 = vpop.f32.mrf.mxu0
        %377 = vdwg.mxu0
        %378 = vmatpush.bf16.msra.mxu0 0
        %379 = vmatpush.bf16.msra.mxu0 0
        %380 = vmatpush.bf16.msra.mxu0 0
        %381 = vmatpush.bf16.msra.mxu0 0
        %382 = vmatpush.bf16.msra.mxu0 0
        %383 = vmatpush.bf16.msra.mxu0 0
        %384 = vmatpush.bf16.msra.mxu0 0
        %385 = vmatpush.bf16.msra.mxu0 %v318
        %386 = vmatmul.bf16.gmra.mxu0 %v350
        %v387 = vpop.f32.mrf.mxu0
        %v388 = vadd.f32 0.0, %v387
        %v389 = vpop.f32.mrf.mxu0
        %390 = vdwg.mxu0
        %391 = vmatpush.bf16.msra.mxu0 0
        %392 = vmatpush.bf16.msra.mxu0 0
        %393 = vmatpush.bf16.msra.mxu0 0
        %394 = vmatpush.bf16.msra.mxu0 0
        %395 = vmatpush.bf16.msra.mxu0 0
        %396 = vmatpush.bf16.msra.mxu0 0
        %397 = vmatpush.bf16.msra.mxu0 0
        %398 = vmatpush.bf16.msra.mxu0 %v319
        %399 = vmatmul.bf16.gmra.mxu0 %v350
        %v400 = vpop.f32.mrf.mxu0
        %v401 = vadd.f32 0.0, %v400
        %v402 = vpop.f32.mrf.mxu0
        %403 = vdwg.mxu0
        %404 = vmatpush.bf16.msra.mxu0 0
        %405 = vmatpush.bf16.msra.mxu0 0
        %406 = vmatpush.bf16.msra.mxu0 0
        %407 = vmatpush.bf16.msra.mxu0 0
        %408 = vmatpush.bf16.msra.mxu0 0
        %409 = vmatpush.bf16.msra.mxu0 0
        %410 = vmatpush.bf16.msra.mxu0 0
        %411 = vmatpush.bf16.msra.mxu0 %v320
        %412 = vmatmul.bf16.gmra.mxu0 %v350
        %v413 = vpop.f32.mrf.mxu0
        %v414 = vadd.f32 0.0, %v413
        %v415 = vpop.f32.mrf.mxu0
        %416 = vdwg.mxu0
        %417 = vmatpush.bf16.msra.mxu0 0
        %418 = vmatpush.bf16.msra.mxu0 0
        %419 = vmatpush.bf16.msra.mxu0 0
        %420 = vmatpush.bf16.msra.mxu0 0
        %421 = vmatpush.bf16.msra.mxu0 0
        %422 = vmatpush.bf16.msra.mxu0 0
        %423 = vmatpush.bf16.msra.mxu0 0
        %424 = vmatpush.bf16.msra.mxu0 %v321
        %425 = vmatmul.bf16.gmra.mxu0 %v350
        %v426 = vpop.f32.mrf.mxu0
        %v427 = vadd.f32 0.0, %v426
        %v428 = vpop.f32.mrf.mxu0
        %429 = vdwg.mxu0
        %430 = vmatpush.bf16.msra.mxu0 0
        %431 = vmatpush.bf16.msra.mxu0 0
        %432 = vmatpush.bf16.msra.mxu0 0
        %433 = vmatpush.bf16.msra.mxu0 0
        %434 = vmatpush.bf16.msra.mxu0 0
        %435 = vmatpush.bf16.msra.mxu0 0
        %436 = vmatpush.bf16.msra.mxu0 0
        %437 = vmatpush.bf16.msra.mxu0 %v322
        %438 = vmatmul.bf16.gmra.mxu0 %v350
        %v439 = vpop.f32.mrf.mxu0
        %v440 = vadd.f32 0.0, %v439
        %v441 = vpop.f32.mrf.mxu0
        %442 = vdwg.mxu0
        %443 = vmatpush.bf16.msra.mxu0 0
        %444 = vmatpush.bf16.msra.mxu0 0
        %445 = vmatpush.bf16.msra.mxu0 0
        %446 = vmatpush.bf16.msra.mxu0 0
        %447 = vmatpush.bf16.msra.mxu0 0
        %448 = vmatpush.bf16.msra.mxu0 0
        %449 = vmatpush.bf16.msra.mxu0 0
        %450 = vmatpush.bf16.msra.mxu0 %v323
        %451 = vmatmul.bf16.gmra.mxu0 %v350
        %v452 = vpop.f32.mrf.mxu0
        %v453 = vadd.f32 0.0, %v452
        %v454 = vpop.f32.mrf.mxu0
        %455 = vdwg.mxu0
        %456 = vmatpush.bf16.msra.mxu0 0
        %457 = vmatpush.bf16.msra.mxu0 0
        %458 = vmatpush.bf16.msra.mxu0 0
        %459 = vmatpush.bf16.msra.mxu0 0
        %460 = vmatpush.bf16.msra.mxu0 0
        %461 = vmatpush.bf16.msra.mxu0 0
        %462 = vmatpush.bf16.msra.mxu0 0
        %463 = vmatpush.bf16.msra.mxu0 %v324
        %464 = vmatmul.bf16.gmra.mxu0 %v350
        %v465 = vpop.f32.mrf.mxu0
        %v466 = vadd.f32 0.0, %v465
        %v467 = vpop.f32.mrf.mxu0
        %468 = vdwg.mxu0
        %469 = vmatpush.bf16.msra.mxu0 0
        %470 = vmatpush.bf16.msra.mxu0 0
        %471 = vmatpush.bf16.msra.mxu0 0
        %472 = vmatpush.bf16.msra.mxu0 0
        %473 = vmatpush.bf16.msra.mxu0 0
        %474 = vmatpush.bf16.msra.mxu0 0
        %475 = vmatpush.bf16.msra.mxu0 0
        %476 = vmatpush.bf16.msra.mxu0 %v325
        %477 = vmatmul.bf16.gmra.mxu0 %v350
        %v478 = vpop.f32.mrf.mxu0
        %v479 = vadd.f32 0.0, %v478
        %v480 = vpop.f32.mrf.mxu0
        %481 = vdwg.mxu0
        %482 = vmatpush.bf16.msra.mxu0 0
        %483 = vmatpush.bf16.msra.mxu0 0
        %484 = vmatpush.bf16.msra.mxu0 0
        %485 = vmatpush.bf16.msra.mxu0 0
        %486 = vmatpush.bf16.msra.mxu0 0
        %487 = vmatpush.bf16.msra.mxu0 0
        %488 = vmatpush.bf16.msra.mxu0 0
        %489 = vmatpush.bf16.msra.mxu0 %v326
        %490 = vmatmul.bf16.gmra.mxu0 %v350
        %v491 = vpop.f32.mrf.mxu0
        %v492 = vadd.f32 0.0, %v491
        %v493 = vpop.f32.mrf.mxu0
        %494 = vdwg.mxu0
        %495 = vmatpush.bf16.msra.mxu0 0
        %496 = vmatpush.bf16.msra.mxu0 0
        %497 = vmatpush.bf16.msra.mxu0 0
        %498 = vmatpush.bf16.msra.mxu0 0
        %499 = vmatpush.bf16.msra.mxu0 0
        %500 = vmatpush.bf16.msra.mxu0 0
        %501 = vmatpush.bf16.msra.mxu0 0
        %502 = vmatpush.bf16.msra.mxu0 %v327
        %503 = vmatmul.bf16.gmra.mxu0 %v350
        %v504 = vpop.f32.mrf.mxu0
        %v505 = vadd.f32 0.0, %v504
        %v506 = vpop.f32.mrf.mxu0
        %507 = vdwg.mxu0
        %508 = vmatpush.bf16.msra.mxu0 0
        %509 = vmatpush.bf16.msra.mxu0 0
        %510 = vmatpush.bf16.msra.mxu0 0
        %511 = vmatpush.bf16.msra.mxu0 0
        %512 = vmatpush.bf16.msra.mxu0 0
        %513 = vmatpush.bf16.msra.mxu0 0
        %514 = vmatpush.bf16.msra.mxu0 0
        %515 = vmatpush.bf16.msra.mxu0 %v328
        %516 = vmatmul.bf16.gmra.mxu0 %v350
        %v517 = vpop.f32.mrf.mxu0
        %v518 = vadd.f32 0.0, %v517
        %v519 = vpop.f32.mrf.mxu0
        %520 = vdwg.mxu0
        %521 = vmatpush.bf16.msra.mxu0 0
        %522 = vmatpush.bf16.msra.mxu0 0
        %523 = vmatpush.bf16.msra.mxu0 0
        %524 = vmatpush.bf16.msra.mxu0 0
        %525 = vmatpush.bf16.msra.mxu0 0
        %526 = vmatpush.bf16.msra.mxu0 0
        %527 = vmatpush.bf16.msra.mxu0 0
        %528 = vmatpush.bf16.msra.mxu0 %v329
        %529 = vmatmul.bf16.gmra.mxu0 %v350
        %v530 = vpop.f32.mrf.mxu0
        %v531 = vadd.f32 0.0, %v530
        %v532 = vpop.f32.mrf.mxu0
        %533 = vdwg.mxu0
        %534 = vmatpush.bf16.msra.mxu0 0
        %535 = vmatpush.bf16.msra.mxu0 0
        %536 = vmatpush.bf16.msra.mxu0 0
        %537 = vmatpush.bf16.msra.mxu0 0
        %538 = vmatpush.bf16.msra.mxu0 0
        %539 = vmatpush.bf16.msra.mxu0 0
        %540 = vmatpush.bf16.msra.mxu0 0
        %541 = vmatpush.bf16.msra.mxu0 %v330
        %542 = vmatmul.bf16.gmra.mxu0 %v350
        %v543 = vpop.f32.mrf.mxu0
        %v544 = vadd.f32 0.0, %v543
        %v545 = vpop.f32.mrf.mxu0
        %546 = vdwg.mxu0
        %547 = vmatpush.bf16.msra.mxu0 0
        %548 = vmatpush.bf16.msra.mxu0 0
        %549 = vmatpush.bf16.msra.mxu0 0
        %550 = vmatpush.bf16.msra.mxu0 0
        %551 = vmatpush.bf16.msra.mxu0 0
        %552 = vmatpush.bf16.msra.mxu0 0
        %553 = vmatpush.bf16.msra.mxu0 0
        %554 = vmatpush.bf16.msra.mxu0 %v331
        %555 = vmatmul.bf16.gmra.mxu0 %v350
        %v556 = vpop.f32.mrf.mxu0
        %v557 = vadd.f32 0.0, %v556
        %v558 = vpop.f32.mrf.mxu0
        %559 = vdwg.mxu0
        %v560 = vld [vmem:[%s2] sm:$0xf]
        %562 = vset.pattern.permute.xlu0 0
        %563 = vperm.xlu0 %562, %v560
        %v564 = vpop.permute.xlu0 %563
        %v566 = vmul.f32 %v362, %v564
        %v567 = vmul.f32 %v375, %v564
        %v568 = vmul.f32 %v388, %v564
        %v569 = vmul.f32 %v401, %v564
        %v570 = vmul.f32 %v414, %v564
        %v571 = vmul.f32 %v427, %v564
        %v572 = vmul.f32 %v440, %v564
        %v573 = vmul.f32 %v453, %v564
        %v574 = vmul.f32 %v466, %v564
        %v575 = vmul.f32 %v479, %v564
        %v576 = vmul.f32 %v492, %v564
        %v577 = vmul.f32 %v505, %v564
        %v578 = vmul.f32 %v518, %v564
        %v579 = vmul.f32 %v531, %v564
        %v580 = vmul.f32 %v544, %v564
        %v581 = vmul.f32 %v557, %v564
        %v582 = vld [vmem:[%s3] sm:$0xf]
        %584 = vset.pattern.permute.xlu0 0
        %585 = vperm.xlu0 %584, %v582
        %v586 = vpop.permute.xlu0 %585
        %v588 = vadd.f32 %v566, %v586
        %v589 = vadd.f32 %v567, %v586
        %v590 = vadd.f32 %v568, %v586
        %v591 = vadd.f32 %v569, %v586
        %v592 = vadd.f32 %v570, %v586
        %v593 = vadd.f32 %v571, %v586
        %v594 = vadd.f32 %v572, %v586
        %v595 = vadd.f32 %v573, %v586
        %v596 = vadd.f32 %v574, %v586
        %v597 = vadd.f32 %v575, %v586
        %v598 = vadd.f32 %v576, %v586
        %v599 = vadd.f32 %v577, %v586
        %v600 = vadd.f32 %v578, %v586
        %v601 = vadd.f32 %v579, %v586
        %v602 = vadd.f32 %v580, %v586
        %v603 = vadd.f32 %v581, %v586
        %v620 = vrot.slane %v589, 4
        %v621 = vrot.slane %v591, 4
        %v622 = vrot.slane %v593, 4
        %v623 = vrot.slane %v595, 4
        %v624 = vrot.slane %v597, 4
        %v625 = vrot.slane %v599, 4
        %v626 = vrot.slane %v601, 4
        %v627 = vrot.slane %v603, 4
        %vm628 = vcmask 1043456
        %v629 = vsel %vm628, %v588, %v620
        %v630 = vsel %vm628, %v590, %v621
        %v631 = vsel %vm628, %v592, %v622
        %v632 = vsel %vm628, %v594, %v623
        %v633 = vsel %vm628, %v596, %v624
        %v634 = vsel %vm628, %v598, %v625
        %v635 = vsel %vm628, %v600, %v626
        %v636 = vsel %vm628, %v602, %v627
        %645 = vst [vmem:[%s248] sm:$0xff] %v629
        %646 = vst [vmem:[%s248 + $0x8] sm:$0xff] %v630
        %647 = vst [vmem:[%s248 + $0x10] sm:$0xff] %v631
        %648 = vst [vmem:[%s248 + $0x18] sm:$0xff] %v632
        %649 = vst [vmem:[%s248 + $0x20] sm:$0xff] %v633
        %650 = vst [vmem:[%s248 + $0x28] sm:$0xff] %v634
        %651 = vst [vmem:[%s248 + $0x30] sm:$0xff] %v635
        %652 = vst [vmem:[%s248 + $0x38] sm:$0xff] %v636
        %s653 = smul.u32 16, %s15
        %p654 = scmp.lt.s32.totalorder %s653, 31
        %s655 = scalar_select %p654, %s653, 31
        %s656 = smul.addr %s655, 4
        %s657 = scalar_lea.vmem %s4, %s656
        // Predicated region
        $region60: #{hourglass_forward.7} parent=54 // pred_check
          %p658 = pneg %p122
        $region61: #{hourglass_forward.7} parent=54 // pred_check_branch
          %660 = sbr.rel (%p658) target = $region63
        $region62: #{hourglass_forward.7} parent=54 // pred_region
          %s661 = smul.u32 16, %s15
        $region63: #{hourglass_forward.7} parent=54 // pred_fallthru
          _
      $region55: #{hourglass_forward.7} parent=5 // pred_fallthru
        _
      %p662 = scmp.le.s32.totalorder 2, %s10
      // Predicated region
      $region64: #{hourglass_forward.7} parent=5 // pred_check
        %p663 = pneg %p662
      $region65: #{hourglass_forward.7} parent=5 // pred_check_branch
        %665 = sbr.rel (%p663) target = $region67
      $region66: #{hourglass_forward.7} parent=5 // pred_region
        %s666 = ssub.s32 %s10, 2
        // Predicated region
        $region68: #{hourglass_forward.7} parent=66 // pred_check
          %p667 = pneg %p128
        $region69: #{hourglass_forward.7} parent=66 // pred_check_branch
          %669 = sbr.rel (%p667) target = $region71
        $region70: #{hourglass_forward.7} parent=66 // pred_region
          %s670 = smul.u32 16, %s16
          %p671 = scmp.lt.s32.totalorder %s670, 31
          %s672 = scalar_select %p671, %s670, 31
          %s673 = smul.addr %s672, 4
          %s674 = scalar_lea.vmem %s4, %s673
        $region71: #{hourglass_forward.7} parent=66 // pred_fallthru
          _
      $region67: #{hourglass_forward.7} parent=5 // pred_fallthru
        _
    $region6: #{hourglass_forward.7} parent=1 // loop_footer
      %s14 = sadd.s32 1, %s10
    $region7: #{hourglass_forward.7} parent=1 // loop_footer_branch
      %9 = sbr.rel target = $region3
    $region8: #{hourglass_forward.7} parent=1 // loop_exit
      _

// kernel: hourglass_forward.8
$region0: #{hourglass_forward.8}
  #allocation0 [shape = 'u32[]', space=smem, size = 0x4, offset = 0x4, fixed_abs, tag = 'smem constant byte address 0x4 - core index']
  #allocation1 [shape = 'u32[72,128]{1,0:T(1,128)}', space=vmem, size = 0x9000, scoped, tag = 'internal scratch']
  %s0 = inlined_call_operand.vmem [shape: bf16[8,112], index: 0, kind: input, shape index: {}]
  %s1 = inlined_call_operand.vmem [shape: bf16[112,512], index: 1, kind: input, shape index: {}]
  %s2 = inlined_call_operand.vmem [shape: f32[8,1], index: 2, kind: input, shape index: {}]
  %s3 = inlined_call_operand.vmem [shape: f32[8,1], index: 3, kind: input, shape index: {}]
  %s4 = inlined_call_operand.vmem [shape: f32[8,512], index: 4, kind: output, shape index: {}]
  %s5 = sld [smem:[#allocation0]]
  $region87: #{hourglass_forward.8} parent=0
    _
  %s7 = ssub.s32 1, %s5
  %s8 = scalar_select 0, %s7, %s5
  $region1: #{hourglass_forward.8} parent=0
    #allocation2 [shape = 'u8[114688]{0}', space=vmem, size = 0x1c000, scoped, tag = 'input window, operand 1']
    loop: start=0, step=1, limit=4
    $region2: #{hourglass_forward.8} parent=1 // loop_pre_header
      _
    $region3: #{hourglass_forward.8} parent=1 // loop_header
      %s10 = sphi 0, %s14
      %p11 = scmp.ge.s32.totalorder %s10, 4
      %s18 = sphi 0, %s18
      %s20 = sphi 0, %s18
      %s21 = sphi 0, %s20
      %s35 = sphi 0, %s21
      %s41 = sphi 0, %s43
      %s44 = sphi 0, %s41
      %s45 = sphi 0, %s44
      %s61 = sphi 0, %s45
      %s65 = sphi 0, %s65
      %s67 = sphi 0, %s65
      %s68 = sphi 0, %s67
      %s82 = sphi 0, %s68
      %s86 = sphi 0, %s86
      %s88 = sphi 0, %s86
      %s89 = sphi 0, %s88
      %s103 = sphi 0, %s89
      %s109 = sphi 0, %s111
      %s112 = sphi 0, %s109
      %s113 = sphi 0, %s112
      %s129 = sphi 0, %s113
    $region4: #{hourglass_forward.8} parent=1 // loop_header_branch
      %13 = sbr.rel (%p11) target = $region8
    $region5: #{hourglass_forward.8} parent=1 // loop_body
      %s15 = ssub.s32 %s10, 1
      %s16 = ssub.s32 %s10, 2
      %s17 = sadd.s32 %s10, 1
      %s19 = sadd.s32 %s18, 1
      %p22 = scmp.eq.s32.totalorder %s10, 1
      %p23 = scmp.ne.s32.totalorder %s18, %s20
      %p24 = scmp.eq.s32.totalorder %s10, 0
      %p25 = por %p23, %p24
      %p26 = scmp.ne.s32.totalorder %s18, %s20
      %p27 = scmp.eq.s32.totalorder %s15, 1
      %p28 = por %p26, %p27
      %p29 = scmp.ne.s32.totalorder %s20, %s21
      %p30 = scmp.eq.s32.totalorder %s15, 0
      %p31 = por %p29, %p30
      %p32 = scmp.ne.s32.totalorder %s20, %s21
      %p33 = scmp.eq.s32.totalorder %s16, 1
      %p34 = por %p32, %p33
      %p36 = scmp.ne.s32.totalorder %s21, %s35
      %p37 = scmp.eq.s32.totalorder %s16, 0
      %p38 = por %p36, %p37
      %s39 = ssub.s32 %s10, %s17
      %p40 = scmp.eq.s32.totalorder %s39, 0
      %s42 = sadd.s32 %s41, 1
      %s43 = scalar_select %p40, %s41, %s42
      %p46 = pneg %p40
      %p47 = scmp.eq.s32.totalorder %s10, 1
      %p48 = por %p46, %p47
      %p49 = scmp.ne.s32.totalorder %s41, %s44
      %p50 = scmp.eq.s32.totalorder %s10, 0
      %p51 = por %p49, %p50
      %p52 = scmp.ne.s32.totalorder %s41, %s44
      %p53 = scmp.eq.s32.totalorder %s15, 1
      %p54 = por %p52, %p53
      %p55 = scmp.ne.s32.totalorder %s44, %s45
      %p56 = scmp.eq.s32.totalorder %s15, 0
      %p57 = por %p55, %p56
      %p58 = scmp.ne.s32.totalorder %s44, %s45
      %p59 = scmp.eq.s32.totalorder %s16, 1
      %p60 = por %p58, %p59
      %p62 = scmp.ne.s32.totalorder %s45, %s61
      %p63 = scmp.eq.s32.totalorder %s16, 0
      %p64 = por %p62, %p63
      %s66 = sadd.s32 %s65, 1
      %p69 = scmp.eq.s32.totalorder %s10, 1
      %p70 = scmp.ne.s32.totalorder %s65, %s67
      %p71 = scmp.eq.s32.totalorder %s10, 0
      %p72 = por %p70, %p71
      %p73 = scmp.ne.s32.totalorder %s65, %s67
      %p74 = scmp.eq.s32.totalorder %s15, 1
      %p75 = por %p73, %p74
      %p76 = scmp.ne.s32.totalorder %s67, %s68
      %p77 = scmp.eq.s32.totalorder %s15, 0
      %p78 = por %p76, %p77
      %p79 = scmp.ne.s32.totalorder %s67, %s68
      %p80 = scmp.eq.s32.totalorder %s16, 1
      %p81 = por %p79, %p80
      %p83 = scmp.ne.s32.totalorder %s68, %s82
      %p84 = scmp.eq.s32.totalorder %s16, 0
      %p85 = por %p83, %p84
      %s87 = sadd.s32 %s86, 1
      %p90 = scmp.eq.s32.totalorder %s10, 1
      %p91 = scmp.ne.s32.totalorder %s86, %s88
      %p92 = scmp.eq.s32.totalorder %s10, 0
      %p93 = por %p91, %p92
      %p94 = scmp.ne.s32.totalorder %s86, %s88
      %p95 = scmp.eq.s32.totalorder %s15, 1
      %p96 = por %p94, %p95
      %p97 = scmp.ne.s32.totalorder %s88, %s89
      %p98 = scmp.eq.s32.totalorder %s15, 0
      %p99 = por %p97, %p98
      %p100 = scmp.ne.s32.totalorder %s88, %s89
      %p101 = scmp.eq.s32.totalorder %s16, 1
      %p102 = por %p100, %p101
      %p104 = scmp.ne.s32.totalorder %s89, %s103
      %p105 = scmp.eq.s32.totalorder %s16, 0
      %p106 = por %p104, %p105
      %s107 = ssub.s32 %s10, %s17
      %p108 = scmp.eq.s32.totalorder %s107, 0
      %s110 = sadd.s32 %s109, 1
      %s111 = scalar_select %p108, %s109, %s110
      %p114 = pneg %p108
      %p115 = scmp.eq.s32.totalorder %s10, 1
      %p116 = por %p114, %p115
      %p117 = scmp.ne.s32.totalorder %s109, %s112
      %p118 = scmp.eq.s32.totalorder %s10, 0
      %p119 = por %p117, %p118
      %p120 = scmp.ne.s32.totalorder %s109, %s112
      %p121 = scmp.eq.s32.totalorder %s15, 1
      %p122 = por %p120, %p121
      %p123 = scmp.ne.s32.totalorder %s112, %s113
      %p124 = scmp.eq.s32.totalorder %s15, 0
      %p125 = por %p123, %p124
      %p126 = scmp.ne.s32.totalorder %s112, %s113
      %p127 = scmp.eq.s32.totalorder %s16, 1
      %p128 = por %p126, %p127
      %p130 = scmp.ne.s32.totalorder %s113, %s129
      %p131 = scmp.eq.s32.totalorder %s16, 0
      %p132 = por %p130, %p131
      %p133 = scmp.le.s32.totalorder 1, %s10
      %p134 = scmp.lt.s32.totalorder %s10, 3
      %p135 = pnand %p133, %p134
      %p136 = pneg %p135
      // Predicated region
      $region9: #{hourglass_forward.8} parent=5 // pred_check
        _
      $region10: #{hourglass_forward.8} parent=5 // pred_check_branch
        %138 = sbr.rel (%p135) target = $region12
      $region11: #{hourglass_forward.8} parent=5 // pred_region
        %s139 = ssub.s32 %s10, 1
        // Predicated region
        $region13: #{hourglass_forward.8} parent=11 // pred_check
          %p140 = pneg %p31
        $region14: #{hourglass_forward.8} parent=11 // pred_check_branch
          %142 = sbr.rel (%p140) target = $region16
        $region15: #{hourglass_forward.8} parent=11 // pred_region
          _
        $region16: #{hourglass_forward.8} parent=11 // pred_fallthru
          _
        // Predicated region
        $region17: #{hourglass_forward.8} parent=11 // pred_check
          %p143 = pneg %p78
        $region18: #{hourglass_forward.8} parent=11 // pred_check_branch
          %145 = sbr.rel (%p143) target = $region20
        $region19: #{hourglass_forward.8} parent=11 // pred_region
          _
        $region20: #{hourglass_forward.8} parent=11 // pred_fallthru
          _
        // Predicated region
        $region21: #{hourglass_forward.8} parent=11 // pred_check
          %p146 = pneg %p99
        $region22: #{hourglass_forward.8} parent=11 // pred_check_branch
          %148 = sbr.rel (%p146) target = $region24
        $region23: #{hourglass_forward.8} parent=11 // pred_region
          _
        $region24: #{hourglass_forward.8} parent=11 // pred_fallthru
          _
      $region12: #{hourglass_forward.8} parent=5 // pred_fallthru
        _
      %p149 = scmp.lt.s32.totalorder %s10, 2
      // Predicated region
      $region25: #{hourglass_forward.8} parent=5 // pred_check
        %p150 = pneg %p149
      $region26: #{hourglass_forward.8} parent=5 // pred_check_branch
        %152 = sbr.rel (%p150) target = $region28
      $region27: #{hourglass_forward.8} parent=5 // pred_region
        // Predicated region
        $region29: #{hourglass_forward.8} parent=27 // pred_check
          %p153 = pneg %p51
        $region30: #{hourglass_forward.8} parent=27 // pred_check_branch
          %155 = sbr.rel (%p153) target = $region32
        $region31: #{hourglass_forward.8} parent=27 // pred_region
          %s156 = sand.u32 %s41, 1
          %s157 = sand.u32 %s41, 1
          %s158 = smul.addr %s157, 112
          %s159 = scalar_lea.vmem [#allocation2], %s158
          %s160 = smul.u32 2, %s10
          %s161 = smul.addr %s160, 4
          %s162 = scalar_lea.vmem %s1, %s161
          // Predicated region
          $region33: #{hourglass_forward.8} parent=31 // pred_check
            _
          $region34: #{hourglass_forward.8} parent=31 // pred_check_branch
            %164 = sbr.rel (0) target = $region36
          $region35: #{hourglass_forward.8} parent=31 // pred_region
            // Predicated region
            $region37: #{hourglass_forward.8} parent=35 // pred_check
              _
            $region38: #{hourglass_forward.8} parent=35 // pred_check_branch
              %166 = sbr.rel (0) target = $region40
            $region39: #{hourglass_forward.8} parent=35 // pred_region
              // Predicated region
              $region52: #{hourglass_forward.8} parent=39 // pred_check
                _
              $region53: #{hourglass_forward.8} parent=39 // pred_check_branch
                %208 = sbr.rel (0) target = $region55
              $region54: #{hourglass_forward.8} parent=39 // pred_region
                loop: start=0, step=1, limit=1
                $region56: #{hourglass_forward.8} parent=54 // loop_pre_header
                  _
                $region57: #{hourglass_forward.8} parent=54 // loop_header
                  %s210 = sphi 0, %s214
                  %p211 = scmp.ge.s32.totalorder %s210, 1
                  %s215 = sphi %s162, %s162
                  %s216 = sphi %s159, %s159
                $region58: #{hourglass_forward.8} parent=54 // loop_header_branch
                  %213 = sbr.rel (%p211) target = $region62
                $region59: #{hourglass_forward.8} parent=54 // loop_body
                  %v217 = vld [vmem:[%s215] sm:$0xff]
                  %218 = vst [vmem:[%s216] sm:$0xff] %v217
                  %v219 = vld [vmem:[%s215 + $0x10] sm:$0xff]
                  %220 = vst [vmem:[%s216 + $0x8] sm:$0xff] %v219
                  %v221 = vld [vmem:[%s215 + $0x20] sm:$0xff]
                  %222 = vst [vmem:[%s216 + $0x10] sm:$0xff] %v221
                  %v223 = vld [vmem:[%s215 + $0x30] sm:$0xff]
                  %224 = vst [vmem:[%s216 + $0x18] sm:$0xff] %v223
                  %v225 = vld [vmem:[%s215 + $0x40] sm:$0xff]
                  %226 = vst [vmem:[%s216 + $0x20] sm:$0xff] %v225
                  %v227 = vld [vmem:[%s215 + $0x50] sm:$0xff]
                  %228 = vst [vmem:[%s216 + $0x28] sm:$0xff] %v227
                  %v229 = vld [vmem:[%s215 + $0x60] sm:$0xff]
                  %230 = vst [vmem:[%s216 + $0x30] sm:$0xff] %v229
                  %v231 = vld [vmem:[%s215 + $0x70] sm:$0xff]
                  %232 = vst [vmem:[%s216 + $0x38] sm:$0xff] %v231
                  %v233 = vld [vmem:[%s215 + $0x80] sm:$0xff]
                  %234 = vst [vmem:[%s216 + $0x40] sm:$0xff] %v233
                  %v235 = vld [vmem:[%s215 + $0x90] sm:$0xff]
                  %236 = vst [vmem:[%s216 + $0x48] sm:$0xff] %v235
                  %v237 = vld [vmem:[%s215 + $0xa0] sm:$0xff]
                  %238 = vst [vmem:[%s216 + $0x50] sm:$0xff] %v237
                  %v239 = vld [vmem:[%s215 + $0xb0] sm:$0xff]
                  %240 = vst [vmem:[%s216 + $0x58] sm:$0xff] %v239
                  %v241 = vld [vmem:[%s215 + $0xc0] sm:$0xff]
                  %242 = vst [vmem:[%s216 + $0x60] sm:$0xff] %v241
                  %v243 = vld [vmem:[%s215 + $0xd0] sm:$0xff]
                  %244 = vst [vmem:[%s216 + $0x68] sm:$0xff] %v243
                $region60: #{hourglass_forward.8} parent=54 // loop_footer
                  %s214 = sadd.s32 1, %s210
                $region61: #{hourglass_forward.8} parent=54 // loop_footer_branch
                  %209 = sbr.rel target = $region57
                $region62: #{hourglass_forward.8} parent=54 // loop_exit
                  _
              $region55: #{hourglass_forward.8} parent=39 // pred_fallthru
                _
              // Predicated region
              $region63: #{hourglass_forward.8} parent=39 // pred_check
                _
              $region64: #{hourglass_forward.8} parent=39 // pred_check_branch
                %246 = sbr.rel target = $region66
              $region65: #{hourglass_forward.8} parent=39 // pred_region
                _
              $region66: #{hourglass_forward.8} parent=39 // pred_fallthru
                _
            $region40: #{hourglass_forward.8} parent=35 // pred_fallthru
              _
            // Predicated region
            $region41: #{hourglass_forward.8} parent=35 // pred_check
              _
            $region42: #{hourglass_forward.8} parent=35 // pred_check_branch
              %168 = sbr.rel target = $region44
            $region43: #{hourglass_forward.8} parent=35 // pred_region
              %s170 = ssub.s32 256, 1
              loop: start=0, step=1, limit=1
              $region45: #{hourglass_forward.8} parent=43 // loop_pre_header
                _
              $region46: #{hourglass_forward.8} parent=43 // loop_header
                %s172 = sphi 0, %s176
                %p173 = scmp.ge.s32.totalorder %s172, 1
                %s177 = sphi %s162, %s162
                %s178 = sphi %s159, %s159
              $region47: #{hourglass_forward.8} parent=43 // loop_header_branch
                %175 = sbr.rel (%p173) target = $region51
              $region48: #{hourglass_forward.8} parent=43 // loop_body
                %v179 = vld [vmem:[%s177] sm:%s170]
                %180 = vst [vmem:[%s178] sm:%s170] %v179
                %v181 = vld [vmem:[%s177 + $0x10] sm:%s170]
                %182 = vst [vmem:[%s178 + $0x8] sm:%s170] %v181
                %v183 = vld [vmem:[%s177 + $0x20] sm:%s170]
                %184 = vst [vmem:[%s178 + $0x10] sm:%s170] %v183
                %v185 = vld [vmem:[%s177 + $0x30] sm:%s170]
                %186 = vst [vmem:[%s178 + $0x18] sm:%s170] %v185
                %v187 = vld [vmem:[%s177 + $0x40] sm:%s170]
                %188 = vst [vmem:[%s178 + $0x20] sm:%s170] %v187
                %v189 = vld [vmem:[%s177 + $0x50] sm:%s170]
                %190 = vst [vmem:[%s178 + $0x28] sm:%s170] %v189
                %v191 = vld [vmem:[%s177 + $0x60] sm:%s170]
                %192 = vst [vmem:[%s178 + $0x30] sm:%s170] %v191
                %v193 = vld [vmem:[%s177 + $0x70] sm:%s170]
                %194 = vst [vmem:[%s178 + $0x38] sm:%s170] %v193
                %v195 = vld [vmem:[%s177 + $0x80] sm:%s170]
                %196 = vst [vmem:[%s178 + $0x40] sm:%s170] %v195
                %v197 = vld [vmem:[%s177 + $0x90] sm:%s170]
                %198 = vst [vmem:[%s178 + $0x48] sm:%s170] %v197
                %v199 = vld [vmem:[%s177 + $0xa0] sm:%s170]
                %200 = vst [vmem:[%s178 + $0x50] sm:%s170] %v199
                %v201 = vld [vmem:[%s177 + $0xb0] sm:%s170]
                %202 = vst [vmem:[%s178 + $0x58] sm:%s170] %v201
                %v203 = vld [vmem:[%s177 + $0xc0] sm:%s170]
                %204 = vst [vmem:[%s178 + $0x60] sm:%s170] %v203
                %v205 = vld [vmem:[%s177 + $0xd0] sm:%s170]
                %206 = vst [vmem:[%s178 + $0x68] sm:%s170] %v205
              $region49: #{hourglass_forward.8} parent=43 // loop_footer
                %s176 = sadd.s32 1, %s172
              $region50: #{hourglass_forward.8} parent=43 // loop_footer_branch
                %171 = sbr.rel target = $region46
              $region51: #{hourglass_forward.8} parent=43 // loop_exit
                _
            $region44: #{hourglass_forward.8} parent=35 // pred_fallthru
              _
          $region36: #{hourglass_forward.8} parent=31 // pred_fallthru
            _
          %247 = vnop
        $region32: #{hourglass_forward.8} parent=27 // pred_fallthru
          _
      $region28: #{hourglass_forward.8} parent=5 // pred_fallthru
        _
      %p248 = scmp.le.s32.totalorder 1, %s10
      %p249 = scmp.lt.s32.totalorder %s10, 3
      %p250 = pnand %p248, %p249
      %p251 = pneg %p250
      // Predicated region
      $region67: #{hourglass_forward.8} parent=5 // pred_check
        _
      $region68: #{hourglass_forward.8} parent=5 // pred_check_branch
        %253 = sbr.rel (%p250) target = $region70
      $region69: #{hourglass_forward.8} parent=5 // pred_region
        %s254 = ssub.s32 %s10, 1
        %s255 = sand.u32 %s44, 1
        %s256 = sand.u32 %s44, 1
        %s257 = smul.addr %s256, 112
        %s258 = scalar_lea.vmem [#allocation2], %s257
        // Predicated region
        $region71: #{hourglass_forward.8} parent=69 // pred_check
          %p259 = pneg %p57
        $region72: #{hourglass_forward.8} parent=69 // pred_check_branch
          %261 = sbr.rel (%p259) target = $region74
        $region73: #{hourglass_forward.8} parent=69 // pred_region
          _
        $region74: #{hourglass_forward.8} parent=69 // pred_fallthru
          _
        %p262 = pneg %p31
        %p263 = pneg %p28
        %s264 = sand.u32 %s44, 1
        %s265 = sand.u32 %s44, 1
        %s266 = smul.addr %s265, 112
        %s267 = scalar_lea.vmem [#allocation2], %s266
        %p268 = pneg %p57
        %p269 = pneg %p54
        %p270 = pneg %p78
        %p271 = pneg %p75
        %p272 = pneg %p99
        %p273 = pneg %p96
        %p274 = pneg %p125
        %p275 = pneg %p122
        %s276 = smul.u32 2, %s15
        %p277 = scmp.lt.s32.totalorder %s276, 3
        %s278 = scalar_select %p277, %s276, 3
        %s279 = smul.addr %s278, 8
        %s280 = scalar_lea.vmem %s4, %s279
        %s281 = smul.u32 2, %s15
        %s282 = smul.u32 2, %s15
        %p283 = scmp.lt.s32.totalorder %s282, 3
        %s284 = scalar_select %p283, %s282, 3
        %s285 = smul.addr %s284, 8
        %s286 = scalar_lea.vmem %s4, %s285
        %s287 = smul.u32 2, %s15
        %v289 = vld [vmem:[%s0] sm:$0xf]
        %v290 = vld [vmem:[%s258] sm:$0xff]
        %v291 = vld [vmem:[%s258 + $0x8] sm:$0xff]
        %v292 = vld [vmem:[%s258 + $0x10] sm:$0xff]
        %v293 = vld [vmem:[%s258 + $0x18] sm:$0xff]
        %v294 = vld [vmem:[%s258 + $0x20] sm:$0xff]
        %v295 = vld [vmem:[%s258 + $0x28] sm:$0xff]
        %v296 = vld [vmem:[%s258 + $0x30] sm:$0xff]
        %v297 = vld [vmem:[%s258 + $0x38] sm:$0xff]
        %v298 = vld [vmem:[%s258 + $0x40] sm:$0xff]
        %v299 = vld [vmem:[%s258 + $0x48] sm:$0xff]
        %v300 = vld [vmem:[%s258 + $0x50] sm:$0xff]
        %v301 = vld [vmem:[%s258 + $0x58] sm:$0xff]
        %v302 = vld [vmem:[%s258 + $0x60] sm:$0xff]
        %v303 = vld [vmem:[%s258 + $0x68] sm:$0xff]
        %v318 = vunpack.c.l.b16 %v290
        %v319 = vunpack.c.h.b16 %v290
        %v320 = vunpack.c.l.b16 %v291
        %v321 = vunpack.c.h.b16 %v291
        %v322 = vunpack.c.l.b16 %v292
        %v323 = vunpack.c.h.b16 %v292
        %v324 = vunpack.c.l.b16 %v293
        %v325 = vunpack.c.h.b16 %v293
        %v326 = vunpack.c.l.b16 %v294
        %v327 = vunpack.c.h.b16 %v294
        %v328 = vunpack.c.l.b16 %v295
        %v329 = vunpack.c.h.b16 %v295
        %v330 = vunpack.c.l.b16 %v296
        %v331 = vunpack.c.h.b16 %v296
        %v332 = vunpack.c.l.b16 %v297
        %v333 = vunpack.c.h.b16 %v297
        %v334 = vunpack.c.l.b16 %v298
        %v335 = vunpack.c.h.b16 %v298
        %v336 = vunpack.c.l.b16 %v299
        %v337 = vunpack.c.h.b16 %v299
        %v338 = vunpack.c.l.b16 %v300
        %v339 = vunpack.c.h.b16 %v300
        %v340 = vunpack.c.l.b16 %v301
        %v341 = vunpack.c.h.b16 %v301
        %v342 = vunpack.c.l.b16 %v302
        %v343 = vunpack.c.h.b16 %v302
        %v344 = vunpack.c.l.b16 %v303
        %v345 = vunpack.c.h.b16 %v303
        %v346 = vpack.c.b16 %v320, %v318
        %v347 = vpack.c.b16 %v321, %v319
        %v348 = vpack.c.b16 %v324, %v322
        %v349 = vpack.c.b16 %v325, %v323
        %v350 = vpack.c.b16 %v328, %v326
        %v351 = vpack.c.b16 %v329, %v327
        %v352 = vpack.c.b16 %v332, %v330
        %v353 = vpack.c.b16 %v333, %v331
        %v354 = vpack.c.b16 %v336, %v334
        %v355 = vpack.c.b16 %v337, %v335
        %v356 = vpack.c.b16 %v340, %v338
        %v357 = vpack.c.b16 %v341, %v339
        %v358 = vpack.c.b16 %v344, %v342
        %v359 = vpack.c.b16 %v345, %v343
        %vm374 = vcmask 916480
        %v376 = vsel %vm374, %v289, 0
        %378 = vmatpush.bf16.msra.mxu0 0
        %379 = vmatpush.bf16.msra.mxu0 %v358
        %380 = vmatpush.bf16.msra.mxu0 %v356
        %381 = vmatpush.bf16.msra.mxu0 %v354
        %382 = vmatpush.bf16.msra.mxu0 %v352
        %383 = vmatpush.bf16.msra.mxu0 %v350
        %384 = vmatpush.bf16.msra.mxu0 %v348
        %385 = vmatpush.bf16.msra.mxu0 %v346
        %386 = vmatmul.bf16.gmra.mxu0 %v376
        %v387 = vpop.f32.mrf.mxu0
        %v388 = vadd.f32 0.0, %v387
        %v389 = vpop.f32.mrf.mxu0
        %390 = vdwg.mxu0
        %391 = vmatpush.bf16.msra.mxu0 0
        %392 = vmatpush.bf16.msra.mxu0 %v359
        %393 = vmatpush.bf16.msra.mxu0 %v357
        %394 = vmatpush.bf16.msra.mxu0 %v355
        %395 = vmatpush.bf16.msra.mxu0 %v353
        %396 = vmatpush.bf16.msra.mxu0 %v351
        %397 = vmatpush.bf16.msra.mxu0 %v349
        %398 = vmatpush.bf16.msra.mxu0 %v347
        %399 = vmatmul.bf16.gmra.mxu0 %v376
        %v400 = vpop.f32.mrf.mxu0
        %v401 = vadd.f32 0.0, %v400
        %v402 = vpop.f32.mrf.mxu0
        %403 = vdwg.mxu0
        %v404 = vld [vmem:[%s2] sm:$0xff]
        %406 = vset.pattern.permute.xlu0 0
        %407 = vperm.xlu0 %406, %v404
        %v408 = vpop.permute.xlu0 %407
        %v410 = vmul.f32 %v388, %v408
        %v411 = vmul.f32 %v401, %v408
        %v412 = vld [vmem:[%s3] sm:$0xff]
        %414 = vset.pattern.permute.xlu0 0
        %415 = vperm.xlu0 %414, %v412
        %v416 = vpop.permute.xlu0 %415
        %v418 = vadd.f32 %v410, %v416
        %v419 = vadd.f32 %v411, %v416
        %v420 = vmax.f32 %v418, 0.0
        %v421 = vmax.f32 %v419, 0.0
        %422 = vst [vmem:[%s286] sm:$0xff] %v420
        %423 = vst [vmem:[%s286 + $0x8] sm:$0xff] %v421
        %s424 = smul.u32 2, %s15
        %p425 = scmp.lt.s32.totalorder %s424, 3
        %s426 = scalar_select %p425, %s424, 3
        %s427 = smul.addr %s426, 8
        %s428 = scalar_lea.vmem %s4, %s427
        // Predicated region
        $region75: #{hourglass_forward.8} parent=69 // pred_check
          %p429 = pneg %p122
        $region76: #{hourglass_forward.8} parent=69 // pred_check_branch
          %431 = sbr.rel (%p429) target = $region78
        $region77: #{hourglass_forward.8} parent=69 // pred_region
          %s432 = smul.u32 2, %s15
        $region78: #{hourglass_forward.8} parent=69 // pred_fallthru
          _
      $region70: #{hourglass_forward.8} parent=5 // pred_fallthru
        _
      %p433 = scmp.le.s32.totalorder 2, %s10
      // Predicated region
      $region79: #{hourglass_forward.8} parent=5 // pred_check
        %p434 = pneg %p433
      $region80: #{hourglass_forward.8} parent=5 // pred_check_branch
        %436 = sbr.rel (%p434) target = $region82
      $region81: #{hourglass_forward.8} parent=5 // pred_region
        %s437 = ssub.s32 %s10, 2
        // Predicated region
        $region83: #{hourglass_forward.8} parent=81 // pred_check
          %p438 = pneg %p128
        $region84: #{hourglass_forward.8} parent=81 // pred_check_branch
          %440 = sbr.rel (%p438) target = $region86
        $region85: #{hourglass_forward.8} parent=81 // pred_region
          %s441 = smul.u32 2, %s16
          %p442 = scmp.lt.s32.totalorder %s441, 3
          %s443 = scalar_select %p442, %s441, 3
          %s444 = smul.addr %s443, 8
          %s445 = scalar_lea.vmem %s4, %s444
        $region86: #{hourglass_forward.8} parent=81 // pred_fallthru
          _
      $region82: #{hourglass_forward.8} parent=5 // pred_fallthru
        _
    $region6: #{hourglass_forward.8} parent=1 // loop_footer
      %s14 = sadd.s32 1, %s10
    $region7: #{hourglass_forward.8} parent=1 // loop_footer_branch
      %9 = sbr.rel target = $region3
    $region8: #{hourglass_forward.8} parent=1 // loop_exit
      _

// kernel: hourglass_forward.9
$region0: #{hourglass_forward.9}
  #allocation0 [shape = 'u32[]', space=smem, size = 0x4, offset = 0x4, fixed_abs, tag = 'smem constant byte address 0x4 - core index']
  #allocation1 [shape = 'u32[72,128]{1,0:T(1,128)}', space=vmem, size = 0x9000, scoped, tag = 'internal scratch']
  %s0 = inlined_call_operand.vmem [shape: bf16[8,224], index: 0, kind: input, shape index: {}]
  %s1 = inlined_call_operand.vmem [shape: bf16[224,512], index: 1, kind: input, shape index: {}]
  %s2 = inlined_call_operand.vmem [shape: f32[8,1], index: 2, kind: input, shape index: {}]
  %s3 = inlined_call_operand.vmem [shape: f32[8,1], index: 3, kind: input, shape index: {}]
  %s4 = inlined_call_operand.vmem [shape: f32[8,512], index: 4, kind: output, shape index: {}]
  %s5 = sld [smem:[#allocation0]]
  $region87: #{hourglass_forward.9} parent=0
    _
  %s7 = ssub.s32 1, %s5
  %s8 = scalar_select 0, %s7, %s5
  $region1: #{hourglass_forward.9} parent=0
    #allocation2 [shape = 'u8[229376]{0}', space=vmem, size = 0x38000, scoped, tag = 'input window, operand 1']
    loop: start=0, step=1, limit=4
    $region2: #{hourglass_forward.9} parent=1 // loop_pre_header
      _
    $region3: #{hourglass_forward.9} parent=1 // loop_header
      %s10 = sphi 0, %s14
      %p11 = scmp.ge.s32.totalorder %s10, 4
      %s18 = sphi 0, %s18
      %s20 = sphi 0, %s18
      %s21 = sphi 0, %s20
      %s35 = sphi 0, %s21
      %s41 = sphi 0, %s43
      %s44 = sphi 0, %s41
      %s45 = sphi 0, %s44
      %s61 = sphi 0, %s45
      %s65 = sphi 0, %s65
      %s67 = sphi 0, %s65
      %s68 = sphi 0, %s67
      %s82 = sphi 0, %s68
      %s86 = sphi 0, %s86
      %s88 = sphi 0, %s86
      %s89 = sphi 0, %s88
      %s103 = sphi 0, %s89
      %s109 = sphi 0, %s111
      %s112 = sphi 0, %s109
      %s113 = sphi 0, %s112
      %s129 = sphi 0, %s113
    $region4: #{hourglass_forward.9} parent=1 // loop_header_branch
      %13 = sbr.rel (%p11) target = $region8
    $region5: #{hourglass_forward.9} parent=1 // loop_body
      %s15 = ssub.s32 %s10, 1
      %s16 = ssub.s32 %s10, 2
      %s17 = sadd.s32 %s10, 1
      %s19 = sadd.s32 %s18, 1
      %p22 = scmp.eq.s32.totalorder %s10, 1
      %p23 = scmp.ne.s32.totalorder %s18, %s20
      %p24 = scmp.eq.s32.totalorder %s10, 0
      %p25 = por %p23, %p24
      %p26 = scmp.ne.s32.totalorder %s18, %s20
      %p27 = scmp.eq.s32.totalorder %s15, 1
      %p28 = por %p26, %p27
      %p29 = scmp.ne.s32.totalorder %s20, %s21
      %p30 = scmp.eq.s32.totalorder %s15, 0
      %p31 = por %p29, %p30
      %p32 = scmp.ne.s32.totalorder %s20, %s21
      %p33 = scmp.eq.s32.totalorder %s16, 1
      %p34 = por %p32, %p33
      %p36 = scmp.ne.s32.totalorder %s21, %s35
      %p37 = scmp.eq.s32.totalorder %s16, 0
      %p38 = por %p36, %p37
      %s39 = ssub.s32 %s10, %s17
      %p40 = scmp.eq.s32.totalorder %s39, 0
      %s42 = sadd.s32 %s41, 1
      %s43 = scalar_select %p40, %s41, %s42
      %p46 = pneg %p40
      %p47 = scmp.eq.s32.totalorder %s10, 1
      %p48 = por %p46, %p47
      %p49 = scmp.ne.s32.totalorder %s41, %s44
      %p50 = scmp.eq.s32.totalorder %s10, 0
      %p51 = por %p49, %p50
      %p52 = scmp.ne.s32.totalorder %s41, %s44
      %p53 = scmp.eq.s32.totalorder %s15, 1
      %p54 = por %p52, %p53
      %p55 = scmp.ne.s32.totalorder %s44, %s45
      %p56 = scmp.eq.s32.totalorder %s15, 0
      %p57 = por %p55, %p56
      %p58 = scmp.ne.s32.totalorder %s44, %s45
      %p59 = scmp.eq.s32.totalorder %s16, 1
      %p60 = por %p58, %p59
      %p62 = scmp.ne.s32.totalorder %s45, %s61
      %p63 = scmp.eq.s32.totalorder %s16, 0
      %p64 = por %p62, %p63
      %s66 = sadd.s32 %s65, 1
      %p69 = scmp.eq.s32.totalorder %s10, 1
      %p70 = scmp.ne.s32.totalorder %s65, %s67
      %p71 = scmp.eq.s32.totalorder %s10, 0
      %p72 = por %p70, %p71
      %p73 = scmp.ne.s32.totalorder %s65, %s67
      %p74 = scmp.eq.s32.totalorder %s15, 1
      %p75 = por %p73, %p74
      %p76 = scmp.ne.s32.totalorder %s67, %s68
      %p77 = scmp.eq.s32.totalorder %s15, 0
      %p78 = por %p76, %p77
      %p79 = scmp.ne.s32.totalorder %s67, %s68
      %p80 = scmp.eq.s32.totalorder %s16, 1
      %p81 = por %p79, %p80
      %p83 = scmp.ne.s32.totalorder %s68, %s82
      %p84 = scmp.eq.s32.totalorder %s16, 0
      %p85 = por %p83, %p84
      %s87 = sadd.s32 %s86, 1
      %p90 = scmp.eq.s32.totalorder %s10, 1
      %p91 = scmp.ne.s32.totalorder %s86, %s88
      %p92 = scmp.eq.s32.totalorder %s10, 0
      %p93 = por %p91, %p92
      %p94 = scmp.ne.s32.totalorder %s86, %s88
      %p95 = scmp.eq.s32.totalorder %s15, 1
      %p96 = por %p94, %p95
      %p97 = scmp.ne.s32.totalorder %s88, %s89
      %p98 = scmp.eq.s32.totalorder %s15, 0
      %p99 = por %p97, %p98
      %p100 = scmp.ne.s32.totalorder %s88, %s89
      %p101 = scmp.eq.s32.totalorder %s16, 1
      %p102 = por %p100, %p101
      %p104 = scmp.ne.s32.totalorder %s89, %s103
      %p105 = scmp.eq.s32.totalorder %s16, 0
      %p106 = por %p104, %p105
      %s107 = ssub.s32 %s10, %s17
      %p108 = scmp.eq.s32.totalorder %s107, 0
      %s110 = sadd.s32 %s109, 1
      %s111 = scalar_select %p108, %s109, %s110
      %p114 = pneg %p108
      %p115 = scmp.eq.s32.totalorder %s10, 1
      %p116 = por %p114, %p115
      %p117 = scmp.ne.s32.totalorder %s109, %s112
      %p118 = scmp.eq.s32.totalorder %s10, 0
      %p119 = por %p117, %p118
      %p120 = scmp.ne.s32.totalorder %s109, %s112
      %p121 = scmp.eq.s32.totalorder %s15, 1
      %p122 = por %p120, %p121
      %p123 = scmp.ne.s32.totalorder %s112, %s113
      %p124 = scmp.eq.s32.totalorder %s15, 0
      %p125 = por %p123, %p124
      %p126 = scmp.ne.s32.totalorder %s112, %s113
      %p127 = scmp.eq.s32.totalorder %s16, 1
      %p128 = por %p126, %p127
      %p130 = scmp.ne.s32.totalorder %s113, %s129
      %p131 = scmp.eq.s32.totalorder %s16, 0
      %p132 = por %p130, %p131
      %p133 = scmp.le.s32.totalorder 1, %s10
      %p134 = scmp.lt.s32.totalorder %s10, 3
      %p135 = pnand %p133, %p134
      %p136 = pneg %p135
      // Predicated region
      $region9: #{hourglass_forward.9} parent=5 // pred_check
        _
      $region10: #{hourglass_forward.9} parent=5 // pred_check_branch
        %138 = sbr.rel (%p135) target = $region12
      $region11: #{hourglass_forward.9} parent=5 // pred_region
        %s139 = ssub.s32 %s10, 1
        // Predicated region
        $region13: #{hourglass_forward.9} parent=11 // pred_check
          %p140 = pneg %p31
        $region14: #{hourglass_forward.9} parent=11 // pred_check_branch
          %142 = sbr.rel (%p140) target = $region16
        $region15: #{hourglass_forward.9} parent=11 // pred_region
          _
        $region16: #{hourglass_forward.9} parent=11 // pred_fallthru
          _
        // Predicated region
        $region17: #{hourglass_forward.9} parent=11 // pred_check
          %p143 = pneg %p78
        $region18: #{hourglass_forward.9} parent=11 // pred_check_branch
          %145 = sbr.rel (%p143) target = $region20
        $region19: #{hourglass_forward.9} parent=11 // pred_region
          _
        $region20: #{hourglass_forward.9} parent=11 // pred_fallthru
          _
        // Predicated region
        $region21: #{hourglass_forward.9} parent=11 // pred_check
          %p146 = pneg %p99
        $region22: #{hourglass_forward.9} parent=11 // pred_check_branch
          %148 = sbr.rel (%p146) target = $region24
        $region23: #{hourglass_forward.9} parent=11 // pred_region
          _
        $region24: #{hourglass_forward.9} parent=11 // pred_fallthru
          _
      $region12: #{hourglass_forward.9} parent=5 // pred_fallthru
        _
      %p149 = scmp.lt.s32.totalorder %s10, 2
      // Predicated region
      $region25: #{hourglass_forward.9} parent=5 // pred_check
        %p150 = pneg %p149
      $region26: #{hourglass_forward.9} parent=5 // pred_check_branch
        %152 = sbr.rel (%p150) target = $region28
      $region27: #{hourglass_forward.9} parent=5 // pred_region
        // Predicated region
        $region29: #{hourglass_forward.9} parent=27 // pred_check
          %p153 = pneg %p51
        $region30: #{hourglass_forward.9} parent=27 // pred_check_branch
          %155 = sbr.rel (%p153) target = $region32
        $region31: #{hourglass_forward.9} parent=27 // pred_region
          %s156 = sand.u32 %s41, 1
          %s157 = sand.u32 %s41, 1
          %s158 = smul.addr %s157, 224
          %s159 = scalar_lea.vmem [#allocation2], %s158
          %s160 = smul.u32 2, %s10
          %s161 = smul.addr %s160, 4
          %s162 = scalar_lea.vmem %s1, %s161
          // Predicated region
          $region33: #{hourglass_forward.9} parent=31 // pred_check
            _
          $region34: #{hourglass_forward.9} parent=31 // pred_check_branch
            %164 = sbr.rel (0) target = $region36
          $region35: #{hourglass_forward.9} parent=31 // pred_region
            // Predicated region
            $region37: #{hourglass_forward.9} parent=35 // pred_check
              _
            $region38: #{hourglass_forward.9} parent=35 // pred_check_branch
              %166 = sbr.rel (0) target = $region40
            $region39: #{hourglass_forward.9} parent=35 // pred_region
              // Predicated region
              $region52: #{hourglass_forward.9} parent=39 // pred_check
                _
              $region53: #{hourglass_forward.9} parent=39 // pred_check_branch
                %236 = sbr.rel (0) target = $region55
              $region54: #{hourglass_forward.9} parent=39 // pred_region
                loop: start=0, step=1, limit=1
                $region56: #{hourglass_forward.9} parent=54 // loop_pre_header
                  _
                $region57: #{hourglass_forward.9} parent=54 // loop_header
                  %s238 = sphi 0, %s242
                  %p239 = scmp.ge.s32.totalorder %s238, 1
                  %s243 = sphi %s162, %s162
                  %s244 = sphi %s159, %s159
                $region58: #{hourglass_forward.9} parent=54 // loop_header_branch
                  %241 = sbr.rel (%p239) target = $region62
                $region59: #{hourglass_forward.9} parent=54 // loop_body
                  %v245 = vld [vmem:[%s243] sm:$0xff]
                  %246 = vst [vmem:[%s244] sm:$0xff] %v245
                  %v247 = vld [vmem:[%s243 + $0x10] sm:$0xff]
                  %248 = vst [vmem:[%s244 + $0x8] sm:$0xff] %v247
                  %v249 = vld [vmem:[%s243 + $0x20] sm:$0xff]
                  %250 = vst [vmem:[%s244 + $0x10] sm:$0xff] %v249
                  %v251 = vld [vmem:[%s243 + $0x30] sm:$0xff]
                  %252 = vst [vmem:[%s244 + $0x18] sm:$0xff] %v251
                  %v253 = vld [vmem:[%s243 + $0x40] sm:$0xff]
                  %254 = vst [vmem:[%s244 + $0x20] sm:$0xff] %v253
                  %v255 = vld [vmem:[%s243 + $0x50] sm:$0xff]
                  %256 = vst [vmem:[%s244 + $0x28] sm:$0xff] %v255
                  %v257 = vld [vmem:[%s243 + $0x60] sm:$0xff]
                  %258 = vst [vmem:[%s244 + $0x30] sm:$0xff] %v257
                  %v259 = vld [vmem:[%s243 + $0x70] sm:$0xff]
                  %260 = vst [vmem:[%s244 + $0x38] sm:$0xff] %v259
                  %v261 = vld [vmem:[%s243 + $0x80] sm:$0xff]
                  %262 = vst [vmem:[%s244 + $0x40] sm:$0xff] %v261
                  %v263 = vld [vmem:[%s243 + $0x90] sm:$0xff]
                  %264 = vst [vmem:[%s244 + $0x48] sm:$0xff] %v263
                  %v265 = vld [vmem:[%s243 + $0xa0] sm:$0xff]
                  %266 = vst [vmem:[%s244 + $0x50] sm:$0xff] %v265
                  %v267 = vld [vmem:[%s243 + $0xb0] sm:$0xff]
                  %268 = vst [vmem:[%s244 + $0x58] sm:$0xff] %v267
                  %v269 = vld [vmem:[%s243 + $0xc0] sm:$0xff]
                  %270 = vst [vmem:[%s244 + $0x60] sm:$0xff] %v269
                  %v271 = vld [vmem:[%s243 + $0xd0] sm:$0xff]
                  %272 = vst [vmem:[%s244 + $0x68] sm:$0xff] %v271
                  %v273 = vld [vmem:[%s243 + $0xe0] sm:$0xff]
                  %274 = vst [vmem:[%s244 + $0x70] sm:$0xff] %v273
                  %v275 = vld [vmem:[%s243 + $0xf0] sm:$0xff]
                  %276 = vst [vmem:[%s244 + $0x78] sm:$0xff] %v275
                  %v277 = vld [vmem:[%s243 + $0x100] sm:$0xff]
                  %278 = vst [vmem:[%s244 + $0x80] sm:$0xff] %v277
                  %v279 = vld [vmem:[%s243 + $0x110] sm:$0xff]
                  %280 = vst [vmem:[%s244 + $0x88] sm:$0xff] %v279
                  %v281 = vld [vmem:[%s243 + $0x120] sm:$0xff]
                  %282 = vst [vmem:[%s244 + $0x90] sm:$0xff] %v281
                  %v283 = vld [vmem:[%s243 + $0x130] sm:$0xff]
                  %284 = vst [vmem:[%s244 + $0x98] sm:$0xff] %v283
                  %v285 = vld [vmem:[%s243 + $0x140] sm:$0xff]
                  %286 = vst [vmem:[%s244 + $0xa0] sm:$0xff] %v285
                  %v287 = vld [vmem:[%s243 + $0x150] sm:$0xff]
                  %288 = vst [vmem:[%s244 + $0xa8] sm:$0xff] %v287
                  %v289 = vld [vmem:[%s243 + $0x160] sm:$0xff]
                  %290 = vst [vmem:[%s244 + $0xb0] sm:$0xff] %v289
                  %v291 = vld [vmem:[%s243 + $0x170] sm:$0xff]
                  %292 = vst [vmem:[%s244 + $0xb8] sm:$0xff] %v291
                  %v293 = vld [vmem:[%s243 + $0x180] sm:$0xff]
                  %294 = vst [vmem:[%s244 + $0xc0] sm:$0xff] %v293
                  %v295 = vld [vmem:[%s243 + $0x190] sm:$0xff]
                  %296 = vst [vmem:[%s244 + $0xc8] sm:$0xff] %v295
                  %v297 = vld [vmem:[%s243 + $0x1a0] sm:$0xff]
                  %298 = vst [vmem:[%s244 + $0xd0] sm:$0xff] %v297
                  %v299 = vld [vmem:[%s243 + $0x1b0] sm:$0xff]
                  %300 = vst [vmem:[%s244 + $0xd8] sm:$0xff] %v299
                $region60: #{hourglass_forward.9} parent=54 // loop_footer
                  %s242 = sadd.s32 1, %s238
                $region61: #{hourglass_forward.9} parent=54 // loop_footer_branch
                  %237 = sbr.rel target = $region57
                $region62: #{hourglass_forward.9} parent=54 // loop_exit
                  _
              $region55: #{hourglass_forward.9} parent=39 // pred_fallthru
                _
              // Predicated region
              $region63: #{hourglass_forward.9} parent=39 // pred_check
                _
              $region64: #{hourglass_forward.9} parent=39 // pred_check_branch
                %302 = sbr.rel target = $region66
              $region65: #{hourglass_forward.9} parent=39 // pred_region
                _
              $region66: #{hourglass_forward.9} parent=39 // pred_fallthru
                _
            $region40: #{hourglass_forward.9} parent=35 // pred_fallthru
              _
            // Predicated region
            $region41: #{hourglass_forward.9} parent=35 // pred_check
              _
            $region42: #{hourglass_forward.9} parent=35 // pred_check_branch
              %168 = sbr.rel target = $region44
            $region43: #{hourglass_forward.9} parent=35 // pred_region
              %s170 = ssub.s32 256, 1
              loop: start=0, step=1, limit=1
              $region45: #{hourglass_forward.9} parent=43 // loop_pre_header
                _
              $region46: #{hourglass_forward.9} parent=43 // loop_header
                %s172 = sphi 0, %s176
                %p173 = scmp.ge.s32.totalorder %s172, 1
                %s177 = sphi %s162, %s162
                %s178 = sphi %s159, %s159
              $region47: #{hourglass_forward.9} parent=43 // loop_header_branch
                %175 = sbr.rel (%p173) target = $region51
              $region48: #{hourglass_forward.9} parent=43 // loop_body
                %v179 = vld [vmem:[%s177] sm:%s170]
                %180 = vst [vmem:[%s178] sm:%s170] %v179
                %v181 = vld [vmem:[%s177 + $0x10] sm:%s170]
                %182 = vst [vmem:[%s178 + $0x8] sm:%s170] %v181
                %v183 = vld [vmem:[%s177 + $0x20] sm:%s170]
                %184 = vst [vmem:[%s178 + $0x10] sm:%s170] %v183
                %v185 = vld [vmem:[%s177 + $0x30] sm:%s170]
                %186 = vst [vmem:[%s178 + $0x18] sm:%s170] %v185
                %v187 = vld [vmem:[%s177 + $0x40] sm:%s170]
                %188 = vst [vmem:[%s178 + $0x20] sm:%s170] %v187
                %v189 = vld [vmem:[%s177 + $0x50] sm:%s170]
                %190 = vst [vmem:[%s178 + $0x28] sm:%s170] %v189
                %v191 = vld [vmem:[%s177 + $0x60] sm:%s170]
                %192 = vst [vmem:[%s178 + $0x30] sm:%s170] %v191
                %v193 = vld [vmem:[%s177 + $0x70] sm:%s170]
                %194 = vst [vmem:[%s178 + $0x38] sm:%s170] %v193
                %v195 = vld [vmem:[%s177 + $0x80] sm:%s170]
                %196 = vst [vmem:[%s178 + $0x40] sm:%s170] %v195
                %v197 = vld [vmem:[%s177 + $0x90] sm:%s170]
                %198 = vst [vmem:[%s178 + $0x48] sm:%s170] %v197
                %v199 = vld [vmem:[%s177 + $0xa0] sm:%s170]
                %200 = vst [vmem:[%s178 + $0x50] sm:%s170] %v199
                %v201 = vld [vmem:[%s177 + $0xb0] sm:%s170]
                %202 = vst [vmem:[%s178 + $0x58] sm:%s170] %v201
                %v203 = vld [vmem:[%s177 + $0xc0] sm:%s170]
                %204 = vst [vmem:[%s178 + $0x60] sm:%s170] %v203
                %v205 = vld [vmem:[%s177 + $0xd0] sm:%s170]
                %206 = vst [vmem:[%s178 + $0x68] sm:%s170] %v205
                %v207 = vld [vmem:[%s177 + $0xe0] sm:%s170]
                %208 = vst [vmem:[%s178 + $0x70] sm:%s170] %v207
                %v209 = vld [vmem:[%s177 + $0xf0] sm:%s170]
                %210 = vst [vmem:[%s178 + $0x78] sm:%s170] %v209
                %v211 = vld [vmem:[%s177 + $0x100] sm:%s170]
                %212 = vst [vmem:[%s178 + $0x80] sm:%s170] %v211
                %v213 = vld [vmem:[%s177 + $0x110] sm:%s170]
                %214 = vst [vmem:[%s178 + $0x88] sm:%s170] %v213
                %v215 = vld [vmem:[%s177 + $0x120] sm:%s170]
                %216 = vst [vmem:[%s178 + $0x90] sm:%s170] %v215
                %v217 = vld [vmem:[%s177 + $0x130] sm:%s170]
                %218 = vst [vmem:[%s178 + $0x98] sm:%s170] %v217
                %v219 = vld [vmem:[%s177 + $0x140] sm:%s170]
                %220 = vst [vmem:[%s178 + $0xa0] sm:%s170] %v219
                %v221 = vld [vmem:[%s177 + $0x150] sm:%s170]
                %222 = vst [vmem:[%s178 + $0xa8] sm:%s170] %v221
                %v223 = vld [vmem:[%s177 + $0x160] sm:%s170]
                %224 = vst [vmem:[%s178 + $0xb0] sm:%s170] %v223
                %v225 = vld [vmem:[%s177 + $0x170] sm:%s170]
                %226 = vst [vmem:[%s178 + $0xb8] sm:%s170] %v225
                %v227 = vld [vmem:[%s177 + $0x180] sm:%s170]
                %228 = vst [vmem:[%s178 + $0xc0] sm:%s170] %v227
                %v229 = vld [vmem:[%s177 + $0x190] sm:%s170]
                %230 = vst [vmem:[%s178 + $0xc8] sm:%s170] %v229
                %v231 = vld [vmem:[%s177 + $0x1a0] sm:%s170]
                %232 = vst [vmem:[%s178 + $0xd0] sm:%s170] %v231
                %v233 = vld [vmem:[%s177 + $0x1b0] sm:%s170]
                %234 = vst [vmem:[%s178 + $0xd8] sm:%s170] %v233
              $region49: #{hourglass_forward.9} parent=43 // loop_footer
                %s176 = sadd.s32 1, %s172
              $region50: #{hourglass_forward.9} parent=43 // loop_footer_branch
                %171 = sbr.rel target = $region46
              $region51: #{hourglass_forward.9} parent=43 // loop_exit
                _
            $region44: #{hourglass_forward.9} parent=35 // pred_fallthru
              _
          $region36: #{hourglass_forward.9} parent=31 // pred_fallthru
            _
          %303 = vnop
        $region32: #{hourglass_forward.9} parent=27 // pred_fallthru
          _
      $region28: #{hourglass_forward.9} parent=5 // pred_fallthru
        _
      %p304 = scmp.le.s32.totalorder 1, %s10
      %p305 = scmp.lt.s32.totalorder %s10, 3
      %p306 = pnand %p304, %p305
      %p307 = pneg %p306
      // Predicated region
      $region67: #{hourglass_forward.9} parent=5 // pred_check
        _
      $region68: #{hourglass_forward.9} parent=5 // pred_check_branch
        %309 = sbr.rel (%p306) target = $region70
      $region69: #{hourglass_forward.9} parent=5 // pred_region
        %s310 = ssub.s32 %s10, 1
        %s311 = sand.u32 %s44, 1
        %s312 = sand.u32 %s44, 1
        %s313 = smul.addr %s312, 224
        %s314 = scalar_lea.vmem [#allocation2], %s313
        // Predicated region
        $region71: #{hourglass_forward.9} parent=69 // pred_check
          %p315 = pneg %p57
        $region72: #{hourglass_forward.9} parent=69 // pred_check_branch
          %317 = sbr.rel (%p315) target = $region74
        $region73: #{hourglass_forward.9} parent=69 // pred_region
          _
        $region74: #{hourglass_forward.9} parent=69 // pred_fallthru
          _
        %p318 = pneg %p31
        %p319 = pneg %p28
        %s320 = sand.u32 %s44, 1
        %s321 = sand.u32 %s44, 1
        %s322 = smul.addr %s321, 224
        %s323 = scalar_lea.vmem [#allocation2], %s322
        %p324 = pneg %p57
        %p325 = pneg %p54
        %p326 = pneg %p78
        %p327 = pneg %p75
        %p328 = pneg %p99
        %p329 = pneg %p96
        %p330 = pneg %p125
        %p331 = pneg %p122
        %s332 = smul.u32 2, %s15
        %p333 = scmp.lt.s32.totalorder %s332, 3
        %s334 = scalar_select %p333, %s332, 3
        %s335 = smul.addr %s334, 8
        %s336 = scalar_lea.vmem %s4, %s335
        %s337 = smul.u32 2, %s15
        %s338 = smul.u32 2, %s15
        %p339 = scmp.lt.s32.totalorder %s338, 3
        %s340 = scalar_select %p339, %s338, 3
        %s341 = smul.addr %s340, 8
        %s342 = scalar_lea.vmem %s4, %s341
        %s343 = smul.u32 2, %s15
        %v345 = vld [vmem:[%s0] sm:$0xff]
        %v346 = vld [vmem:[%s314] sm:$0xff]
        %v347 = vld [vmem:[%s314 + $0x8] sm:$0xff]
        %v348 = vld [vmem:[%s314 + $0x10] sm:$0xff]
        %v349 = vld [vmem:[%s314 + $0x18] sm:$0xff]
        %v350 = vld [vmem:[%s314 + $0x20] sm:$0xff]
        %v351 = vld [vmem:[%s314 + $0x28] sm:$0xff]
        %v352 = vld [vmem:[%s314 + $0x30] sm:$0xff]
        %v353 = vld [vmem:[%s314 + $0x38] sm:$0xff]
        %v354 = vld [vmem:[%s314 + $0x40] sm:$0xff]
        %v355 = vld [vmem:[%s314 + $0x48] sm:$0xff]
        %v356 = vld [vmem:[%s314 + $0x50] sm:$0xff]
        %v357 = vld [vmem:[%s314 + $0x58] sm:$0xff]
        %v358 = vld [vmem:[%s314 + $0x60] sm:$0xff]
        %v359 = vld [vmem:[%s314 + $0x68] sm:$0xff]
        %v360 = vld [vmem:[%s314 + $0x70] sm:$0xff]
        %v361 = vld [vmem:[%s314 + $0x78] sm:$0xff]
        %v362 = vld [vmem:[%s314 + $0x80] sm:$0xff]
        %v363 = vld [vmem:[%s314 + $0x88] sm:$0xff]
        %v364 = vld [vmem:[%s314 + $0x90] sm:$0xff]
        %v365 = vld [vmem:[%s314 + $0x98] sm:$0xff]
        %v366 = vld [vmem:[%s314 + $0xa0] sm:$0xff]
        %v367 = vld [vmem:[%s314 + $0xa8] sm:$0xff]
        %v368 = vld [vmem:[%s314 + $0xb0] sm:$0xff]
        %v369 = vld [vmem:[%s314 + $0xb8] sm:$0xff]
        %v370 = vld [vmem:[%s314 + $0xc0] sm:$0xff]
        %v371 = vld [vmem:[%s314 + $0xc8] sm:$0xff]
        %v372 = vld [vmem:[%s314 + $0xd0] sm:$0xff]
        %v373 = vld [vmem:[%s314 + $0xd8] sm:$0xff]
        %v375 = vunpack.c.l.b16 %v345
        %v376 = vunpack.c.h.b16 %v345
        %v377 = vpack.c.b16 %v375, %v375
        %v378 = vpack.c.b16 %v376, %v376
        %v408 = vunpack.c.l.b16 %v346
        %v409 = vunpack.c.h.b16 %v346
        %v410 = vunpack.c.l.b16 %v347
        %v411 = vunpack.c.h.b16 %v347
        %v412 = vunpack.c.l.b16 %v348
        %v413 = vunpack.c.h.b16 %v348
        %v414 = vunpack.c.l.b16 %v349
        %v415 = vunpack.c.h.b16 %v349
        %v416 = vunpack.c.l.b16 %v350
        %v417 = vunpack.c.h.b16 %v350
        %v418 = vunpack.c.l.b16 %v351
        %v419 = vunpack.c.h.b16 %v351
        %v420 = vunpack.c.l.b16 %v352
        %v421 = vunpack.c.h.b16 %v352
        %v422 = vunpack.c.l.b16 %v353
        %v423 = vunpack.c.h.b16 %v353
        %v424 = vunpack.c.l.b16 %v354
        %v425 = vunpack.c.h.b16 %v354
        %v426 = vunpack.c.l.b16 %v355
        %v427 = vunpack.c.h.b16 %v355
        %v428 = vunpack.c.l.b16 %v356
        %v429 = vunpack.c.h.b16 %v356
        %v430 = vunpack.c.l.b16 %v357
        %v431 = vunpack.c.h.b16 %v357
        %v432 = vunpack.c.l.b16 %v358
        %v433 = vunpack.c.h.b16 %v358
        %v434 = vunpack.c.l.b16 %v359
        %v435 = vunpack.c.h.b16 %v359
        %v436 = vunpack.c.l.b16 %v360
        %v437 = vunpack.c.h.b16 %v360
        %v438 = vunpack.c.l.b16 %v361
        %v439 = vunpack.c.h.b16 %v361
        %v440 = vunpack.c.l.b16 %v362
        %v441 = vunpack.c.h.b16 %v362
        %v442 = vunpack.c.l.b16 %v363
        %v443 = vunpack.c.h.b16 %v363
        %v444 = vunpack.c.l.b16 %v364
        %v445 = vunpack.c.h.b16 %v364
        %v446 = vunpack.c.l.b16 %v365
        %v447 = vunpack.c.h.b16 %v365
        %v448 = vunpack.c.l.b16 %v366
        %v449 = vunpack.c.h.b16 %v366
        %v450 = vunpack.c.l.b16 %v367
        %v451 = vunpack.c.h.b16 %v367
        %v452 = vunpack.c.l.b16 %v368
        %v453 = vunpack.c.h.b16 %v368
        %v454 = vunpack.c.l.b16 %v369
        %v455 = vunpack.c.h.b16 %v369
        %v456 = vunpack.c.l.b16 %v370
        %v457 = vunpack.c.h.b16 %v370
        %v458 = vunpack.c.l.b16 %v371
        %v459 = vunpack.c.h.b16 %v371
        %v460 = vunpack.c.l.b16 %v372
        %v461 = vunpack.c.h.b16 %v372
        %v462 = vunpack.c.l.b16 %v373
        %v463 = vunpack.c.h.b16 %v373
        %v464 = vpack.c.b16 %v410, %v408
        %v465 = vpack.c.b16 %v411, %v409
        %v466 = vpack.c.b16 %v414, %v412
        %v467 = vpack.c.b16 %v415, %v413
        %v468 = vpack.c.b16 %v418, %v416
        %v469 = vpack.c.b16 %v419, %v417
        %v470 = vpack.c.b16 %v422, %v420
        %v471 = vpack.c.b16 %v423, %v421
        %v472 = vpack.c.b16 %v426, %v424
        %v473 = vpack.c.b16 %v427, %v425
        %v474 = vpack.c.b16 %v430, %v428
        %v475 = vpack.c.b16 %v431, %v429
        %v476 = vpack.c.b16 %v434, %v432
        %v477 = vpack.c.b16 %v435, %v433
        %v478 = vpack.c.b16 %v438, %v436
        %v479 = vpack.c.b16 %v439, %v437
        %v480 = vpack.c.b16 %v442, %v440
        %v481 = vpack.c.b16 %v443, %v441
        %v482 = vpack.c.b16 %v446, %v444
        %v483 = vpack.c.b16 %v447, %v445
        %v484 = vpack.c.b16 %v450, %v448
        %v485 = vpack.c.b16 %v451, %v449
        %v486 = vpack.c.b16 %v454, %v452
        %v487 = vpack.c.b16 %v455, %v453
        %v488 = vpack.c.b16 %v458, %v456
        %v489 = vpack.c.b16 %v459, %v457
        %v490 = vpack.c.b16 %v462, %v460
        %v491 = vpack.c.b16 %v463, %v461
        %vm520 = vcmask 785408
        %v522 = vsel %vm520, %v378, 0
        %524 = vmatpush.bf16.msra.mxu0 %v478
        %525 = vmatpush.bf16.msra.mxu0 %v476
        %526 = vmatpush.bf16.msra.mxu0 %v474
        %527 = vmatpush.bf16.msra.mxu0 %v472
        %528 = vmatpush.bf16.msra.mxu0 %v470
        %529 = vmatpush.bf16.msra.mxu0 %v468
        %530 = vmatpush.bf16.msra.mxu0 %v466
        %531 = vmatpush.bf16.msra.mxu0 %v464
        %532 = vmatmul.bf16.gmra.mxu0 %v377
        %v533 = vpop.f32.mrf.mxu0
        %v534 = vadd.f32 0.0, %v533
        %v535 = vpop.f32.mrf.mxu0
        %536 = vdwg.mxu0
        %537 = vmatpush.bf16.msra.mxu0 0
        %538 = vmatpush.bf16.msra.mxu0 0
        %539 = vmatpush.bf16.msra.mxu0 %v490
        %540 = vmatpush.bf16.msra.mxu0 %v488
        %541 = vmatpush.bf16.msra.mxu0 %v486
        %542 = vmatpush.bf16.msra.mxu0 %v484
        %543 = vmatpush.bf16.msra.mxu0 %v482
        %544 = vmatpush.bf16.msra.mxu0 %v480
        %545 = vmatmul.bf16.gmra.mxu0 %v522
        %v546 = vpop.f32.mrf.mxu0
        %v547 = vadd.f32 %v534, %v546
        %v548 = vpop.f32.mrf.mxu0
        %549 = vdwg.mxu0
        %550 = vmatpush.bf16.msra.mxu0 %v479
        %551 = vmatpush.bf16.msra.mxu0 %v477
        %552 = vmatpush.bf16.msra.mxu0 %v475
        %553 = vmatpush.bf16.msra.mxu0 %v473
        %554 = vmatpush.bf16.msra.mxu0 %v471
        %555 = vmatpush.bf16.msra.mxu0 %v469
        %556 = vmatpush.bf16.msra.mxu0 %v467
        %557 = vmatpush.bf16.msra.mxu0 %v465
        %558 = vmatmul.bf16.gmra.mxu0 %v377
        %v559 = vpop.f32.mrf.mxu0
        %v560 = vadd.f32 0.0, %v559
        %v561 = vpop.f32.mrf.mxu0
        %562 = vdwg.mxu0
        %563 = vmatpush.bf16.msra.mxu0 0
        %564 = vmatpush.bf16.msra.mxu0 0
        %565 = vmatpush.bf16.msra.mxu0 %v491
        %566 = vmatpush.bf16.msra.mxu0 %v489
        %567 = vmatpush.bf16.msra.mxu0 %v487
        %568 = vmatpush.bf16.msra.mxu0 %v485
        %569 = vmatpush.bf16.msra.mxu0 %v483
        %570 = vmatpush.bf16.msra.mxu0 %v481
        %571 = vmatmul.bf16.gmra.mxu0 %v522
        %v572 = vpop.f32.mrf.mxu0
        %v573 = vadd.f32 %v560, %v572
        %v574 = vpop.f32.mrf.mxu0
        %575 = vdwg.mxu0
        %v576 = vld [vmem:[%s2] sm:$0xff]
        %578 = vset.pattern.permute.xlu0 0
        %579 = vperm.xlu0 %578, %v576
        %v580 = vpop.permute.xlu0 %579
        %v582 = vmul.f32 %v547, %v580
        %v583 = vmul.f32 %v573, %v580
        %v584 = vld [vmem:[%s3] sm:$0xff]
        %586 = vset.pattern.permute.xlu0 0
        %587 = vperm.xlu0 %586, %v584
        %v588 = vpop.permute.xlu0 %587
        %v590 = vadd.f32 %v582, %v588
        %v591 = vadd.f32 %v583, %v588
        %v592 = vmax.f32 %v590, 0.0
        %v593 = vmax.f32 %v591, 0.0
        %594 = vst [vmem:[%s342] sm:$0xff] %v592
        %595 = vst [vmem:[%s342 + $0x8] sm:$0xff] %v593
        %s596 = smul.u32 2, %s15
        %p597 = scmp.lt.s32.totalorder %s596, 3
        %s598 = scalar_select %p597, %s596, 3
        %s599 = smul.addr %s598, 8
        %s600 = scalar_lea.vmem %s4, %s599
        // Predicated region
        $region75: #{hourglass_forward.9} parent=69 // pred_check
          %p601 = pneg %p122
        $region76: #{hourglass_forward.9} parent=69 // pred_check_branch
          %603 = sbr.rel (%p601) target = $region78
        $region77: #{hourglass_forward.9} parent=69 // pred_region
          %s604 = smul.u32 2, %s15
        $region78: #{hourglass_forward.9} parent=69 // pred_fallthru
          _
      $region70: #{hourglass_forward.9} parent=5 // pred_fallthru
        _
      %p605 = scmp.le.s32.totalorder 2, %s10
      // Predicated region
      $region79: #{hourglass_forward.9} parent=5 // pred_check
        %p606 = pneg %p605
      $region80: #{hourglass_forward.9} parent=5 // pred_check_branch
        %608 = sbr.rel (%p606) target = $region82
      $region81: #{hourglass_forward.9} parent=5 // pred_region
        %s609 = ssub.s32 %s10, 2
        // Predicated region
        $region83: #{hourglass_forward.9} parent=81 // pred_check
          %p610 = pneg %p128
        $region84: #{hourglass_forward.9} parent=81 // pred_check_branch
          %612 = sbr.rel (%p610) target = $region86
        $region85: #{hourglass_forward.9} parent=81 // pred_region
          %s613 = smul.u32 2, %s16
          %p614 = scmp.lt.s32.totalorder %s613, 3
          %s615 = scalar_select %p614, %s613, 3
          %s616 = smul.addr %s615, 8
          %s617 = scalar_lea.vmem %s4, %s616
        $region86: #{hourglass_forward.9} parent=81 // pred_fallthru
          _
      $region82: #{hourglass_forward.9} parent=5 // pred_fallthru
        _
    $region6: #{hourglass_forward.9} parent=1 // loop_footer
      %s14 = sadd.s32 1, %s10
    $region7: #{hourglass_forward.9} parent=1 // loop_footer_branch
      %9 = sbr.rel target = $region3
    $region8: #{hourglass_forward.9} parent=1 // loop_exit
      _

// kernel: hourglass_forward.10
$region0: #{hourglass_forward.10}
  #allocation0 [shape = 'u32[]', space=smem, size = 0x4, offset = 0x4, fixed_abs, tag = 'smem constant byte address 0x4 - core index']
  #allocation1 [shape = 'u32[72,128]{1,0:T(1,128)}', space=vmem, size = 0x9000, scoped, tag = 'internal scratch']
  %s0 = inlined_call_operand.vmem [shape: bf16[8,224], index: 0, kind: input, shape index: {}]
  %s1 = inlined_call_operand.vmem [shape: bf16[224,128], index: 1, kind: input, shape index: {}]
  %s2 = inlined_call_operand.vmem [shape: f32[8,1], index: 2, kind: input, shape index: {}]
  %s3 = inlined_call_operand.vmem [shape: f32[8,1], index: 3, kind: input, shape index: {}]
  %s4 = inlined_call_operand.vmem [shape: f32[8,128], index: 4, kind: output, shape index: {}]
  %s5 = sld [smem:[#allocation0]]
  $region26: #{hourglass_forward.10} parent=0
    _
  %s7 = ssub.s32 1, %s5
  %s8 = scalar_select 0, %s7, %s5
  // Predicated region
  $region2: #{hourglass_forward.10} parent=0 // pred_check
    _
  $region3: #{hourglass_forward.10} parent=0 // pred_check_branch
    %10 = sbr.rel (0) target = $region5
  $region4: #{hourglass_forward.10} parent=0 // pred_region
    _
  $region5: #{hourglass_forward.10} parent=0 // pred_fallthru
    _
  // Predicated region
  $region6: #{hourglass_forward.10} parent=0 // pred_check
    _
  $region7: #{hourglass_forward.10} parent=0 // pred_check_branch
    %12 = sbr.rel (0) target = $region9
  $region8: #{hourglass_forward.10} parent=0 // pred_region
    _
  $region9: #{hourglass_forward.10} parent=0 // pred_fallthru
    _
  // Predicated region
  $region10: #{hourglass_forward.10} parent=0 // pred_check
    _
  $region11: #{hourglass_forward.10} parent=0 // pred_check_branch
    %14 = sbr.rel (0) target = $region13
  $region12: #{hourglass_forward.10} parent=0 // pred_region
    _
  $region13: #{hourglass_forward.10} parent=0 // pred_fallthru
    _
  // Predicated region
  $region14: #{hourglass_forward.10} parent=0 // pred_check
    _
  $region15: #{hourglass_forward.10} parent=0 // pred_check_branch
    %16 = sbr.rel (0) target = $region17
  $region16: #{hourglass_forward.10} parent=0 // pred_region
    _
  $region17: #{hourglass_forward.10} parent=0 // pred_fallthru
    _
  %v18 = vld [vmem:[%s0] sm:$0xff]
  %v19 = vld [vmem:[%s1] sm:$0xf]
  %v20 = vld [vmem:[%s1 + $0x4] sm:$0xf]
  %v21 = vld [vmem:[%s1 + $0x8] sm:$0xf]
  %v22 = vld [vmem:[%s1 + $0xc] sm:$0xf]
  %v23 = vld [vmem:[%s1 + $0x10] sm:$0xf]
  %v24 = vld [vmem:[%s1 + $0x14] sm:$0xf]
  %v25 = vld [vmem:[%s1 + $0x18] sm:$0xf]
  %v26 = vld [vmem:[%s1 + $0x1c] sm:$0xf]
  %v27 = vld [vmem:[%s1 + $0x20] sm:$0xf]
  %v28 = vld [vmem:[%s1 + $0x24] sm:$0xf]
  %v29 = vld [vmem:[%s1 + $0x28] sm:$0xf]
  %v30 = vld [vmem:[%s1 + $0x2c] sm:$0xf]
  %v31 = vld [vmem:[%s1 + $0x30] sm:$0xf]
  %v32 = vld [vmem:[%s1 + $0x34] sm:$0xf]
  %v33 = vld [vmem:[%s1 + $0x38] sm:$0xf]
  %v34 = vld [vmem:[%s1 + $0x3c] sm:$0xf]
  %v35 = vld [vmem:[%s1 + $0x40] sm:$0xf]
  %v36 = vld [vmem:[%s1 + $0x44] sm:$0xf]
  %v37 = vld [vmem:[%s1 + $0x48] sm:$0xf]
  %v38 = vld [vmem:[%s1 + $0x4c] sm:$0xf]
  %v39 = vld [vmem:[%s1 + $0x50] sm:$0xf]
  %v40 = vld [vmem:[%s1 + $0x54] sm:$0xf]
  %v41 = vld [vmem:[%s1 + $0x58] sm:$0xf]
  %v42 = vld [vmem:[%s1 + $0x5c] sm:$0xf]
  %v43 = vld [vmem:[%s1 + $0x60] sm:$0xf]
  %v44 = vld [vmem:[%s1 + $0x64] sm:$0xf]
  %v45 = vld [vmem:[%s1 + $0x68] sm:$0xf]
  %v46 = vld [vmem:[%s1 + $0x6c] sm:$0xf]
  %v48 = vunpack.c.l.b16 %v18
  %v49 = vunpack.c.h.b16 %v18
  %v50 = vpack.c.b16 %v48, %v48
  %v51 = vpack.c.b16 %v49, %v49
  %v81 = vunpack.c.l.b16 %v19
  %v82 = vunpack.c.l.b16 %v20
  %v83 = vunpack.c.l.b16 %v21
  %v84 = vunpack.c.l.b16 %v22
  %v85 = vunpack.c.l.b16 %v23
  %v86 = vunpack.c.l.b16 %v24
  %v87 = vunpack.c.l.b16 %v25
  %v88 = vunpack.c.l.b16 %v26
  %v89 = vunpack.c.l.b16 %v27
  %v90 = vunpack.c.l.b16 %v28
  %v91 = vunpack.c.l.b16 %v29
  %v92 = vunpack.c.l.b16 %v30
  %v93 = vunpack.c.l.b16 %v31
  %v94 = vunpack.c.l.b16 %v32
  %v95 = vunpack.c.l.b16 %v33
  %v96 = vunpack.c.l.b16 %v34
  %v97 = vunpack.c.l.b16 %v35
  %v98 = vunpack.c.l.b16 %v36
  %v99 = vunpack.c.l.b16 %v37
  %v100 = vunpack.c.l.b16 %v38
  %v101 = vunpack.c.l.b16 %v39
  %v102 = vunpack.c.l.b16 %v40
  %v103 = vunpack.c.l.b16 %v41
  %v104 = vunpack.c.l.b16 %v42
  %v105 = vunpack.c.l.b16 %v43
  %v106 = vunpack.c.l.b16 %v44
  %v107 = vunpack.c.l.b16 %v45
  %v108 = vunpack.c.l.b16 %v46
  %v109 = vpack.c.b16 %v82, %v81
  %v110 = vpack.c.b16 %v84, %v83
  %v111 = vpack.c.b16 %v86, %v85
  %v112 = vpack.c.b16 %v88, %v87
  %v113 = vpack.c.b16 %v90, %v89
  %v114 = vpack.c.b16 %v92, %v91
  %v115 = vpack.c.b16 %v94, %v93
  %v116 = vpack.c.b16 %v96, %v95
  %v117 = vpack.c.b16 %v98, %v97
  %v118 = vpack.c.b16 %v100, %v99
  %v119 = vpack.c.b16 %v102, %v101
  %v120 = vpack.c.b16 %v104, %v103
  %v121 = vpack.c.b16 %v106, %v105
  %v122 = vpack.c.b16 %v108, %v107
  %vm137 = vcmask 785408
  %v139 = vsel %vm137, %v51, 0
  %141 = vmatpush.bf16.msra.mxu0 %v116
  %142 = vmatpush.bf16.msra.mxu0 %v115
  %143 = vmatpush.bf16.msra.mxu0 %v114
  %144 = vmatpush.bf16.msra.mxu0 %v113
  %145 = vmatpush.bf16.msra.mxu0 %v112
  %146 = vmatpush.bf16.msra.mxu0 %v111
  %147 = vmatpush.bf16.msra.mxu0 %v110
  %148 = vmatpush.bf16.msra.mxu0 %v109
  %149 = vmatmul.bf16.gmra.mxu0 %v50
  %v150 = vpop.f32.mrf.mxu0
  %v151 = vadd.f32 0.0, %v150
  %v152 = vpop.f32.mrf.mxu0
  %153 = vdwg.mxu0
  %154 = vmatpush.bf16.msra.mxu0 0
  %155 = vmatpush.bf16.msra.mxu0 0
  %156 = vmatpush.bf16.msra.mxu0 %v122
  %157 = vmatpush.bf16.msra.mxu0 %v121
  %158 = vmatpush.bf16.msra.mxu0 %v120
  %159 = vmatpush.bf16.msra.mxu0 %v119
  %160 = vmatpush.bf16.msra.mxu0 %v118
  %161 = vmatpush.bf16.msra.mxu0 %v117
  %162 = vmatmul.bf16.gmra.mxu0 %v139
  %v163 = vpop.f32.mrf.mxu0
  %v164 = vadd.f32 %v151, %v163
  %v165 = vpop.f32.mrf.mxu0
  %166 = vdwg.mxu0
  %v167 = vld [vmem:[%s2] sm:$0xff]
  %169 = vset.pattern.permute.xlu0 0
  %170 = vperm.xlu0 %169, %v167
  %v171 = vpop.permute.xlu0 %170
  %v173 = vmul.f32 %v164, %v171
  %v174 = vld [vmem:[%s3] sm:$0xff]
  %176 = vset.pattern.permute.xlu0 0
  %177 = vperm.xlu0 %176, %v174
  %v178 = vpop.permute.xlu0 %177
  %v180 = vadd.f32 %v173, %v178
  %v181 = vmax.f32 %v180, 0.0
  %182 = vst [vmem:[%s4] sm:$0xff] %v181
  // Predicated region
  $region18: #{hourglass_forward.10} parent=0 // pred_check
    _
  $region19: #{hourglass_forward.10} parent=0 // pred_check_branch
    %184 = sbr.rel (0) target = $region21
  $region20: #{hourglass_forward.10} parent=0 // pred_region
    _
  $region21: #{hourglass_forward.10} parent=0 // pred_fallthru
    _
  // Predicated region
  $region22: #{hourglass_forward.10} parent=0 // pred_check
    _
  $region23: #{hourglass_forward.10} parent=0 // pred_check_branch
    %186 = sbr.rel (0) target = $region25
  $region24: #{hourglass_forward.10} parent=0 // pred_region
    _
  $region25: #{hourglass_forward.10} parent=0 // pred_fallthru
    _

// kernel: hourglass_forward.12
$region0: #{hourglass_forward.12}
  #allocation0 [shape = 'u32[]', space=smem, size = 0x4, offset = 0x4, fixed_abs, tag = 'smem constant byte address 0x4 - core index']
  #allocation1 [shape = 'u32[72,128]{1,0:T(1,128)}', space=vmem, size = 0x9000, scoped, tag = 'internal scratch']
  %s0 = inlined_call_operand.vmem [shape: bf16[64,64], index: 0, kind: input, shape index: {}]
  %s1 = inlined_call_operand.vmem [shape: bf16[64,128], index: 1, kind: input, shape index: {}]
  %s2 = inlined_call_operand.vmem [shape: f32[64,1], index: 2, kind: input, shape index: {}]
  %s3 = inlined_call_operand.vmem [shape: f32[64,1], index: 3, kind: input, shape index: {}]
  %s4 = inlined_call_operand.vmem [shape: f32[64,128], index: 4, kind: input, shape index: {}]
  %s5 = inlined_call_operand.vmem [shape: f32[64,128], index: 5, kind: output, shape index: {}]
  %s6 = sld [smem:[#allocation0]]
  $region30: #{hourglass_forward.12} parent=0
    _
  %s8 = ssub.s32 1, %s6
  %s9 = scalar_select 0, %s8, %s6
  // Predicated region
  $region2: #{hourglass_forward.12} parent=0 // pred_check
    _
  $region3: #{hourglass_forward.12} parent=0 // pred_check_branch
    %11 = sbr.rel (0) target = $region5
  $region4: #{hourglass_forward.12} parent=0 // pred_region
    _
  $region5: #{hourglass_forward.12} parent=0 // pred_fallthru
    _
  // Predicated region
  $region6: #{hourglass_forward.12} parent=0 // pred_check
    _
  $region7: #{hourglass_forward.12} parent=0 // pred_check_branch
    %13 = sbr.rel (0) target = $region9
  $region8: #{hourglass_forward.12} parent=0 // pred_region
    _
  $region9: #{hourglass_forward.12} parent=0 // pred_fallthru
    _
  // Predicated region
  $region10: #{hourglass_forward.12} parent=0 // pred_check
    _
  $region11: #{hourglass_forward.12} parent=0 // pred_check_branch
    %15 = sbr.rel (0) target = $region13
  $region12: #{hourglass_forward.12} parent=0 // pred_region
    _
  $region13: #{hourglass_forward.12} parent=0 // pred_fallthru
    _
  // Predicated region
  $region14: #{hourglass_forward.12} parent=0 // pred_check
    _
  $region15: #{hourglass_forward.12} parent=0 // pred_check_branch
    %17 = sbr.rel (0) target = $region17
  $region16: #{hourglass_forward.12} parent=0 // pred_region
    _
  $region17: #{hourglass_forward.12} parent=0 // pred_fallthru
    _
  // Predicated region
  $region18: #{hourglass_forward.12} parent=0 // pred_check
    _
  $region19: #{hourglass_forward.12} parent=0 // pred_check_branch
    %19 = sbr.rel (0) target = $region21
  $region20: #{hourglass_forward.12} parent=0 // pred_region
    _
  $region21: #{hourglass_forward.12} parent=0 // pred_fallthru
    _
  %v21 = vld [vmem:[%s0] sm:$0xf]
  %v22 = vld [vmem:[%s0 + $0x4] sm:$0xf]
  %v23 = vld [vmem:[%s0 + $0x8] sm:$0xf]
  %v24 = vld [vmem:[%s0 + $0xc] sm:$0xf]
  %v25 = vld [vmem:[%s0 + $0x10] sm:$0xf]
  %v26 = vld [vmem:[%s0 + $0x14] sm:$0xf]
  %v27 = vld [vmem:[%s0 + $0x18] sm:$0xf]
  %v28 = vld [vmem:[%s0 + $0x1c] sm:$0xf]
  %v29 = vld [vmem:[%s1] sm:$0xf]
  %v30 = vld [vmem:[%s1 + $0x4] sm:$0xf]
  %v31 = vld [vmem:[%s1 + $0x8] sm:$0xf]
  %v32 = vld [vmem:[%s1 + $0xc] sm:$0xf]
  %v33 = vld [vmem:[%s1 + $0x10] sm:$0xf]
  %v34 = vld [vmem:[%s1 + $0x14] sm:$0xf]
  %v35 = vld [vmem:[%s1 + $0x18] sm:$0xf]
  %v36 = vld [vmem:[%s1 + $0x1c] sm:$0xf]
  %v45 = vunpack.c.l.b16 %v21
  %v46 = vunpack.c.l.b16 %v22
  %v47 = vunpack.c.l.b16 %v23
  %v48 = vunpack.c.l.b16 %v24
  %v49 = vunpack.c.l.b16 %v25
  %v50 = vunpack.c.l.b16 %v26
  %v51 = vunpack.c.l.b16 %v27
  %v52 = vunpack.c.l.b16 %v28
  %v53 = vpack.c.b16 %v46, %v45
  %v54 = vpack.c.b16 %v48, %v47
  %v55 = vpack.c.b16 %v50, %v49
  %v56 = vpack.c.b16 %v52, %v51
  %v65 = vunpack.c.l.b16 %v29
  %v66 = vunpack.c.l.b16 %v30
  %v67 = vunpack.c.l.b16 %v31
  %v68 = vunpack.c.l.b16 %v32
  %v69 = vunpack.c.l.b16 %v33
  %v70 = vunpack.c.l.b16 %v34
  %v71 = vunpack.c.l.b16 %v35
  %v72 = vunpack.c.l.b16 %v36
  %v73 = vpack.c.b16 %v66, %v65
  %v74 = vpack.c.b16 %v68, %v67
  %v75 = vpack.c.b16 %v70, %v69
  %v76 = vpack.c.b16 %v72, %v71
  %vm81 = vcmask 523264
  %v83 = vsel %vm81, %v53, 0
  %v86 = vsel %vm81, %v54, 0
  %v89 = vsel %vm81, %v55, 0
  %v92 = vsel %vm81, %v56, 0
  %94 = vmatpush.bf16.msra.mxu0 0
  %95 = vmatpush.bf16.msra.mxu0 0
  %96 = vmatpush.bf16.msra.mxu0 0
  %97 = vmatpush.bf16.msra.mxu0 0
  %98 = vmatpush.bf16.msra.mxu0 %v76
  %99 = vmatpush.bf16.msra.mxu0 %v75
  %100 = vmatpush.bf16.msra.mxu0 %v74
  %101 = vmatpush.bf16.msra.mxu0 %v73
  %102 = vmatmul.bf16.gmra.mxu0 %v83
  %v103 = vpop.f32.mrf.mxu0
  %v104 = vadd.f32 0.0, %v103
  %v105 = vpop.f32.mrf.mxu0
  %v106 = vadd.f32 0.0, %v105
  %107 = vmatmul.bf16.gmra.mxu0 %v86
  %v108 = vpop.f32.mrf.mxu0
  %v109 = vadd.f32 0.0, %v108
  %v110 = vpop.f32.mrf.mxu0
  %v111 = vadd.f32 0.0, %v110
  %112 = vmatmul.bf16.gmra.mxu0 %v89
  %v113 = vpop.f32.mrf.mxu0
  %v114 = vadd.f32 0.0, %v113
  %v115 = vpop.f32.mrf.mxu0
  %v116 = vadd.f32 0.0, %v115
  %117 = vmatmul.bf16.gmra.mxu0 %v92
  %v118 = vpop.f32.mrf.mxu0
  %v119 = vadd.f32 0.0, %v118
  %v120 = vpop.f32.mrf.mxu0
  %v121 = vadd.f32 0.0, %v120
  %122 = vdwg.mxu0
  %v123 = vld [vmem:[%s2] sm:$0xff]
  %v124 = vld [vmem:[%s2 + $0x8] sm:$0xff]
  %v125 = vld [vmem:[%s2 + $0x10] sm:$0xff]
  %v126 = vld [vmem:[%s2 + $0x18] sm:$0xff]
  %v127 = vld [vmem:[%s2 + $0x20] sm:$0xff]
  %v128 = vld [vmem:[%s2 + $0x28] sm:$0xff]
  %v129 = vld [vmem:[%s2 + $0x30] sm:$0xff]
  %v130 = vld [vmem:[%s2 + $0x38] sm:$0xff]
  %132 = vset.pattern.permute.xlu0 0
  %133 = vperm.xlu0 %132, %v123
  %v134 = vpop.permute.xlu0 %133
  %137 = vset.pattern.permute.xlu0 0
  %138 = vperm.xlu0 %137, %v124
  %v139 = vpop.permute.xlu0 %138
  %142 = vset.pattern.permute.xlu0 0
  %143 = vperm.xlu0 %142, %v125
  %v144 = vpop.permute.xlu0 %143
  %147 = vset.pattern.permute.xlu0 0
  %148 = vperm.xlu0 %147, %v126
  %v149 = vpop.permute.xlu0 %148
  %152 = vset.pattern.permute.xlu0 0
  %153 = vperm.xlu0 %152, %v127
  %v154 = vpop.permute.xlu0 %153
  %157 = vset.pattern.permute.xlu0 0
  %158 = vperm.xlu0 %157, %v128
  %v159 = vpop.permute.xlu0 %158
  %162 = vset.pattern.permute.xlu0 0
  %163 = vperm.xlu0 %162, %v129
  %v164 = vpop.permute.xlu0 %163
  %167 = vset.pattern.permute.xlu0 0
  %168 = vperm.xlu0 %167, %v130
  %v169 = vpop.permute.xlu0 %168
  %v171 = vmul.f32 %v104, %v134
  %v172 = vmul.f32 %v106, %v139
  %v173 = vmul.f32 %v109, %v144
  %v174 = vmul.f32 %v111, %v149
  %v175 = vmul.f32 %v114, %v154
  %v176 = vmul.f32 %v116, %v159
  %v177 = vmul.f32 %v119, %v164
  %v178 = vmul.f32 %v121, %v169
  %v179 = vld [vmem:[%s3] sm:$0xff]
  %v180 = vld [vmem:[%s3 + $0x8] sm:$0xff]
  %v181 = vld [vmem:[%s3 + $0x10] sm:$0xff]
  %v182 = vld [vmem:[%s3 + $0x18] sm:$0xff]
  %v183 = vld [vmem:[%s3 + $0x20] sm:$0xff]
  %v184 = vld [vmem:[%s3 + $0x28] sm:$0xff]
  %v185 = vld [vmem:[%s3 + $0x30] sm:$0xff]
  %v186 = vld [vmem:[%s3 + $0x38] sm:$0xff]
  %188 = vset.pattern.permute.xlu0 0
  %189 = vperm.xlu0 %188, %v179
  %v190 = vpop.permute.xlu0 %189
  %193 = vset.pattern.permute.xlu0 0
  %194 = vperm.xlu0 %193, %v180
  %v195 = vpop.permute.xlu0 %194
  %198 = vset.pattern.permute.xlu0 0
  %199 = vperm.xlu0 %198, %v181
  %v200 = vpop.permute.xlu0 %199
  %203 = vset.pattern.permute.xlu0 0
  %204 = vperm.xlu0 %203, %v182
  %v205 = vpop.permute.xlu0 %204
  %208 = vset.pattern.permute.xlu0 0
  %209 = vperm.xlu0 %208, %v183
  %v210 = vpop.permute.xlu0 %209
  %213 = vset.pattern.permute.xlu0 0
  %214 = vperm.xlu0 %213, %v184
  %v215 = vpop.permute.xlu0 %214
  %218 = vset.pattern.permute.xlu0 0
  %219 = vperm.xlu0 %218, %v185
  %v220 = vpop.permute.xlu0 %219
  %223 = vset.pattern.permute.xlu0 0
  %224 = vperm.xlu0 %223, %v186
  %v225 = vpop.permute.xlu0 %224
  %v227 = vadd.f32 %v171, %v190
  %v228 = vadd.f32 %v172, %v195
  %v229 = vadd.f32 %v173, %v200
  %v230 = vadd.f32 %v174, %v205
  %v231 = vadd.f32 %v175, %v210
  %v232 = vadd.f32 %v176, %v215
  %v233 = vadd.f32 %v177, %v220
  %v234 = vadd.f32 %v178, %v225
  %v235 = vld [vmem:[%s4] sm:$0xff]
  %v236 = vld [vmem:[%s4 + $0x8] sm:$0xff]
  %v237 = vld [vmem:[%s4 + $0x10] sm:$0xff]
  %v238 = vld [vmem:[%s4 + $0x18] sm:$0xff]
  %v239 = vld [vmem:[%s4 + $0x20] sm:$0xff]
  %v240 = vld [vmem:[%s4 + $0x28] sm:$0xff]
  %v241 = vld [vmem:[%s4 + $0x30] sm:$0xff]
  %v242 = vld [vmem:[%s4 + $0x38] sm:$0xff]
  %v243 = vadd.f32 %v227, %v235
  %v244 = vadd.f32 %v228, %v236
  %v245 = vadd.f32 %v229, %v237
  %v246 = vadd.f32 %v230, %v238
  %v247 = vadd.f32 %v231, %v239
  %v248 = vadd.f32 %v232, %v240
  %v249 = vadd.f32 %v233, %v241
  %v250 = vadd.f32 %v234, %v242
  %v251 = vmax.f32 %v243, 0.0
  %v252 = vmax.f32 %v244, 0.0
  %v253 = vmax.f32 %v245, 0.0
  %v254 = vmax.f32 %v246, 0.0
  %v255 = vmax.f32 %v247, 0.0
  %v256 = vmax.f32 %v248, 0.0
  %v257 = vmax.f32 %v249, 0.0
  %v258 = vmax.f32 %v250, 0.0
  %259 = vst [vmem:[%s5] sm:$0xff] %v251
  %260 = vst [vmem:[%s5 + $0x8] sm:$0xff] %v252
  %261 = vst [vmem:[%s5 + $0x10] sm:$0xff] %v253
  %262 = vst [vmem:[%s5 + $0x18] sm:$0xff] %v254
  %263 = vst [vmem:[%s5 + $0x20] sm:$0xff] %v255
  %264 = vst [vmem:[%s5 + $0x28] sm:$0xff] %v256
  %265 = vst [vmem:[%s5 + $0x30] sm:$0xff] %v257
  %266 = vst [vmem:[%s5 + $0x38] sm:$0xff] %v258
  // Predicated region
  $region22: #{hourglass_forward.12} parent=0 // pred_check
    _
  $region23: #{hourglass_forward.12} parent=0 // pred_check_branch
    %268 = sbr.rel (0) target = $region25
  $region24: #{hourglass_forward.12} parent=0 // pred_region
    _
  $region25: #{hourglass_forward.12} parent=0 // pred_fallthru
    _
  // Predicated region
  $region26: #{hourglass_forward.12} parent=0 // pred_check
    _
  $region27: #{hourglass_forward.12} parent=0 // pred_check_branch
    %270 = sbr.rel (0) target = $region29
  $region28: #{hourglass_forward.12} parent=0 // pred_region
    _
  $region29: #{hourglass_forward.12} parent=0 // pred_fallthru
    _

// kernel: hourglass_forward.13
$region0: #{hourglass_forward.13}
  #allocation0 [shape = 'u32[]', space=smem, size = 0x4, offset = 0x4, fixed_abs, tag = 'smem constant byte address 0x4 - core index']
  #allocation1 [shape = 'u32[72,128]{1,0:T(1,128)}', space=vmem, size = 0x9000, scoped, tag = 'internal scratch']
  %s0 = inlined_call_operand.vmem [shape: bf16[32,64], index: 0, kind: input, shape index: {}]
  %s1 = inlined_call_operand.vmem [shape: bf16[64,512], index: 1, kind: input, shape index: {}]
  %s2 = inlined_call_operand.vmem [shape: f32[32,1], index: 2, kind: input, shape index: {}]
  %s3 = inlined_call_operand.vmem [shape: f32[32,1], index: 3, kind: input, shape index: {}]
  %s4 = inlined_call_operand.vmem [shape: f32[32,512], index: 4, kind: output, shape index: {}]
  %s5 = sld [smem:[#allocation0]]
  $region106: #{hourglass_forward.13} parent=0
    _
  %s7 = ssub.s32 1, %s5
  %s8 = scalar_select 0, %s7, %s5
  $region1: #{hourglass_forward.13} parent=0
    #allocation2 [shape = 'u8[65536]{0}', space=vmem, size = 0x10000, scoped, tag = 'input window, operand 1']
    #allocation3 [shape = 'u8[65536]{0}', space=vmem, size = 0x10000, scoped, tag = 'output window, operand 0']
    loop: start=0, step=1, limit=4
    $region2: #{hourglass_forward.13} parent=1 // loop_pre_header
      _
    $region3: #{hourglass_forward.13} parent=1 // loop_header
      %s10 = sphi 0, %s14
      %p11 = scmp.ge.s32.totalorder %s10, 4
      %s18 = sphi 0, %s18
      %s20 = sphi 0, %s18
      %s21 = sphi 0, %s20
      %s35 = sphi 0, %s21
      %s41 = sphi 0, %s43
      %s44 = sphi 0, %s41
      %s45 = sphi 0, %s44
      %s61 = sphi 0, %s45
      %s65 = sphi 0, %s65
      %s67 = sphi 0, %s65
      %s68 = sphi 0, %s67
      %s82 = sphi 0, %s68
      %s86 = sphi 0, %s86
      %s88 = sphi 0, %s86
      %s89 = sphi 0, %s88
      %s103 = sphi 0, %s89
      %s109 = sphi 0, %s111
      %s112 = sphi 0, %s109
      %s113 = sphi 0, %s112
      %s129 = sphi 0, %s113
    $region4: #{hourglass_forward.13} parent=1 // loop_header_branch
      %13 = sbr.rel (%p11) target = $region8
    $region5: #{hourglass_forward.13} parent=1 // loop_body
      %s15 = ssub.s32 %s10, 1
      %s16 = ssub.s32 %s10, 2
      %s17 = sadd.s32 %s10, 1
      %s19 = sadd.s32 %s18, 1
      %p22 = scmp.eq.s32.totalorder %s10, 1
      %p23 = scmp.ne.s32.totalorder %s18, %s20
      %p24 = scmp.eq.s32.totalorder %s10, 0
      %p25 = por %p23, %p24
      %p26 = scmp.ne.s32.totalorder %s18, %s20
      %p27 = scmp.eq.s32.totalorder %s15, 1
      %p28 = por %p26, %p27
      %p29 = scmp.ne.s32.totalorder %s20, %s21
      %p30 = scmp.eq.s32.totalorder %s15, 0
      %p31 = por %p29, %p30
      %p32 = scmp.ne.s32.totalorder %s20, %s21
      %p33 = scmp.eq.s32.totalorder %s16, 1
      %p34 = por %p32, %p33
      %p36 = scmp.ne.s32.totalorder %s21, %s35
      %p37 = scmp.eq.s32.totalorder %s16, 0
      %p38 = por %p36, %p37
      %s39 = ssub.s32 %s10, %s17
      %p40 = scmp.eq.s32.totalorder %s39, 0
      %s42 = sadd.s32 %s41, 1
      %s43 = scalar_select %p40, %s41, %s42
      %p46 = pneg %p40
      %p47 = scmp.eq.s32.totalorder %s10, 1
      %p48 = por %p46, %p47
      %p49 = scmp.ne.s32.totalorder %s41, %s44
      %p50 = scmp.eq.s32.totalorder %s10, 0
      %p51 = por %p49, %p50
      %p52 = scmp.ne.s32.totalorder %s41, %s44
      %p53 = scmp.eq.s32.totalorder %s15, 1
      %p54 = por %p52, %p53
      %p55 = scmp.ne.s32.totalorder %s44, %s45
      %p56 = scmp.eq.s32.totalorder %s15, 0
      %p57 = por %p55, %p56
      %p58 = scmp.ne.s32.totalorder %s44, %s45
      %p59 = scmp.eq.s32.totalorder %s16, 1
      %p60 = por %p58, %p59
      %p62 = scmp.ne.s32.totalorder %s45, %s61
      %p63 = scmp.eq.s32.totalorder %s16, 0
      %p64 = por %p62, %p63
      %s66 = sadd.s32 %s65, 1
      %p69 = scmp.eq.s32.totalorder %s10, 1
      %p70 = scmp.ne.s32.totalorder %s65, %s67
      %p71 = scmp.eq.s32.totalorder %s10, 0
      %p72 = por %p70, %p71
      %p73 = scmp.ne.s32.totalorder %s65, %s67
      %p74 = scmp.eq.s32.totalorder %s15, 1
      %p75 = por %p73, %p74
      %p76 = scmp.ne.s32.totalorder %s67, %s68
      %p77 = scmp.eq.s32.totalorder %s15, 0
      %p78 = por %p76, %p77
      %p79 = scmp.ne.s32.totalorder %s67, %s68
      %p80 = scmp.eq.s32.totalorder %s16, 1
      %p81 = por %p79, %p80
      %p83 = scmp.ne.s32.totalorder %s68, %s82
      %p84 = scmp.eq.s32.totalorder %s16, 0
      %p85 = por %p83, %p84
      %s87 = sadd.s32 %s86, 1
      %p90 = scmp.eq.s32.totalorder %s10, 1
      %p91 = scmp.ne.s32.totalorder %s86, %s88
      %p92 = scmp.eq.s32.totalorder %s10, 0
      %p93 = por %p91, %p92
      %p94 = scmp.ne.s32.totalorder %s86, %s88
      %p95 = scmp.eq.s32.totalorder %s15, 1
      %p96 = por %p94, %p95
      %p97 = scmp.ne.s32.totalorder %s88, %s89
      %p98 = scmp.eq.s32.totalorder %s15, 0
      %p99 = por %p97, %p98
      %p100 = scmp.ne.s32.totalorder %s88, %s89
      %p101 = scmp.eq.s32.totalorder %s16, 1
      %p102 = por %p100, %p101
      %p104 = scmp.ne.s32.totalorder %s89, %s103
      %p105 = scmp.eq.s32.totalorder %s16, 0
      %p106 = por %p104, %p105
      %s107 = ssub.s32 %s10, %s17
      %p108 = scmp.eq.s32.totalorder %s107, 0
      %s110 = sadd.s32 %s109, 1
      %s111 = scalar_select %p108, %s109, %s110
      %p114 = pneg %p108
      %p115 = scmp.eq.s32.totalorder %s10, 1
      %p116 = por %p114, %p115
      %p117 = scmp.ne.s32.totalorder %s109, %s112
      %p118 = scmp.eq.s32.totalorder %s10, 0
      %p119 = por %p117, %p118
      %p120 = scmp.ne.s32.totalorder %s109, %s112
      %p121 = scmp.eq.s32.totalorder %s15, 1
      %p122 = por %p120, %p121
      %p123 = scmp.ne.s32.totalorder %s112, %s113
      %p124 = scmp.eq.s32.totalorder %s15, 0
      %p125 = por %p123, %p124
      %p126 = scmp.ne.s32.totalorder %s112, %s113
      %p127 = scmp.eq.s32.totalorder %s16, 1
      %p128 = por %p126, %p127
      %p130 = scmp.ne.s32.totalorder %s113, %s129
      %p131 = scmp.eq.s32.totalorder %s16, 0
      %p132 = por %p130, %p131
      %p133 = scmp.le.s32.totalorder 1, %s10
      %p134 = scmp.lt.s32.totalorder %s10, 3
      %p135 = pnand %p133, %p134
      %p136 = pneg %p135
      // Predicated region
      $region9: #{hourglass_forward.13} parent=5 // pred_check
        _
      $region10: #{hourglass_forward.13} parent=5 // pred_check_branch
        %138 = sbr.rel (%p135) target = $region12
      $region11: #{hourglass_forward.13} parent=5 // pred_region
        %s139 = ssub.s32 %s10, 1
        // Predicated region
        $region13: #{hourglass_forward.13} parent=11 // pred_check
          %p140 = pneg %p31
        $region14: #{hourglass_forward.13} parent=11 // pred_check_branch
          %142 = sbr.rel (%p140) target = $region16
        $region15: #{hourglass_forward.13} parent=11 // pred_region
          _
        $region16: #{hourglass_forward.13} parent=11 // pred_fallthru
          _
        // Predicated region
        $region17: #{hourglass_forward.13} parent=11 // pred_check
          %p143 = pneg %p78
        $region18: #{hourglass_forward.13} parent=11 // pred_check_branch
          %145 = sbr.rel (%p143) target = $region20
        $region19: #{hourglass_forward.13} parent=11 // pred_region
          _
        $region20: #{hourglass_forward.13} parent=11 // pred_fallthru
          _
        // Predicated region
        $region21: #{hourglass_forward.13} parent=11 // pred_check
          %p146 = pneg %p99
        $region22: #{hourglass_forward.13} parent=11 // pred_check_branch
          %148 = sbr.rel (%p146) target = $region24
        $region23: #{hourglass_forward.13} parent=11 // pred_region
          _
        $region24: #{hourglass_forward.13} parent=11 // pred_fallthru
          _
      $region12: #{hourglass_forward.13} parent=5 // pred_fallthru
        _
      %p149 = scmp.lt.s32.totalorder %s10, 2
      // Predicated region
      $region25: #{hourglass_forward.13} parent=5 // pred_check
        %p150 = pneg %p149
      $region26: #{hourglass_forward.13} parent=5 // pred_check_branch
        %152 = sbr.rel (%p150) target = $region28
      $region27: #{hourglass_forward.13} parent=5 // pred_region
        // Predicated region
        $region29: #{hourglass_forward.13} parent=27 // pred_check
          %p153 = pneg %p51
        $region30: #{hourglass_forward.13} parent=27 // pred_check_branch
          %155 = sbr.rel (%p153) target = $region32
        $region31: #{hourglass_forward.13} parent=27 // pred_region
          %s156 = sand.u32 %s41, 1
          %s157 = sand.u32 %s41, 1
          %s158 = smul.addr %s157, 64
          %s159 = scalar_lea.vmem [#allocation2], %s158
          %s160 = smul.u32 2, %s10
          %s161 = smul.addr %s160, 4
          %s162 = scalar_lea.vmem %s1, %s161
          // Predicated region
          $region33: #{hourglass_forward.13} parent=31 // pred_check
            _
          $region34: #{hourglass_forward.13} parent=31 // pred_check_branch
            %164 = sbr.rel (0) target = $region36
          $region35: #{hourglass_forward.13} parent=31 // pred_region
            // Predicated region
            $region37: #{hourglass_forward.13} parent=35 // pred_check
              _
            $region38: #{hourglass_forward.13} parent=35 // pred_check_branch
              %166 = sbr.rel (0) target = $region40
            $region39: #{hourglass_forward.13} parent=35 // pred_region
              // Predicated region
              $region52: #{hourglass_forward.13} parent=39 // pred_check
                _
              $region53: #{hourglass_forward.13} parent=39 // pred_check_branch
                %196 = sbr.rel (0) target = $region55
              $region54: #{hourglass_forward.13} parent=39 // pred_region
                loop: start=0, step=1, limit=1
                $region56: #{hourglass_forward.13} parent=54 // loop_pre_header
                  _
                $region57: #{hourglass_forward.13} parent=54 // loop_header
                  %s198 = sphi 0, %s202
                  %p199 = scmp.ge.s32.totalorder %s198, 1
                  %s203 = sphi %s162, %s162
                  %s204 = sphi %s159, %s159
                $region58: #{hourglass_forward.13} parent=54 // loop_header_branch
                  %201 = sbr.rel (%p199) target = $region62
                $region59: #{hourglass_forward.13} parent=54 // loop_body
                  %v205 = vld [vmem:[%s203] sm:$0xff]
                  %206 = vst [vmem:[%s204] sm:$0xff] %v205
                  %v207 = vld [vmem:[%s203 + $0x10] sm:$0xff]
                  %208 = vst [vmem:[%s204 + $0x8] sm:$0xff] %v207
                  %v209 = vld [vmem:[%s203 + $0x20] sm:$0xff]
                  %210 = vst [vmem:[%s204 + $0x10] sm:$0xff] %v209
                  %v211 = vld [vmem:[%s203 + $0x30] sm:$0xff]
                  %212 = vst [vmem:[%s204 + $0x18] sm:$0xff] %v211
                  %v213 = vld [vmem:[%s203 + $0x40] sm:$0xff]
                  %214 = vst [vmem:[%s204 + $0x20] sm:$0xff] %v213
                  %v215 = vld [vmem:[%s203 + $0x50] sm:$0xff]
                  %216 = vst [vmem:[%s204 + $0x28] sm:$0xff] %v215
                  %v217 = vld [vmem:[%s203 + $0x60] sm:$0xff]
                  %218 = vst [vmem:[%s204 + $0x30] sm:$0xff] %v217
                  %v219 = vld [vmem:[%s203 + $0x70] sm:$0xff]
                  %220 = vst [vmem:[%s204 + $0x38] sm:$0xff] %v219
                $region60: #{hourglass_forward.13} parent=54 // loop_footer
                  %s202 = sadd.s32 1, %s198
                $region61: #{hourglass_forward.13} parent=54 // loop_footer_branch
                  %197 = sbr.rel target = $region57
                $region62: #{hourglass_forward.13} parent=54 // loop_exit
                  _
              $region55: #{hourglass_forward.13} parent=39 // pred_fallthru
                _
              // Predicated region
              $region63: #{hourglass_forward.13} parent=39 // pred_check
                _
              $region64: #{hourglass_forward.13} parent=39 // pred_check_branch
                %222 = sbr.rel target = $region66
              $region65: #{hourglass_forward.13} parent=39 // pred_region
                _
              $region66: #{hourglass_forward.13} parent=39 // pred_fallthru
                _
            $region40: #{hourglass_forward.13} parent=35 // pred_fallthru
              _
            // Predicated region
            $region41: #{hourglass_forward.13} parent=35 // pred_check
              _
            $region42: #{hourglass_forward.13} parent=35 // pred_check_branch
              %168 = sbr.rel target = $region44
            $region43: #{hourglass_forward.13} parent=35 // pred_region
              %s170 = ssub.s32 256, 1
              loop: start=0, step=1, limit=1
              $region45: #{hourglass_forward.13} parent=43 // loop_pre_header
                _
              $region46: #{hourglass_forward.13} parent=43 // loop_header
                %s172 = sphi 0, %s176
                %p173 = scmp.ge.s32.totalorder %s172, 1
                %s177 = sphi %s162, %s162
                %s178 = sphi %s159, %s159
              $region47: #{hourglass_forward.13} parent=43 // loop_header_branch
                %175 = sbr.rel (%p173) target = $region51
              $region48: #{hourglass_forward.13} parent=43 // loop_body
                %v179 = vld [vmem:[%s177] sm:%s170]
                %180 = vst [vmem:[%s178] sm:%s170] %v179
                %v181 = vld [vmem:[%s177 + $0x10] sm:%s170]
                %182 = vst [vmem:[%s178 + $0x8] sm:%s170] %v181
                %v183 = vld [vmem:[%s177 + $0x20] sm:%s170]
                %184 = vst [vmem:[%s178 + $0x10] sm:%s170] %v183
                %v185 = vld [vmem:[%s177 + $0x30] sm:%s170]
                %186 = vst [vmem:[%s178 + $0x18] sm:%s170] %v185
                %v187 = vld [vmem:[%s177 + $0x40] sm:%s170]
                %188 = vst [vmem:[%s178 + $0x20] sm:%s170] %v187
                %v189 = vld [vmem:[%s177 + $0x50] sm:%s170]
                %190 = vst [vmem:[%s178 + $0x28] sm:%s170] %v189
                %v191 = vld [vmem:[%s177 + $0x60] sm:%s170]
                %192 = vst [vmem:[%s178 + $0x30] sm:%s170] %v191
                %v193 = vld [vmem:[%s177 + $0x70] sm:%s170]
                %194 = vst [vmem:[%s178 + $0x38] sm:%s170] %v193
              $region49: #{hourglass_forward.13} parent=43 // loop_footer
                %s176 = sadd.s32 1, %s172
              $region50: #{hourglass_forward.13} parent=43 // loop_footer_branch
                %171 = sbr.rel target = $region46
              $region51: #{hourglass_forward.13} parent=43 // loop_exit
                _
            $region44: #{hourglass_forward.13} parent=35 // pred_fallthru
              _
          $region36: #{hourglass_forward.13} parent=31 // pred_fallthru
            _
          %223 = vnop
        $region32: #{hourglass_forward.13} parent=27 // pred_fallthru
          _
      $region28: #{hourglass_forward.13} parent=5 // pred_fallthru
        _
      %p224 = scmp.le.s32.totalorder 1, %s10
      %p225 = scmp.lt.s32.totalorder %s10, 3
      %p226 = pnand %p224, %p225
      %p227 = pneg %p226
      // Predicated region
      $region67: #{hourglass_forward.13} parent=5 // pred_check
        _
      $region68: #{hourglass_forward.13} parent=5 // pred_check_branch
        %229 = sbr.rel (%p226) target = $region70
      $region69: #{hourglass_forward.13} parent=5 // pred_region
        %s230 = ssub.s32 %s10, 1
        %s231 = sand.u32 %s44, 1
        %s232 = sand.u32 %s44, 1
        %s233 = smul.addr %s232, 64
        %s234 = scalar_lea.vmem [#allocation2], %s233
        // Predicated region
        $region71: #{hourglass_forward.13} parent=69 // pred_check
          %p235 = pneg %p57
        $region72: #{hourglass_forward.13} parent=69 // pred_check_branch
          %237 = sbr.rel (%p235) target = $region74
        $region73: #{hourglass_forward.13} parent=69 // pred_region
          _
        $region74: #{hourglass_forward.13} parent=69 // pred_fallthru
          _
        %p238 = pneg %p31
        %p239 = pneg %p28
        %s240 = sand.u32 %s44, 1
        %s241 = sand.u32 %s44, 1
        %s242 = smul.addr %s241, 64
        %s243 = scalar_lea.vmem [#allocation2], %s242
        %p244 = pneg %p57
        %p245 = pneg %p54
        %p246 = pneg %p78
        %p247 = pneg %p75
        %p248 = pneg %p99
        %p249 = pneg %p96
        %p250 = pneg %p125
        %p251 = pneg %p122
        %s252 = sand.u32 %s112, 1
        %s253 = sand.u32 %s112, 1
        %s254 = smul.addr %s253, 64
        %s255 = scalar_lea.vmem [#allocation3], %s254
        %s256 = smul.u32 2, %s15
        %s257 = smul.u32 2, %s15
        %v259 = vld [vmem:[%s0] sm:$0xf]
        %v260 = vld [vmem:[%s0 + $0x4] sm:$0xf]
        %v261 = vld [vmem:[%s0 + $0x8] sm:$0xf]
        %v262 = vld [vmem:[%s0 + $0xc] sm:$0xf]
        %v263 = vld [vmem:[%s234] sm:$0xff]
        %v264 = vld [vmem:[%s234 + $0x8] sm:$0xff]
        %v265 = vld [vmem:[%s234 + $0x10] sm:$0xff]
        %v266 = vld [vmem:[%s234 + $0x18] sm:$0xff]
        %v267 = vld [vmem:[%s234 + $0x20] sm:$0xff]
        %v268 = vld [vmem:[%s234 + $0x28] sm:$0xff]
        %v269 = vld [vmem:[%s234 + $0x30] sm:$0xff]
        %v270 = vld [vmem:[%s234 + $0x38] sm:$0xff]
        %v275 = vunpack.c.l.b16 %v259
        %v276 = vunpack.c.l.b16 %v260
        %v277 = vunpack.c.l.b16 %v261
        %v278 = vunpack.c.l.b16 %v262
        %v279 = vpack.c.b16 %v276, %v275
        %v280 = vpack.c.b16 %v278, %v277
        %v289 = vunpack.c.l.b16 %v263
        %v290 = vunpack.c.h.b16 %v263
        %v291 = vunpack.c.l.b16 %v264
        %v292 = vunpack.c.h.b16 %v264
        %v293 = vunpack.c.l.b16 %v265
        %v294 = vunpack.c.h.b16 %v265
        %v295 = vunpack.c.l.b16 %v266
        %v296 = vunpack.c.h.b16 %v266
        %v297 = vunpack.c.l.b16 %v267
        %v298 = vunpack.c.h.b16 %v267
        %v299 = vunpack.c.l.b16 %v268
        %v300 = vunpack.c.h.b16 %v268
        %v301 = vunpack.c.l.b16 %v269
        %v302 = vunpack.c.h.b16 %v269
        %v303 = vunpack.c.l.b16 %v270
        %v304 = vunpack.c.h.b16 %v270
        %v305 = vpack.c.b16 %v291, %v289
        %v306 = vpack.c.b16 %v292, %v290
        %v307 = vpack.c.b16 %v295, %v293
        %v308 = vpack.c.b16 %v296, %v294
        %v309 = vpack.c.b16 %v299, %v297
        %v310 = vpack.c.b16 %v300, %v298
        %v311 = vpack.c.b16 %v303, %v301
        %v312 = vpack.c.b16 %v304, %v302
        %vm321 = vcmask 523264
        %v323 = vsel %vm321, %v279, 0
        %v326 = vsel %vm321, %v280, 0
        %328 = vmatpush.bf16.msra.mxu0 0
        %329 = vmatpush.bf16.msra.mxu0 0
        %330 = vmatpush.bf16.msra.mxu0 0
        %331 = vmatpush.bf16.msra.mxu0 0
        %332 = vmatpush.bf16.msra.mxu0 %v311
        %333 = vmatpush.bf16.msra.mxu0 %v309
        %334 = vmatpush.bf16.msra.mxu0 %v307
        %335 = vmatpush.bf16.msra.mxu0 %v305
        %336 = vmatmul.bf16.gmra.mxu0 %v323
        %v337 = vpop.f32.mrf.mxu0
        %v338 = vadd.f32 0.0, %v337
        %v339 = vpop.f32.mrf.mxu0
        %v340 = vadd.f32 0.0, %v339
        %341 = vmatmul.bf16.gmra.mxu0 %v326
        %v342 = vpop.f32.mrf.mxu0
        %v343 = vadd.f32 0.0, %v342
        %v344 = vpop.f32.mrf.mxu0
        %v345 = vadd.f32 0.0, %v344
        %346 = vdwg.mxu0
        %347 = vmatpush.bf16.msra.mxu0 0
        %348 = vmatpush.bf16.msra.mxu0 0
        %349 = vmatpush.bf16.msra.mxu0 0
        %350 = vmatpush.bf16.msra.mxu0 0
        %351 = vmatpush.bf16.msra.mxu0 %v312
        %352 = vmatpush.bf16.msra.mxu0 %v310
        %353 = vmatpush.bf16.msra.mxu0 %v308
        %354 = vmatpush.bf16.msra.mxu0 %v306
        %355 = vmatmul.bf16.gmra.mxu0 %v323
        %v356 = vpop.f32.mrf.mxu0
        %v357 = vadd.f32 0.0, %v356
        %v358 = vpop.f32.mrf.mxu0
        %v359 = vadd.f32 0.0, %v358
        %360 = vmatmul.bf16.gmra.mxu0 %v326
        %v361 = vpop.f32.mrf.mxu0
        %v362 = vadd.f32 0.0, %v361
        %v363 = vpop.f32.mrf.mxu0
        %v364 = vadd.f32 0.0, %v363
        %365 = vdwg.mxu0
        %v366 = vld [vmem:[%s2] sm:$0xff]
        %v367 = vld [vmem:[%s2 + $0x8] sm:$0xff]
        %v368 = vld [vmem:[%s2 + $0x10] sm:$0xff]
        %v369 = vld [vmem:[%s2 + $0x18] sm:$0xff]
        %371 = vset.pattern.permute.xlu0 0
        %372 = vperm.xlu0 %371, %v366
        %v373 = vpop.permute.xlu0 %372
        %376 = vset.pattern.permute.xlu0 0
        %377 = vperm.xlu0 %376, %v367
        %v378 = vpop.permute.xlu0 %377
        %381 = vset.pattern.permute.xlu0 0
        %382 = vperm.xlu0 %381, %v368
        %v383 = vpop.permute.xlu0 %382
        %386 = vset.pattern.permute.xlu0 0
        %387 = vperm.xlu0 %386, %v369
        %v388 = vpop.permute.xlu0 %387
        %v390 = vmul.f32 %v338, %v373
        %v391 = vmul.f32 %v357, %v373
        %v392 = vmul.f32 %v340, %v378
        %v393 = vmul.f32 %v359, %v378
        %v394 = vmul.f32 %v343, %v383
        %v395 = vmul.f32 %v362, %v383
        %v396 = vmul.f32 %v345, %v388
        %v397 = vmul.f32 %v364, %v388
        %v398 = vld [vmem:[%s3] sm:$0xff]
        %v399 = vld [vmem:[%s3 + $0x8] sm:$0xff]
        %v400 = vld [vmem:[%s3 + $0x10] sm:$0xff]
        %v401 = vld [vmem:[%s3 + $0x18] sm:$0xff]
        %403 = vset.pattern.permute.xlu0 0
        %404 = vperm.xlu0 %403, %v398
        %v405 = vpop.permute.xlu0 %404
        %408 = vset.pattern.permute.xlu0 0
        %409 = vperm.xlu0 %408, %v399
        %v410 = vpop.permute.xlu0 %409
        %413 = vset.pattern.permute.xlu0 0
        %414 = vperm.xlu0 %413, %v400
        %v415 = vpop.permute.xlu0 %414
        %418 = vset.pattern.permute.xlu0 0
        %419 = vperm.xlu0 %418, %v401
        %v420 = vpop.permute.xlu0 %419
        %v422 = vadd.f32 %v390, %v405
        %v423 = vadd.f32 %v391, %v405
        %v424 = vadd.f32 %v392, %v410
        %v425 = vadd.f32 %v393, %v410
        %v426 = vadd.f32 %v394, %v415
        %v427 = vadd.f32 %v395, %v415
        %v428 = vadd.f32 %v396, %v420
        %v429 = vadd.f32 %v397, %v420
        %430 = vst [vmem:[%s255] sm:$0xff] %v422
        %431 = vst [vmem:[%s255 + $0x8] sm:$0xff] %v423
        %432 = vst [vmem:[%s255 + $0x10] sm:$0xff] %v424
        %433 = vst [vmem:[%s255 + $0x18] sm:$0xff] %v425
        %434 = vst [vmem:[%s255 + $0x20] sm:$0xff] %v426
        %435 = vst [vmem:[%s255 + $0x28] sm:$0xff] %v427
        %436 = vst [vmem:[%s255 + $0x30] sm:$0xff] %v428
        %437 = vst [vmem:[%s255 + $0x38] sm:$0xff] %v429
        %s438 = sand.u32 %s112, 1
        %s439 = sand.u32 %s112, 1
        %s440 = smul.addr %s439, 64
        %s441 = scalar_lea.vmem [#allocation3], %s440
        // Predicated region
        $region75: #{hourglass_forward.13} parent=69 // pred_check
          %p442 = pneg %p122
        $region76: #{hourglass_forward.13} parent=69 // pred_check_branch
          %444 = sbr.rel (%p442) target = $region78
        $region77: #{hourglass_forward.13} parent=69 // pred_region
          %s445 = smul.u32 2, %s15
          %s446 = smul.addr %s445, 8
          %s447 = scalar_lea.vmem %s4, %s446
          // Predicated region
          $region79: #{hourglass_forward.13} parent=77 // pred_check
            _
          $region80: #{hourglass_forward.13} parent=77 // pred_check_branch
            %449 = sbr.rel (0) target = $region82
          $region81: #{hourglass_forward.13} parent=77 // pred_region
            // Predicated region
            $region83: #{hourglass_forward.13} parent=81 // pred_check
              _
            $region84: #{hourglass_forward.13} parent=81 // pred_check_branch
              %451 = sbr.rel (0) target = $region86
            $region85: #{hourglass_forward.13} parent=81 // pred_region
              loop: start=0, step=1, limit=1
              $region87: #{hourglass_forward.13} parent=85 // loop_pre_header
                _
              $region88: #{hourglass_forward.13} parent=85 // loop_header
                %s453 = sphi 0, %s457
                %p454 = scmp.ge.s32.totalorder %s453, 1
                %s458 = sphi %s441, %s441
                %s459 = sphi %s447, %s447
              $region89: #{hourglass_forward.13} parent=85 // loop_header_branch
                %456 = sbr.rel (%p454) target = $region93
              $region90: #{hourglass_forward.13} parent=85 // loop_body
                %v460 = vld [vmem:[%s458] sm:$0xff]
                %461 = vst [vmem:[%s459] sm:$0xff] %v460
                %v462 = vld [vmem:[%s458 + $0x8] sm:$0xff]
                %463 = vst [vmem:[%s459 + $0x8] sm:$0xff] %v462
                %v464 = vld [vmem:[%s458 + $0x10] sm:$0xff]
                %465 = vst [vmem:[%s459 + $0x20] sm:$0xff] %v464
                %v466 = vld [vmem:[%s458 + $0x18] sm:$0xff]
                %467 = vst [vmem:[%s459 + $0x28] sm:$0xff] %v466
                %v468 = vld [vmem:[%s458 + $0x20] sm:$0xff]
                %469 = vst [vmem:[%s459 + $0x40] sm:$0xff] %v468
                %v470 = vld [vmem:[%s458 + $0x28] sm:$0xff]
                %471 = vst [vmem:[%s459 + $0x48] sm:$0xff] %v470
                %v472 = vld [vmem:[%s458 + $0x30] sm:$0xff]
                %473 = vst [vmem:[%s459 + $0x60] sm:$0xff] %v472
                %v474 = vld [vmem:[%s458 + $0x38] sm:$0xff]
                %475 = vst [vmem:[%s459 + $0x68] sm:$0xff] %v474
              $region91: #{hourglass_forward.13} parent=85 // loop_footer
                %s457 = sadd.s32 1, %s453
              $region92: #{hourglass_forward.13} parent=85 // loop_footer_branch
                %452 = sbr.rel target = $region88
              $region93: #{hourglass_forward.13} parent=85 // loop_exit
                _
            $region86: #{hourglass_forward.13} parent=81 // pred_fallthru
              _
            // Predicated region
            $region94: #{hourglass_forward.13} parent=81 // pred_check
              _
            $region95: #{hourglass_forward.13} parent=81 // pred_check_branch
              %477 = sbr.rel target = $region97
            $region96: #{hourglass_forward.13} parent=81 // pred_region
              _
            $region97: #{hourglass_forward.13} parent=81 // pred_fallthru
              _
          $region82: #{hourglass_forward.13} parent=77 // pred_fallthru
            _
          %478 = vnop
        $region78: #{hourglass_forward.13} parent=69 // pred_fallthru
          _
      $region70: #{hourglass_forward.13} parent=5 // pred_fallthru
        _
      %p479 = scmp.le.s32.totalorder 2, %s10
      // Predicated region
      $region98: #{hourglass_forward.13} parent=5 // pred_check
        %p480 = pneg %p479
      $region99: #{hourglass_forward.13} parent=5 // pred_check_branch
        %482 = sbr.rel (%p480) target = $region101
      $region100: #{hourglass_forward.13} parent=5 // pred_region
        %s483 = ssub.s32 %s10, 2
        // Predicated region
        $region102: #{hourglass_forward.13} parent=100 // pred_check
          %p484 = pneg %p128
        $region103: #{hourglass_forward.13} parent=100 // pred_check_branch
          %486 = sbr.rel (%p484) target = $region105
        $region104: #{hourglass_forward.13} parent=100 // pred_region
          %s487 = sand.u32 %s113, 1
          %s488 = sand.u32 %s113, 1
          %s489 = smul.addr %s488, 64
          %s490 = scalar_lea.vmem [#allocation3], %s489
        $region105: #{hourglass_forward.13} parent=100 // pred_fallthru
          _
      $region101: #{hourglass_forward.13} parent=5 // pred_fallthru
        _
    $region6: #{hourglass_forward.13} parent=1 // loop_footer
      %s14 = sadd.s32 1, %s10
    $region7: #{hourglass_forward.13} parent=1 // loop_footer_branch
      %9 = sbr.rel target = $region3
    $region8: #{hourglass_forward.13} parent=1 // loop_exit
      _

</llo_original>
